<compile_context>
chip_gen: v7x
topology: tpu7x:2x2x1
jax: 0.10.0
libtpu: 0.0.40
codegen_flags: <defaults>
</compile_context>

<pallas_src>
import jax
import jax.numpy as jnp
from jax.experimental import pallas as pl
from jax.experimental.pallas import tpu as pltpu

_BN_EPS = 1e-5      # nn.BatchNorm1d default eps
_LANE = 128
_SUB = 8


def _round_up(x, m):
    return (x + m - 1) // m * m


# ---------------------------------------------------------------------------
# Fused head kernel: one (TB, Dp) batch tile per grid step, weights resident.
# ---------------------------------------------------------------------------
def _head_kernel(x_ref, w1_ref, s1_ref, t1_ref, w2_ref, s2_ref, t2_ref,
                 w3_ref, b3_ref, o_ref):
    x = x_ref[...].astype(jnp.float32)                                   # (TB, Dp)

    # Linear(1000,1000) + bias + BatchNorm1d folded into scale/shift.
    h = jnp.dot(x, w1_ref[...], preferred_element_type=jnp.float32)      # MXU
    h = h * s1_ref[...] + t1_ref[...]                                    # VPU fma
    h = jnp.maximum(h, 0.0)                                              # ReLU

    # Second Linear + bias + BatchNorm1d (folded).
    h = jnp.dot(h, w2_ref[...], preferred_element_type=jnp.float32)      # MXU
    h = h * s2_ref[...] + t2_ref[...]

    # Residual add with the backbone features.
    y = x + h

    # Classification head: Linear(1000, num_grade) + Sigmoid (EUP logistic).
    logits = jnp.dot(y, w3_ref[...], preferred_element_type=jnp.float32) # MXU
    logits = logits + b3_ref[...]
    o_ref[...] = jax.nn.sigmoid(logits).astype(o_ref.dtype)


# ---------------------------------------------------------------------------
# Wrapper
# ---------------------------------------------------------------------------
def custom_model_head(feats, params, *, tile_b=256):
    """Post-backbone forward of CustomModel.

    feats : (B, 1000) backbone output.
    params: dict with PyTorch-layout tensors:
        w1,w2 : (1000, 1000)  Linear weights (out, in)     b1,b2 : (1000,)
        g1,be1,m1,v1 / g2,be2,m2,v2 : BatchNorm1d gamma/beta/running_mean/var
        w3    : (num_grade, 1000)                          b3    : (num_grade,)
    """
    B, D = feats.shape
    G = params["w3"].shape[0]

    Dp = _round_up(D, _LANE)                 # 1000 -> 1024, lane-dense
    Gp = _round_up(G, _LANE)                 # lane-dense output stores
    TB = min(_round_up(B, _SUB), _round_up(int(tile_b), _SUB))
    Bp = _round_up(B, TB)
    n_bt = Bp // TB

    # Fold Linear bias + eval-mode BatchNorm1d into one scale/shift:
    #   BN(z@W + b) = (z@W) * scale + (b*scale + shift)
    def fold(b, gamma, beta, mean, var):
        scale = gamma * jax.lax.rsqrt(var + _BN_EPS)
        shift = beta - mean * scale
        return scale, b * scale + shift

    s1, t1 = fold(params["b1"], params["g1"], params["be1"], params["m1"], params["v1"])
    s2, t2 = fold(params["b2"], params["g2"], params["be2"], params["m2"], params["v2"])

    def pad2(a, r, c):
        a = a.astype(jnp.float32)
        return jnp.pad(a, ((0, r - a.shape[0]), (0, c - a.shape[1])))

    def pad_row(v, c):
        v = v.astype(jnp.float32).reshape(1, -1)
        return jnp.pad(v, ((0, 0), (0, c - v.shape[1])))

    # Zero padding keeps padded rows/cols exactly zero through the whole chain.
    xp  = pad2(feats, Bp, Dp)
    w1t = pad2(params["w1"].T, Dp, Dp)       # (in, out) layout -> plain x @ W
    w2t = pad2(params["w2"].T, Dp, Dp)
    w3t = pad2(params["w3"].T, Dp, Gp)
    s1p, t1p = pad_row(s1, Dp), pad_row(t1, Dp)
    s2p, t2p = pad_row(s2, Dp), pad_row(t2, Dp)
    b3p = pad_row(params["b3"], Gp)

    full = lambda i: (0, 0)                  # weights: constant block -> stay resident

    # VMEM budget: double-buffered blocks + f32 activation intermediates.
    blk_bytes = 4 * (TB * Dp + 2 * Dp * Dp + Dp * Gp + 4 * Dp + Gp + TB * Gp)
    vmem_limit = int(min(56 << 20, max(32 << 20, 2 * blk_bytes + 6 * TB * Dp * 4)))

    out = pl.pallas_call(
        _head_kernel,
        out_shape=jax.ShapeDtypeStruct((Bp, Gp), feats.dtype),
        grid=(n_bt,),
        in_specs=[
            pl.BlockSpec((TB, Dp), lambda i: (i, 0)),   # features
            pl.BlockSpec((Dp, Dp), full),               # W1^T
            pl.BlockSpec((1, Dp), full),                # scale1
            pl.BlockSpec((1, Dp), full),                # shift1
            pl.BlockSpec((Dp, Dp), full),               # W2^T
            pl.BlockSpec((1, Dp), full),                # scale2
            pl.BlockSpec((1, Dp), full),                # shift2
            pl.BlockSpec((Dp, Gp), full),               # W3^T
            pl.BlockSpec((1, Gp), full),                # b3
        ],
        out_specs=pl.BlockSpec((TB, Gp), lambda i: (i, 0)),
        compiler_params=pltpu.CompilerParams(
            dimension_semantics=("parallel",),
            vmem_limit_bytes=vmem_limit),
    )(xp, w1t, s1p, t1p, w2t, s2p, t2p, w3t, b3p)

    return out[:B, :G]


# ---------------------------------------------------------------------------
# Pure-JAX reference (eval-mode BN), for correctness check.
# ---------------------------------------------------------------------------
def _reference(feats, params):
    hp = jax.lax.Precision.HIGHEST
    x = feats.astype(jnp.float32)

    def bn(z, g, b, m, v):
        return (z - m) * jax.lax.rsqrt(v + _BN_EPS) * g + b

    h = jnp.dot(x, params["w1"].T, precision=hp) + params["b1"]
    h = bn(h, params["g1"], params["be1"], params["m1"], params["v1"])
    h = jnp.maximum(h, 0.0)
    h = jnp.dot(h, params["w2"].T, precision=hp) + params["b2"]
    h = bn(h, params["g2"], params["be2"], params["m2"], params["v2"])
    y = x + h
    logits = jnp.dot(y, params["w3"].T, precision=hp) + params["b3"]
    return jax.nn.sigmoid(logits).astype(feats.dtype)


if __name__ == "__main__":
    key = jax.random.PRNGKey(0)
    B, D, G = 2, 1000, 4          # D=1000 fixed by the module; num_grade=4
    ks = jax.random.split(key, 12)

    feats = jax.random.normal(ks[0], (B, D), dtype=jnp.float32)

    def xavier(k, shape):
        fan_out, fan_in = shape
        lim = (6.0 / (fan_in + fan_out)) ** 0.5
        return jax.random.uniform(k, shape, jnp.float32, -lim, lim)

    # Linear weights: xavier_uniform, biases 0.01 (per CustomModel.init_weights).
    # BN params/running stats use nonzero deterministic values so the full path
    # is exercised (the module's init sets gamma=0, which would zero the chain).
    params = dict(
        w1=xavier(ks[1], (D, D)), b1=jnp.full((D,), 0.01, jnp.float32),
        g1=jax.random.uniform(ks[2], (D,), jnp.float32, 0.5, 1.5),
        be1=0.1 * jax.random.normal(ks[3], (D,), jnp.float32),
        m1=0.1 * jax.random.normal(ks[4], (D,), jnp.float32),
        v1=jax.random.uniform(ks[5], (D,), jnp.float32, 0.5, 1.5),
        w2=xavier(ks[6], (D, D)), b2=jnp.full((D,), 0.01, jnp.float32),
        g2=jax.random.uniform(ks[7], (D,), jnp.float32, 0.5, 1.5),
        be2=0.1 * jax.random.normal(ks[8], (D,), jnp.float32),
        m2=0.1 * jax.random.normal(ks[9], (D,), jnp.float32),
        v2=jax.random.uniform(ks[10], (D,), jnp.float32, 0.5, 1.5),
        w3=xavier(ks[11], (G, D)), b3=jnp.full((G,), 0.01, jnp.float32),
    )

    out = jax.block_until_ready(custom_model_head(feats, params))
    ref = _reference(feats, params)

    assert out.shape == (B, G)
    assert jnp.allclose(out, ref, atol=1e-4, rtol=1e-4), \
        f"max abs diff {float(jnp.max(jnp.abs(out - ref)))}"

    print("KERNEL_OK")
</pallas_src>

<mosaic_0001>
module attributes {stable_mosaic.version = 11 : i64} {
  func.func @_head_kernel(%arg0: i32, %arg1: memref<8x1024xf32, #tpu.memory_space<vmem>>, %arg2: memref<1024x1024xf32, #tpu.memory_space<vmem>>, %arg3: memref<1x1024xf32, #tpu.memory_space<vmem>>, %arg4: memref<1x1024xf32, #tpu.memory_space<vmem>>, %arg5: memref<1024x1024xf32, #tpu.memory_space<vmem>>, %arg6: memref<1x1024xf32, #tpu.memory_space<vmem>>, %arg7: memref<1x1024xf32, #tpu.memory_space<vmem>>, %arg8: memref<1024x128xf32, #tpu.memory_space<vmem>>, %arg9: memref<1x128xf32, #tpu.memory_space<vmem>>, %arg10: memref<8x128xf32, #tpu.memory_space<vmem>>) attributes {dimension_semantics = [#tpu.dimension_semantics<parallel>], iteration_bounds = array<i64: 1>, scalar_prefetch = 0 : i64, scratch_operands = 0 : i64, tpu.core_type = #tpu.core_type<tc>, window_params = [{transform_indices = @transform_0, window_bounds = array<i64: 8, 1024>}, {pipeline_mode = #tpu.pipeline_mode<synchronous>, transform_indices = @transform_1, window_bounds = array<i64: 1024, 1024>}, {pipeline_mode = #tpu.pipeline_mode<synchronous>, transform_indices = @transform_2, window_bounds = array<i64: 1, 1024>}, {pipeline_mode = #tpu.pipeline_mode<synchronous>, transform_indices = @transform_3, window_bounds = array<i64: 1, 1024>}, {pipeline_mode = #tpu.pipeline_mode<synchronous>, transform_indices = @transform_4, window_bounds = array<i64: 1024, 1024>}, {pipeline_mode = #tpu.pipeline_mode<synchronous>, transform_indices = @transform_5, window_bounds = array<i64: 1, 1024>}, {pipeline_mode = #tpu.pipeline_mode<synchronous>, transform_indices = @transform_6, window_bounds = array<i64: 1, 1024>}, {pipeline_mode = #tpu.pipeline_mode<synchronous>, transform_indices = @transform_7, window_bounds = array<i64: 1024, 128>}, {pipeline_mode = #tpu.pipeline_mode<synchronous>, transform_indices = @transform_8, window_bounds = array<i64: 1, 128>}, {transform_indices = @transform_9, window_bounds = array<i64: 8, 128>}]} {
    %c0 = arith.constant 0 : index
    %c0_0 = arith.constant 0 : index
    %0 = vector.load %arg1[%c0, %c0_0] : memref<8x1024xf32, #tpu.memory_space<vmem>>, vector<8x1024xf32>
    %c0_1 = arith.constant 0 : index
    %c0_2 = arith.constant 0 : index
    %1 = vector.load %arg2[%c0_1, %c0_2] : memref<1024x1024xf32, #tpu.memory_space<vmem>>, vector<1024x1024xf32>
    %cst = arith.constant dense<0.000000e+00> : vector<8x1024xf32>
    %2 = tpu.matmul %0, %1, %cst {dimension_numbers = #tpu.dot_dimension_numbers<[1], [0], [0], [1], [0, 0, 1, 1], [], []>} : vector<8x1024xf32>, vector<1024x1024xf32>, vector<8x1024xf32> -> vector<8x1024xf32>
    %c0_3 = arith.constant 0 : index
    %c0_4 = arith.constant 0 : index
    %3 = vector.load %arg3[%c0_3, %c0_4] : memref<1x1024xf32, #tpu.memory_space<vmem>>, vector<1x1024xf32>
    %4 = vector.broadcast %3 : vector<1x1024xf32> to vector<8x1024xf32>
    %5 = arith.mulf %2, %4 : vector<8x1024xf32>
    %c0_5 = arith.constant 0 : index
    %c0_6 = arith.constant 0 : index
    %6 = vector.load %arg4[%c0_5, %c0_6] : memref<1x1024xf32, #tpu.memory_space<vmem>>, vector<1x1024xf32>
    %7 = vector.broadcast %6 : vector<1x1024xf32> to vector<8x1024xf32>
    %8 = arith.addf %5, %7 : vector<8x1024xf32>
    %cst_7 = arith.constant 0.000000e+00 : f32
    %9 = vector.broadcast %cst_7 : f32 to vector<8x1024xf32>
    %10 = arith.maximumf %8, %9 : vector<8x1024xf32>
    %c0_8 = arith.constant 0 : index
    %c0_9 = arith.constant 0 : index
    %11 = vector.load %arg5[%c0_8, %c0_9] : memref<1024x1024xf32, #tpu.memory_space<vmem>>, vector<1024x1024xf32>
    %cst_10 = arith.constant dense<0.000000e+00> : vector<8x1024xf32>
    %12 = tpu.matmul %10, %11, %cst_10 {dimension_numbers = #tpu.dot_dimension_numbers<[1], [0], [0], [1], [0, 0, 1, 1], [], []>} : vector<8x1024xf32>, vector<1024x1024xf32>, vector<8x1024xf32> -> vector<8x1024xf32>
    %c0_11 = arith.constant 0 : index
    %c0_12 = arith.constant 0 : index
    %13 = vector.load %arg6[%c0_11, %c0_12] : memref<1x1024xf32, #tpu.memory_space<vmem>>, vector<1x1024xf32>
    %14 = vector.broadcast %13 : vector<1x1024xf32> to vector<8x1024xf32>
    %15 = arith.mulf %12, %14 : vector<8x1024xf32>
    %c0_13 = arith.constant 0 : index
    %c0_14 = arith.constant 0 : index
    %16 = vector.load %arg7[%c0_13, %c0_14] : memref<1x1024xf32, #tpu.memory_space<vmem>>, vector<1x1024xf32>
    %17 = vector.broadcast %16 : vector<1x1024xf32> to vector<8x1024xf32>
    %18 = arith.addf %15, %17 : vector<8x1024xf32>
    %19 = arith.addf %0, %18 : vector<8x1024xf32>
    %c0_15 = arith.constant 0 : index
    %c0_16 = arith.constant 0 : index
    %20 = vector.load %arg8[%c0_15, %c0_16] : memref<1024x128xf32, #tpu.memory_space<vmem>>, vector<1024x128xf32>
    %cst_17 = arith.constant dense<0.000000e+00> : vector<8x128xf32>
    %21 = tpu.matmul %19, %20, %cst_17 {dimension_numbers = #tpu.dot_dimension_numbers<[1], [0], [0], [1], [0, 0, 1, 1], [], []>} : vector<8x1024xf32>, vector<1024x128xf32>, vector<8x128xf32> -> vector<8x128xf32>
    %c0_18 = arith.constant 0 : index
    %c0_19 = arith.constant 0 : index
    %22 = vector.load %arg9[%c0_18, %c0_19] : memref<1x128xf32, #tpu.memory_space<vmem>>, vector<1x128xf32>
    %23 = vector.broadcast %22 : vector<1x128xf32> to vector<8x128xf32>
    %24 = arith.addf %21, %23 : vector<8x128xf32>
    %25 = arith.negf %24 : vector<8x128xf32>
    %26 = math.exp %25 : vector<8x128xf32>
    %cst_20 = arith.constant 1.000000e+00 : f32
    %27 = vector.broadcast %cst_20 : f32 to vector<8x128xf32>
    %28 = arith.addf %27, %26 : vector<8x128xf32>
    %29 = arith.divf %27, %28 : vector<8x128xf32>
    %c0_21 = arith.constant 0 : index
    %c0_22 = arith.constant 0 : index
    %30 = vector.load %arg10[%c0_21, %c0_22] : memref<8x128xf32, #tpu.memory_space<vmem>>, vector<8x128xf32>
    tpu.vector_store %arg10[%c0_21, %c0_22], %29 {strides = array<i32>} : memref<8x128xf32, #tpu.memory_space<vmem>>, vector<8x128xf32>,
    return
  }
  func.func @transform_0(%arg0: i32) -> (i32, i32) {
    %c0_i32 = arith.constant 0 : i32
    %c0_i32_0 = arith.constant 0 : i32
    return %arg0, %c0_i32 : i32, i32
  }
  func.func @transform_1(%arg0: i32) -> (i32, i32) {
    %c0_i32 = arith.constant 0 : i32
    %c0_i32_0 = arith.constant 0 : i32
    %c0_i32_1 = arith.constant 0 : i32
    return %c0_i32, %c0_i32_0 : i32, i32
  }
  func.func @transform_2(%arg0: i32) -> (i32, i32) {
    %c0_i32 = arith.constant 0 : i32
    %c0_i32_0 = arith.constant 0 : i32
    %c0_i32_1 = arith.constant 0 : i32
    return %c0_i32, %c0_i32_0 : i32, i32
  }
  func.func @transform_3(%arg0: i32) -> (i32, i32) {
    %c0_i32 = arith.constant 0 : i32
    %c0_i32_0 = arith.constant 0 : i32
    %c0_i32_1 = arith.constant 0 : i32
    return %c0_i32, %c0_i32_0 : i32, i32
  }
  func.func @transform_4(%arg0: i32) -> (i32, i32) {
    %c0_i32 = arith.constant 0 : i32
    %c0_i32_0 = arith.constant 0 : i32
    %c0_i32_1 = arith.constant 0 : i32
    return %c0_i32, %c0_i32_0 : i32, i32
  }
  func.func @transform_5(%arg0: i32) -> (i32, i32) {
    %c0_i32 = arith.constant 0 : i32
    %c0_i32_0 = arith.constant 0 : i32
    %c0_i32_1 = arith.constant 0 : i32
    return %c0_i32, %c0_i32_0 : i32, i32
  }
  func.func @transform_6(%arg0: i32) -> (i32, i32) {
    %c0_i32 = arith.constant 0 : i32
    %c0_i32_0 = arith.constant 0 : i32
    %c0_i32_1 = arith.constant 0 : i32
    return %c0_i32, %c0_i32_0 : i32, i32
  }
  func.func @transform_7(%arg0: i32) -> (i32, i32) {
    %c0_i32 = arith.constant 0 : i32
    %c0_i32_0 = arith.constant 0 : i32
    %c0_i32_1 = arith.constant 0 : i32
    return %c0_i32, %c0_i32_0 : i32, i32
  }
  func.func @transform_8(%arg0: i32) -> (i32, i32) {
    %c0_i32 = arith.constant 0 : i32
    %c0_i32_0 = arith.constant 0 : i32
    %c0_i32_1 = arith.constant 0 : i32
    return %c0_i32, %c0_i32_0 : i32, i32
  }
  func.func @transform_9(%arg0: i32) -> (i32, i32) {
    %c0_i32 = arith.constant 0 : i32
    %c0_i32_0 = arith.constant 0 : i32
    return %arg0, %c0_i32 : i32, i32
  }
}

</mosaic_0001>

<llo_original>
// kernel: tpu_custom_call.1
$region0: #{tpu_custom_call.1}
  #allocation0 [shape = 'u32[]', space=smem, size = 0x4, offset = 0x4, fixed_abs, tag = 'smem constant byte address 0x4 - core index']
  #allocation1 [shape = 'u32[144,128]{1,0:T(1,128)}', space=vmem, size = 0x12000, scoped, tag = 'internal scratch']
  %s0 = inlined_call_operand.hbm [shape: f32[8,1024], index: 0, kind: input, shape index: {}]
  %s1 = inlined_call_operand.hbm [shape: f32[1024,1024], index: 1, kind: input, shape index: {}]
  %s2 = inlined_call_operand.hbm [shape: f32[1,1024], index: 2, kind: input, shape index: {}]
  %s3 = inlined_call_operand.hbm [shape: f32[1,1024], index: 3, kind: input, shape index: {}]
  %s4 = inlined_call_operand.hbm [shape: f32[1024,1024], index: 4, kind: input, shape index: {}]
  %s5 = inlined_call_operand.hbm [shape: f32[1,1024], index: 5, kind: input, shape index: {}]
  %s6 = inlined_call_operand.hbm [shape: f32[1,1024], index: 6, kind: input, shape index: {}]
  %s7 = inlined_call_operand.hbm [shape: f32[1024,128], index: 7, kind: input, shape index: {}]
  %s8 = inlined_call_operand.hbm [shape: f32[1,128], index: 8, kind: input, shape index: {}]
  %s9 = inlined_call_operand.hbm [shape: f32[8,128], index: 9, kind: output, shape index: {}]
  %s10 = sld [smem:[#allocation0]]
  $region82: #{tpu_custom_call.1} parent=0
    _
  %s12 = ssub.s32 1, %s10
  %s13 = scalar_select 0, %s12, %s10
  $region1: #{tpu_custom_call.1} parent=0
    #allocation2 [shape = 'u8[32768]{0}', space=vmem, size = 0x8000, scoped, tag = 'input window, operand 0, single buffered']
    #allocation3 [shape = 's32[1]{0}', space=sflag, size = 0x4, scoped, tag = 'scoped memory for tpu_custom_call.1']
    #allocation4 [shape = 's32[1]{0}', space=sflag, size = 0x4, scoped, tag = 'scoped memory for tpu_custom_call.1']
    #allocation5 [shape = 'u8[4194304]{0}', space=vmem, size = 0x400000, scoped, tag = 'input window, operand 1, single buffered']
    #allocation6 [shape = 's32[1]{0}', space=sflag, size = 0x4, scoped, tag = 'scoped memory for tpu_custom_call.1']
    #allocation7 [shape = 'u8[4096]{0}', space=vmem, size = 0x1000, scoped, tag = 'input window, operand 2, single buffered']
    #allocation8 [shape = 'u8[4096]{0}', space=vmem, size = 0x1000, scoped, tag = 'input window, operand 3, single buffered']
    #allocation9 [shape = 's32[1]{0}', space=sflag, size = 0x4, scoped, tag = 'scoped memory for tpu_custom_call.1']
    #allocation10 [shape = 'u8[4194304]{0}', space=vmem, size = 0x400000, scoped, tag = 'input window, operand 4, single buffered']
    #allocation11 [shape = 'u8[4096]{0}', space=vmem, size = 0x1000, scoped, tag = 'input window, operand 5, single buffered']
    #allocation12 [shape = 's32[1]{0}', space=sflag, size = 0x4, scoped, tag = 'scoped memory for tpu_custom_call.1']
    #allocation13 [shape = 'u8[4096]{0}', space=vmem, size = 0x1000, scoped, tag = 'input window, operand 6, single buffered']
    #allocation14 [shape = 'u8[524288]{0}', space=vmem, size = 0x80000, scoped, tag = 'input window, operand 7, single buffered']
    #allocation15 [shape = 's32[1]{0}', space=sflag, size = 0x4, scoped, tag = 'scoped memory for tpu_custom_call.1']
    #allocation16 [shape = 'u8[512]{0}', space=vmem, size = 0x400, scoped, tag = 'input window, operand 8, single buffered']
    #allocation17 [shape = 'u8[4096]{0}', space=vmem, size = 0x1000, scoped, tag = 'output window, operand 0, single buffered']
    %14 = vsyncpa [#allocation3], 0
    %15 = vsyncpa [#allocation6], 0
    %16 = vsyncpa [#allocation9], 0
    %17 = vsyncpa [#allocation12], 0
    %18 = vsyncpa [#allocation15], 0
    %19 = vsyncpa [#allocation4], 0
    // Predicated region
    $region2: #{tpu_custom_call.1} parent=1 // pred_check
      _
    $region3: #{tpu_custom_call.1} parent=1 // pred_check_branch
      %21 = sbr.rel (0) target = $region5
    $region4: #{tpu_custom_call.1} parent=1 // pred_region
      %s23 = ssub.s32 1024, 1024
      %24 = vsyncadd [#allocation3], %s23
      %s26 = sshll.u32 [#allocation2], 4
      %s27 = int_to_ptr.vmem [resolvable:$true] %s26
      %29 = dma.hbm_to_vmem [thread:$0]  %s0, 1024, %s27, [#allocation3]
    $region5: #{tpu_custom_call.1} parent=1 // pred_fallthru
      _
    // Predicated region
    $region6: #{tpu_custom_call.1} parent=1 // pred_check
      _
    $region7: #{tpu_custom_call.1} parent=1 // pred_check_branch
      %31 = sbr.rel (0) target = $region9
    $region8: #{tpu_custom_call.1} parent=1 // pred_region
      %s33 = ssub.s32 131072, 131072
      %34 = vsyncadd [#allocation6], %s33
      %s35 = sshll.u32 [#allocation5], 4
      %s36 = int_to_ptr.vmem [resolvable:$true] %s35
      %41 = dma.hbm_to_vmem [thread:$0]  %s1, 131072, %s36, [#allocation6], 1024, 1024, 64
    $region9: #{tpu_custom_call.1} parent=1 // pred_fallthru
      _
    // Predicated region
    $region10: #{tpu_custom_call.1} parent=1 // pred_check
      _
    $region11: #{tpu_custom_call.1} parent=1 // pred_check_branch
      %43 = sbr.rel (0) target = $region13
    $region12: #{tpu_custom_call.1} parent=1 // pred_region
      %s45 = ssub.s32 128, 128
      %46 = vsyncadd [#allocation6], %s45
      %s48 = sshll.u32 [#allocation7], 4
      %s49 = int_to_ptr.vmem [resolvable:$true] %s48
      %51 = dma.hbm_to_vmem [thread:$0]  %s2, 128, %s49, [#allocation6]
    $region13: #{tpu_custom_call.1} parent=1 // pred_fallthru
      _
    // Predicated region
    $region14: #{tpu_custom_call.1} parent=1 // pred_check
      _
    $region15: #{tpu_custom_call.1} parent=1 // pred_check_branch
      %53 = sbr.rel (0) target = $region17
    $region16: #{tpu_custom_call.1} parent=1 // pred_region
      %s55 = ssub.s32 128, 128
      %56 = vsyncadd [#allocation9], %s55
      %s58 = sshll.u32 [#allocation8], 4
      %s59 = int_to_ptr.vmem [resolvable:$true] %s58
      %61 = dma.hbm_to_vmem [thread:$0]  %s3, 128, %s59, [#allocation9]
    $region17: #{tpu_custom_call.1} parent=1 // pred_fallthru
      _
    // Predicated region
    $region18: #{tpu_custom_call.1} parent=1 // pred_check
      _
    $region19: #{tpu_custom_call.1} parent=1 // pred_check_branch
      %63 = sbr.rel (0) target = $region21
    $region20: #{tpu_custom_call.1} parent=1 // pred_region
      %s65 = ssub.s32 131072, 131072
      %66 = vsyncadd [#allocation9], %s65
      %s67 = sshll.u32 [#allocation10], 4
      %s68 = int_to_ptr.vmem [resolvable:$true] %s67
      %73 = dma.hbm_to_vmem [thread:$0]  %s4, 131072, %s68, [#allocation9], 1024, 1024, 64
    $region21: #{tpu_custom_call.1} parent=1 // pred_fallthru
      _
    // Predicated region
    $region22: #{tpu_custom_call.1} parent=1 // pred_check
      _
    $region23: #{tpu_custom_call.1} parent=1 // pred_check_branch
      %75 = sbr.rel (0) target = $region25
    $region24: #{tpu_custom_call.1} parent=1 // pred_region
      %s77 = ssub.s32 128, 128
      %78 = vsyncadd [#allocation12], %s77
      %s80 = sshll.u32 [#allocation11], 4
      %s81 = int_to_ptr.vmem [resolvable:$true] %s80
      %83 = dma.hbm_to_vmem [thread:$0]  %s5, 128, %s81, [#allocation12]
    $region25: #{tpu_custom_call.1} parent=1 // pred_fallthru
      _
    // Predicated region
    $region26: #{tpu_custom_call.1} parent=1 // pred_check
      _
    $region27: #{tpu_custom_call.1} parent=1 // pred_check_branch
      %85 = sbr.rel (0) target = $region29
    $region28: #{tpu_custom_call.1} parent=1 // pred_region
      %s87 = ssub.s32 128, 128
      %88 = vsyncadd [#allocation12], %s87
      %s90 = sshll.u32 [#allocation13], 4
      %s91 = int_to_ptr.vmem [resolvable:$true] %s90
      %93 = dma.hbm_to_vmem [thread:$0]  %s6, 128, %s91, [#allocation12]
    $region29: #{tpu_custom_call.1} parent=1 // pred_fallthru
      _
    // Predicated region
    $region30: #{tpu_custom_call.1} parent=1 // pred_check
      _
    $region31: #{tpu_custom_call.1} parent=1 // pred_check_branch
      %95 = sbr.rel (0) target = $region33
    $region32: #{tpu_custom_call.1} parent=1 // pred_region
      %s97 = ssub.s32 16384, 16384
      %98 = vsyncadd [#allocation15], %s97
      %s99 = sshll.u32 [#allocation14], 4
      %s100 = int_to_ptr.vmem [resolvable:$true] %s99
      %105 = dma.hbm_to_vmem [thread:$0]  %s7, 16384, %s100, [#allocation15], 128, 128, 8
    $region33: #{tpu_custom_call.1} parent=1 // pred_fallthru
      _
    // Predicated region
    $region34: #{tpu_custom_call.1} parent=1 // pred_check
      _
    $region35: #{tpu_custom_call.1} parent=1 // pred_check_branch
      %107 = sbr.rel (0) target = $region37
    $region36: #{tpu_custom_call.1} parent=1 // pred_region
      %s109 = ssub.s32 16, 16
      %110 = vsyncadd [#allocation15], %s109
      %s112 = sshll.u32 [#allocation16], 4
      %s113 = int_to_ptr.vmem [resolvable:$true] %s112
      %115 = dma.hbm_to_vmem [thread:$0]  %s8, 16, %s113, [#allocation15]
    $region37: #{tpu_custom_call.1} parent=1 // pred_fallthru
      _
    // Predicated region
    $region38: #{tpu_custom_call.1} parent=1 // pred_check
      _
    $region39: #{tpu_custom_call.1} parent=1 // pred_check_branch
      %117 = sbr.rel (0) target = $region41
    $region40: #{tpu_custom_call.1} parent=1 // pred_region
      %118 = dma.done [#allocation3], 1024
    $region41: #{tpu_custom_call.1} parent=1 // pred_fallthru
      _
    // Predicated region
    $region42: #{tpu_custom_call.1} parent=1 // pred_check
      _
    $region43: #{tpu_custom_call.1} parent=1 // pred_check_branch
      %120 = sbr.rel (0) target = $region45
    $region44: #{tpu_custom_call.1} parent=1 // pred_region
      %121 = dma.done [#allocation6], 131072
    $region45: #{tpu_custom_call.1} parent=1 // pred_fallthru
      _
    // Predicated region
    $region46: #{tpu_custom_call.1} parent=1 // pred_check
      _
    $region47: #{tpu_custom_call.1} parent=1 // pred_check_branch
      %123 = sbr.rel (0) target = $region49
    $region48: #{tpu_custom_call.1} parent=1 // pred_region
      %124 = dma.done [#allocation6], 128
    $region49: #{tpu_custom_call.1} parent=1 // pred_fallthru
      _
    // Predicated region
    $region50: #{tpu_custom_call.1} parent=1 // pred_check
      _
    $region51: #{tpu_custom_call.1} parent=1 // pred_check_branch
      %126 = sbr.rel (0) target = $region53
    $region52: #{tpu_custom_call.1} parent=1 // pred_region
      %127 = dma.done [#allocation9], 128
    $region53: #{tpu_custom_call.1} parent=1 // pred_fallthru
      _
    // Predicated region
    $region54: #{tpu_custom_call.1} parent=1 // pred_check
      _
    $region55: #{tpu_custom_call.1} parent=1 // pred_check_branch
      %129 = sbr.rel (0) target = $region57
    $region56: #{tpu_custom_call.1} parent=1 // pred_region
      %130 = dma.done [#allocation9], 131072
    $region57: #{tpu_custom_call.1} parent=1 // pred_fallthru
      _
    // Predicated region
    $region58: #{tpu_custom_call.1} parent=1 // pred_check
      _
    $region59: #{tpu_custom_call.1} parent=1 // pred_check_branch
      %132 = sbr.rel (0) target = $region61
    $region60: #{tpu_custom_call.1} parent=1 // pred_region
      %133 = dma.done [#allocation12], 128
    $region61: #{tpu_custom_call.1} parent=1 // pred_fallthru
      _
    // Predicated region
    $region62: #{tpu_custom_call.1} parent=1 // pred_check
      _
    $region63: #{tpu_custom_call.1} parent=1 // pred_check_branch
      %135 = sbr.rel (0) target = $region65
    $region64: #{tpu_custom_call.1} parent=1 // pred_region
      %136 = dma.done [#allocation12], 128
    $region65: #{tpu_custom_call.1} parent=1 // pred_fallthru
      _
    // Predicated region
    $region66: #{tpu_custom_call.1} parent=1 // pred_check
      _
    $region67: #{tpu_custom_call.1} parent=1 // pred_check_branch
      %138 = sbr.rel (0) target = $region69
    $region68: #{tpu_custom_call.1} parent=1 // pred_region
      %139 = dma.done [#allocation15], 16384
    $region69: #{tpu_custom_call.1} parent=1 // pred_fallthru
      _
    // Predicated region
    $region70: #{tpu_custom_call.1} parent=1 // pred_check
      _
    $region71: #{tpu_custom_call.1} parent=1 // pred_check_branch
      %141 = sbr.rel (0) target = $region73
    $region72: #{tpu_custom_call.1} parent=1 // pred_region
      %142 = dma.done [#allocation15], 16
    $region73: #{tpu_custom_call.1} parent=1 // pred_fallthru
      _
    %v143 = vld [vmem:[#allocation2] sm:$0xff]
    %v144 = vld [vmem:[#allocation2 + $0x8] sm:$0xff]
    %v145 = vld [vmem:[#allocation2 + $0x10] sm:$0xff]
    %v146 = vld [vmem:[#allocation2 + $0x18] sm:$0xff]
    %v147 = vld [vmem:[#allocation2 + $0x20] sm:$0xff]
    %v148 = vld [vmem:[#allocation2 + $0x28] sm:$0xff]
    %v149 = vld [vmem:[#allocation2 + $0x30] sm:$0xff]
    %v150 = vld [vmem:[#allocation2 + $0x38] sm:$0xff]
    %v151 = vld [vmem:[#allocation5] sm:$0xff]
    %v152 = vld [vmem:[#allocation5 + $0x8] sm:$0xff]
    %v153 = vld [vmem:[#allocation5 + $0x10] sm:$0xff]
    %v154 = vld [vmem:[#allocation5 + $0x18] sm:$0xff]
    %v155 = vld [vmem:[#allocation5 + $0x20] sm:$0xff]
    %v156 = vld [vmem:[#allocation5 + $0x28] sm:$0xff]
    %v157 = vld [vmem:[#allocation5 + $0x30] sm:$0xff]
    %v158 = vld [vmem:[#allocation5 + $0x38] sm:$0xff]
    %v159 = vld [vmem:[#allocation5 + $0x40] sm:$0xff]
    %v160 = vld [vmem:[#allocation5 + $0x48] sm:$0xff]
    %v161 = vld [vmem:[#allocation5 + $0x50] sm:$0xff]
    %v162 = vld [vmem:[#allocation5 + $0x58] sm:$0xff]
    %v163 = vld [vmem:[#allocation5 + $0x60] sm:$0xff]
    %v164 = vld [vmem:[#allocation5 + $0x68] sm:$0xff]
    %v165 = vld [vmem:[#allocation5 + $0x70] sm:$0xff]
    %v166 = vld [vmem:[#allocation5 + $0x78] sm:$0xff]
    %v167 = vld [vmem:[#allocation5 + $0x80] sm:$0xff]
    %v168 = vld [vmem:[#allocation5 + $0x88] sm:$0xff]
    %v169 = vld [vmem:[#allocation5 + $0x90] sm:$0xff]
    %v170 = vld [vmem:[#allocation5 + $0x98] sm:$0xff]
    %v171 = vld [vmem:[#allocation5 + $0xa0] sm:$0xff]
    %v172 = vld [vmem:[#allocation5 + $0xa8] sm:$0xff]
    %v173 = vld [vmem:[#allocation5 + $0xb0] sm:$0xff]
    %v174 = vld [vmem:[#allocation5 + $0xb8] sm:$0xff]
    %v175 = vld [vmem:[#allocation5 + $0xc0] sm:$0xff]
    %v176 = vld [vmem:[#allocation5 + $0xc8] sm:$0xff]
    %v177 = vld [vmem:[#allocation5 + $0xd0] sm:$0xff]
    %v178 = vld [vmem:[#allocation5 + $0xd8] sm:$0xff]
    %v179 = vld [vmem:[#allocation5 + $0xe0] sm:$0xff]
    %v180 = vld [vmem:[#allocation5 + $0xe8] sm:$0xff]
    %v181 = vld [vmem:[#allocation5 + $0xf0] sm:$0xff]
    %v182 = vld [vmem:[#allocation5 + $0xf8] sm:$0xff]
    %v183 = vld [vmem:[#allocation5 + $0x100] sm:$0xff]
    %v184 = vld [vmem:[#allocation5 + $0x108] sm:$0xff]
    %v185 = vld [vmem:[#allocation5 + $0x110] sm:$0xff]
    %v186 = vld [vmem:[#allocation5 + $0x118] sm:$0xff]
    %v187 = vld [vmem:[#allocation5 + $0x120] sm:$0xff]
    %v188 = vld [vmem:[#allocation5 + $0x128] sm:$0xff]
    %v189 = vld [vmem:[#allocation5 + $0x130] sm:$0xff]
    %v190 = vld [vmem:[#allocation5 + $0x138] sm:$0xff]
    %v191 = vld [vmem:[#allocation5 + $0x140] sm:$0xff]
    %v192 = vld [vmem:[#allocation5 + $0x148] sm:$0xff]
    %v193 = vld [vmem:[#allocation5 + $0x150] sm:$0xff]
    %v194 = vld [vmem:[#allocation5 + $0x158] sm:$0xff]
    %v195 = vld [vmem:[#allocation5 + $0x160] sm:$0xff]
    %v196 = vld [vmem:[#allocation5 + $0x168] sm:$0xff]
    %v197 = vld [vmem:[#allocation5 + $0x170] sm:$0xff]
    %v198 = vld [vmem:[#allocation5 + $0x178] sm:$0xff]
    %v199 = vld [vmem:[#allocation5 + $0x180] sm:$0xff]
    %v200 = vld [vmem:[#allocation5 + $0x188] sm:$0xff]
    %v201 = vld [vmem:[#allocation5 + $0x190] sm:$0xff]
    %v202 = vld [vmem:[#allocation5 + $0x198] sm:$0xff]
    %v203 = vld [vmem:[#allocation5 + $0x1a0] sm:$0xff]
    %v204 = vld [vmem:[#allocation5 + $0x1a8] sm:$0xff]
    %v205 = vld [vmem:[#allocation5 + $0x1b0] sm:$0xff]
    %v206 = vld [vmem:[#allocation5 + $0x1b8] sm:$0xff]
    %v207 = vld [vmem:[#allocation5 + $0x1c0] sm:$0xff]
    %v208 = vld [vmem:[#allocation5 + $0x1c8] sm:$0xff]
    %v209 = vld [vmem:[#allocation5 + $0x1d0] sm:$0xff]
    %v210 = vld [vmem:[#allocation5 + $0x1d8] sm:$0xff]
    %v211 = vld [vmem:[#allocation5 + $0x1e0] sm:$0xff]
    %v212 = vld [vmem:[#allocation5 + $0x1e8] sm:$0xff]
    %v213 = vld [vmem:[#allocation5 + $0x1f0] sm:$0xff]
    %v214 = vld [vmem:[#allocation5 + $0x1f8] sm:$0xff]
    %v215 = vld [vmem:[#allocation5 + $0x200] sm:$0xff]
    %v216 = vld [vmem:[#allocation5 + $0x208] sm:$0xff]
    %v217 = vld [vmem:[#allocation5 + $0x210] sm:$0xff]
    %v218 = vld [vmem:[#allocation5 + $0x218] sm:$0xff]
    %v219 = vld [vmem:[#allocation5 + $0x220] sm:$0xff]
    %v220 = vld [vmem:[#allocation5 + $0x228] sm:$0xff]
    %v221 = vld [vmem:[#allocation5 + $0x230] sm:$0xff]
    %v222 = vld [vmem:[#allocation5 + $0x238] sm:$0xff]
    %v223 = vld [vmem:[#allocation5 + $0x240] sm:$0xff]
    %v224 = vld [vmem:[#allocation5 + $0x248] sm:$0xff]
    %v225 = vld [vmem:[#allocation5 + $0x250] sm:$0xff]
    %v226 = vld [vmem:[#allocation5 + $0x258] sm:$0xff]
    %v227 = vld [vmem:[#allocation5 + $0x260] sm:$0xff]
    %v228 = vld [vmem:[#allocation5 + $0x268] sm:$0xff]
    %v229 = vld [vmem:[#allocation5 + $0x270] sm:$0xff]
    %v230 = vld [vmem:[#allocation5 + $0x278] sm:$0xff]
    %v231 = vld [vmem:[#allocation5 + $0x280] sm:$0xff]
    %v232 = vld [vmem:[#allocation5 + $0x288] sm:$0xff]
    %v233 = vld [vmem:[#allocation5 + $0x290] sm:$0xff]
    %v234 = vld [vmem:[#allocation5 + $0x298] sm:$0xff]
    %v235 = vld [vmem:[#allocation5 + $0x2a0] sm:$0xff]
    %v236 = vld [vmem:[#allocation5 + $0x2a8] sm:$0xff]
    %v237 = vld [vmem:[#allocation5 + $0x2b0] sm:$0xff]
    %v238 = vld [vmem:[#allocation5 + $0x2b8] sm:$0xff]
    %v239 = vld [vmem:[#allocation5 + $0x2c0] sm:$0xff]
    %v240 = vld [vmem:[#allocation5 + $0x2c8] sm:$0xff]
    %v241 = vld [vmem:[#allocation5 + $0x2d0] sm:$0xff]
    %v242 = vld [vmem:[#allocation5 + $0x2d8] sm:$0xff]
    %v243 = vld [vmem:[#allocation5 + $0x2e0] sm:$0xff]
    %v244 = vld [vmem:[#allocation5 + $0x2e8] sm:$0xff]
    %v245 = vld [vmem:[#allocation5 + $0x2f0] sm:$0xff]
    %v246 = vld [vmem:[#allocation5 + $0x2f8] sm:$0xff]
    %v247 = vld [vmem:[#allocation5 + $0x300] sm:$0xff]
    %v248 = vld [vmem:[#allocation5 + $0x308] sm:$0xff]
    %v249 = vld [vmem:[#allocation5 + $0x310] sm:$0xff]
    %v250 = vld [vmem:[#allocation5 + $0x318] sm:$0xff]
    %v251 = vld [vmem:[#allocation5 + $0x320] sm:$0xff]
    %v252 = vld [vmem:[#allocation5 + $0x328] sm:$0xff]
    %v253 = vld [vmem:[#allocation5 + $0x330] sm:$0xff]
    %v254 = vld [vmem:[#allocation5 + $0x338] sm:$0xff]
    %v255 = vld [vmem:[#allocation5 + $0x340] sm:$0xff]
    %v256 = vld [vmem:[#allocation5 + $0x348] sm:$0xff]
    %v257 = vld [vmem:[#allocation5 + $0x350] sm:$0xff]
    %v258 = vld [vmem:[#allocation5 + $0x358] sm:$0xff]
    %v259 = vld [vmem:[#allocation5 + $0x360] sm:$0xff]
    %v260 = vld [vmem:[#allocation5 + $0x368] sm:$0xff]
    %v261 = vld [vmem:[#allocation5 + $0x370] sm:$0xff]
    %v262 = vld [vmem:[#allocation5 + $0x378] sm:$0xff]
    %v263 = vld [vmem:[#allocation5 + $0x380] sm:$0xff]
    %v264 = vld [vmem:[#allocation5 + $0x388] sm:$0xff]
    %v265 = vld [vmem:[#allocation5 + $0x390] sm:$0xff]
    %v266 = vld [vmem:[#allocation5 + $0x398] sm:$0xff]
    %v267 = vld [vmem:[#allocation5 + $0x3a0] sm:$0xff]
    %v268 = vld [vmem:[#allocation5 + $0x3a8] sm:$0xff]
    %v269 = vld [vmem:[#allocation5 + $0x3b0] sm:$0xff]
    %v270 = vld [vmem:[#allocation5 + $0x3b8] sm:$0xff]
    %v271 = vld [vmem:[#allocation5 + $0x3c0] sm:$0xff]
    %v272 = vld [vmem:[#allocation5 + $0x3c8] sm:$0xff]
    %v273 = vld [vmem:[#allocation5 + $0x3d0] sm:$0xff]
    %v274 = vld [vmem:[#allocation5 + $0x3d8] sm:$0xff]
    %v275 = vld [vmem:[#allocation5 + $0x3e0] sm:$0xff]
    %v276 = vld [vmem:[#allocation5 + $0x3e8] sm:$0xff]
    %v277 = vld [vmem:[#allocation5 + $0x3f0] sm:$0xff]
    %v278 = vld [vmem:[#allocation5 + $0x3f8] sm:$0xff]
    %v279 = vld [vmem:[#allocation5 + $0x400] sm:$0xff]
    %v280 = vld [vmem:[#allocation5 + $0x408] sm:$0xff]
    %v281 = vld [vmem:[#allocation5 + $0x410] sm:$0xff]
    %v282 = vld [vmem:[#allocation5 + $0x418] sm:$0xff]
    %v283 = vld [vmem:[#allocation5 + $0x420] sm:$0xff]
    %v284 = vld [vmem:[#allocation5 + $0x428] sm:$0xff]
    %v285 = vld [vmem:[#allocation5 + $0x430] sm:$0xff]
    %v286 = vld [vmem:[#allocation5 + $0x438] sm:$0xff]
    %v287 = vld [vmem:[#allocation5 + $0x440] sm:$0xff]
    %v288 = vld [vmem:[#allocation5 + $0x448] sm:$0xff]
    %v289 = vld [vmem:[#allocation5 + $0x450] sm:$0xff]
    %v290 = vld [vmem:[#allocation5 + $0x458] sm:$0xff]
    %v291 = vld [vmem:[#allocation5 + $0x460] sm:$0xff]
    %v292 = vld [vmem:[#allocation5 + $0x468] sm:$0xff]
    %v293 = vld [vmem:[#allocation5 + $0x470] sm:$0xff]
    %v294 = vld [vmem:[#allocation5 + $0x478] sm:$0xff]
    %v295 = vld [vmem:[#allocation5 + $0x480] sm:$0xff]
    %v296 = vld [vmem:[#allocation5 + $0x488] sm:$0xff]
    %v297 = vld [vmem:[#allocation5 + $0x490] sm:$0xff]
    %v298 = vld [vmem:[#allocation5 + $0x498] sm:$0xff]
    %v299 = vld [vmem:[#allocation5 + $0x4a0] sm:$0xff]
    %v300 = vld [vmem:[#allocation5 + $0x4a8] sm:$0xff]
    %v301 = vld [vmem:[#allocation5 + $0x4b0] sm:$0xff]
    %v302 = vld [vmem:[#allocation5 + $0x4b8] sm:$0xff]
    %v303 = vld [vmem:[#allocation5 + $0x4c0] sm:$0xff]
    %v304 = vld [vmem:[#allocation5 + $0x4c8] sm:$0xff]
    %v305 = vld [vmem:[#allocation5 + $0x4d0] sm:$0xff]
    %v306 = vld [vmem:[#allocation5 + $0x4d8] sm:$0xff]
    %v307 = vld [vmem:[#allocation5 + $0x4e0] sm:$0xff]
    %v308 = vld [vmem:[#allocation5 + $0x4e8] sm:$0xff]
    %v309 = vld [vmem:[#allocation5 + $0x4f0] sm:$0xff]
    %v310 = vld [vmem:[#allocation5 + $0x4f8] sm:$0xff]
    %v311 = vld [vmem:[#allocation5 + $0x500] sm:$0xff]
    %v312 = vld [vmem:[#allocation5 + $0x508] sm:$0xff]
    %v313 = vld [vmem:[#allocation5 + $0x510] sm:$0xff]
    %v314 = vld [vmem:[#allocation5 + $0x518] sm:$0xff]
    %v315 = vld [vmem:[#allocation5 + $0x520] sm:$0xff]
    %v316 = vld [vmem:[#allocation5 + $0x528] sm:$0xff]
    %v317 = vld [vmem:[#allocation5 + $0x530] sm:$0xff]
    %v318 = vld [vmem:[#allocation5 + $0x538] sm:$0xff]
    %v319 = vld [vmem:[#allocation5 + $0x540] sm:$0xff]
    %v320 = vld [vmem:[#allocation5 + $0x548] sm:$0xff]
    %v321 = vld [vmem:[#allocation5 + $0x550] sm:$0xff]
    %v322 = vld [vmem:[#allocation5 + $0x558] sm:$0xff]
    %v323 = vld [vmem:[#allocation5 + $0x560] sm:$0xff]
    %v324 = vld [vmem:[#allocation5 + $0x568] sm:$0xff]
    %v325 = vld [vmem:[#allocation5 + $0x570] sm:$0xff]
    %v326 = vld [vmem:[#allocation5 + $0x578] sm:$0xff]
    %v327 = vld [vmem:[#allocation5 + $0x580] sm:$0xff]
    %v328 = vld [vmem:[#allocation5 + $0x588] sm:$0xff]
    %v329 = vld [vmem:[#allocation5 + $0x590] sm:$0xff]
    %v330 = vld [vmem:[#allocation5 + $0x598] sm:$0xff]
    %v331 = vld [vmem:[#allocation5 + $0x5a0] sm:$0xff]
    %v332 = vld [vmem:[#allocation5 + $0x5a8] sm:$0xff]
    %v333 = vld [vmem:[#allocation5 + $0x5b0] sm:$0xff]
    %v334 = vld [vmem:[#allocation5 + $0x5b8] sm:$0xff]
    %v335 = vld [vmem:[#allocation5 + $0x5c0] sm:$0xff]
    %v336 = vld [vmem:[#allocation5 + $0x5c8] sm:$0xff]
    %v337 = vld [vmem:[#allocation5 + $0x5d0] sm:$0xff]
    %v338 = vld [vmem:[#allocation5 + $0x5d8] sm:$0xff]
    %v339 = vld [vmem:[#allocation5 + $0x5e0] sm:$0xff]
    %v340 = vld [vmem:[#allocation5 + $0x5e8] sm:$0xff]
    %v341 = vld [vmem:[#allocation5 + $0x5f0] sm:$0xff]
    %v342 = vld [vmem:[#allocation5 + $0x5f8] sm:$0xff]
    %v343 = vld [vmem:[#allocation5 + $0x600] sm:$0xff]
    %v344 = vld [vmem:[#allocation5 + $0x608] sm:$0xff]
    %v345 = vld [vmem:[#allocation5 + $0x610] sm:$0xff]
    %v346 = vld [vmem:[#allocation5 + $0x618] sm:$0xff]
    %v347 = vld [vmem:[#allocation5 + $0x620] sm:$0xff]
    %v348 = vld [vmem:[#allocation5 + $0x628] sm:$0xff]
    %v349 = vld [vmem:[#allocation5 + $0x630] sm:$0xff]
    %v350 = vld [vmem:[#allocation5 + $0x638] sm:$0xff]
    %v351 = vld [vmem:[#allocation5 + $0x640] sm:$0xff]
    %v352 = vld [vmem:[#allocation5 + $0x648] sm:$0xff]
    %v353 = vld [vmem:[#allocation5 + $0x650] sm:$0xff]
    %v354 = vld [vmem:[#allocation5 + $0x658] sm:$0xff]
    %v355 = vld [vmem:[#allocation5 + $0x660] sm:$0xff]
    %v356 = vld [vmem:[#allocation5 + $0x668] sm:$0xff]
    %v357 = vld [vmem:[#allocation5 + $0x670] sm:$0xff]
    %v358 = vld [vmem:[#allocation5 + $0x678] sm:$0xff]
    %v359 = vld [vmem:[#allocation5 + $0x680] sm:$0xff]
    %v360 = vld [vmem:[#allocation5 + $0x688] sm:$0xff]
    %v361 = vld [vmem:[#allocation5 + $0x690] sm:$0xff]
    %v362 = vld [vmem:[#allocation5 + $0x698] sm:$0xff]
    %v363 = vld [vmem:[#allocation5 + $0x6a0] sm:$0xff]
    %v364 = vld [vmem:[#allocation5 + $0x6a8] sm:$0xff]
    %v365 = vld [vmem:[#allocation5 + $0x6b0] sm:$0xff]
    %v366 = vld [vmem:[#allocation5 + $0x6b8] sm:$0xff]
    %v367 = vld [vmem:[#allocation5 + $0x6c0] sm:$0xff]
    %v368 = vld [vmem:[#allocation5 + $0x6c8] sm:$0xff]
    %v369 = vld [vmem:[#allocation5 + $0x6d0] sm:$0xff]
    %v370 = vld [vmem:[#allocation5 + $0x6d8] sm:$0xff]
    %v371 = vld [vmem:[#allocation5 + $0x6e0] sm:$0xff]
    %v372 = vld [vmem:[#allocation5 + $0x6e8] sm:$0xff]
    %v373 = vld [vmem:[#allocation5 + $0x6f0] sm:$0xff]
    %v374 = vld [vmem:[#allocation5 + $0x6f8] sm:$0xff]
    %v375 = vld [vmem:[#allocation5 + $0x700] sm:$0xff]
    %v376 = vld [vmem:[#allocation5 + $0x708] sm:$0xff]
    %v377 = vld [vmem:[#allocation5 + $0x710] sm:$0xff]
    %v378 = vld [vmem:[#allocation5 + $0x718] sm:$0xff]
    %v379 = vld [vmem:[#allocation5 + $0x720] sm:$0xff]
    %v380 = vld [vmem:[#allocation5 + $0x728] sm:$0xff]
    %v381 = vld [vmem:[#allocation5 + $0x730] sm:$0xff]
    %v382 = vld [vmem:[#allocation5 + $0x738] sm:$0xff]
    %v383 = vld [vmem:[#allocation5 + $0x740] sm:$0xff]
    %v384 = vld [vmem:[#allocation5 + $0x748] sm:$0xff]
    %v385 = vld [vmem:[#allocation5 + $0x750] sm:$0xff]
    %v386 = vld [vmem:[#allocation5 + $0x758] sm:$0xff]
    %v387 = vld [vmem:[#allocation5 + $0x760] sm:$0xff]
    %v388 = vld [vmem:[#allocation5 + $0x768] sm:$0xff]
    %v389 = vld [vmem:[#allocation5 + $0x770] sm:$0xff]
    %v390 = vld [vmem:[#allocation5 + $0x778] sm:$0xff]
    %v391 = vld [vmem:[#allocation5 + $0x780] sm:$0xff]
    %v392 = vld [vmem:[#allocation5 + $0x788] sm:$0xff]
    %v393 = vld [vmem:[#allocation5 + $0x790] sm:$0xff]
    %v394 = vld [vmem:[#allocation5 + $0x798] sm:$0xff]
    %v395 = vld [vmem:[#allocation5 + $0x7a0] sm:$0xff]
    %v396 = vld [vmem:[#allocation5 + $0x7a8] sm:$0xff]
    %v397 = vld [vmem:[#allocation5 + $0x7b0] sm:$0xff]
    %v398 = vld [vmem:[#allocation5 + $0x7b8] sm:$0xff]
    %v399 = vld [vmem:[#allocation5 + $0x7c0] sm:$0xff]
    %v400 = vld [vmem:[#allocation5 + $0x7c8] sm:$0xff]
    %v401 = vld [vmem:[#allocation5 + $0x7d0] sm:$0xff]
    %v402 = vld [vmem:[#allocation5 + $0x7d8] sm:$0xff]
    %v403 = vld [vmem:[#allocation5 + $0x7e0] sm:$0xff]
    %v404 = vld [vmem:[#allocation5 + $0x7e8] sm:$0xff]
    %v405 = vld [vmem:[#allocation5 + $0x7f0] sm:$0xff]
    %v406 = vld [vmem:[#allocation5 + $0x7f8] sm:$0xff]
    %v407 = vld [vmem:[#allocation5 + $0x800] sm:$0xff]
    %v408 = vld [vmem:[#allocation5 + $0x808] sm:$0xff]
    %v409 = vld [vmem:[#allocation5 + $0x810] sm:$0xff]
    %v410 = vld [vmem:[#allocation5 + $0x818] sm:$0xff]
    %v411 = vld [vmem:[#allocation5 + $0x820] sm:$0xff]
    %v412 = vld [vmem:[#allocation5 + $0x828] sm:$0xff]
    %v413 = vld [vmem:[#allocation5 + $0x830] sm:$0xff]
    %v414 = vld [vmem:[#allocation5 + $0x838] sm:$0xff]
    %v415 = vld [vmem:[#allocation5 + $0x840] sm:$0xff]
    %v416 = vld [vmem:[#allocation5 + $0x848] sm:$0xff]
    %v417 = vld [vmem:[#allocation5 + $0x850] sm:$0xff]
    %v418 = vld [vmem:[#allocation5 + $0x858] sm:$0xff]
    %v419 = vld [vmem:[#allocation5 + $0x860] sm:$0xff]
    %v420 = vld [vmem:[#allocation5 + $0x868] sm:$0xff]
    %v421 = vld [vmem:[#allocation5 + $0x870] sm:$0xff]
    %v422 = vld [vmem:[#allocation5 + $0x878] sm:$0xff]
    %v423 = vld [vmem:[#allocation5 + $0x880] sm:$0xff]
    %v424 = vld [vmem:[#allocation5 + $0x888] sm:$0xff]
    %v425 = vld [vmem:[#allocation5 + $0x890] sm:$0xff]
    %v426 = vld [vmem:[#allocation5 + $0x898] sm:$0xff]
    %v427 = vld [vmem:[#allocation5 + $0x8a0] sm:$0xff]
    %v428 = vld [vmem:[#allocation5 + $0x8a8] sm:$0xff]
    %v429 = vld [vmem:[#allocation5 + $0x8b0] sm:$0xff]
    %v430 = vld [vmem:[#allocation5 + $0x8b8] sm:$0xff]
    %v431 = vld [vmem:[#allocation5 + $0x8c0] sm:$0xff]
    %v432 = vld [vmem:[#allocation5 + $0x8c8] sm:$0xff]
    %v433 = vld [vmem:[#allocation5 + $0x8d0] sm:$0xff]
    %v434 = vld [vmem:[#allocation5 + $0x8d8] sm:$0xff]
    %v435 = vld [vmem:[#allocation5 + $0x8e0] sm:$0xff]
    %v436 = vld [vmem:[#allocation5 + $0x8e8] sm:$0xff]
    %v437 = vld [vmem:[#allocation5 + $0x8f0] sm:$0xff]
    %v438 = vld [vmem:[#allocation5 + $0x8f8] sm:$0xff]
    %v439 = vld [vmem:[#allocation5 + $0x900] sm:$0xff]
    %v440 = vld [vmem:[#allocation5 + $0x908] sm:$0xff]
    %v441 = vld [vmem:[#allocation5 + $0x910] sm:$0xff]
    %v442 = vld [vmem:[#allocation5 + $0x918] sm:$0xff]
    %v443 = vld [vmem:[#allocation5 + $0x920] sm:$0xff]
    %v444 = vld [vmem:[#allocation5 + $0x928] sm:$0xff]
    %v445 = vld [vmem:[#allocation5 + $0x930] sm:$0xff]
    %v446 = vld [vmem:[#allocation5 + $0x938] sm:$0xff]
    %v447 = vld [vmem:[#allocation5 + $0x940] sm:$0xff]
    %v448 = vld [vmem:[#allocation5 + $0x948] sm:$0xff]
    %v449 = vld [vmem:[#allocation5 + $0x950] sm:$0xff]
    %v450 = vld [vmem:[#allocation5 + $0x958] sm:$0xff]
    %v451 = vld [vmem:[#allocation5 + $0x960] sm:$0xff]
    %v452 = vld [vmem:[#allocation5 + $0x968] sm:$0xff]
    %v453 = vld [vmem:[#allocation5 + $0x970] sm:$0xff]
    %v454 = vld [vmem:[#allocation5 + $0x978] sm:$0xff]
    %v455 = vld [vmem:[#allocation5 + $0x980] sm:$0xff]
    %v456 = vld [vmem:[#allocation5 + $0x988] sm:$0xff]
    %v457 = vld [vmem:[#allocation5 + $0x990] sm:$0xff]
    %v458 = vld [vmem:[#allocation5 + $0x998] sm:$0xff]
    %v459 = vld [vmem:[#allocation5 + $0x9a0] sm:$0xff]
    %v460 = vld [vmem:[#allocation5 + $0x9a8] sm:$0xff]
    %v461 = vld [vmem:[#allocation5 + $0x9b0] sm:$0xff]
    %v462 = vld [vmem:[#allocation5 + $0x9b8] sm:$0xff]
    %v463 = vld [vmem:[#allocation5 + $0x9c0] sm:$0xff]
    %v464 = vld [vmem:[#allocation5 + $0x9c8] sm:$0xff]
    %v465 = vld [vmem:[#allocation5 + $0x9d0] sm:$0xff]
    %v466 = vld [vmem:[#allocation5 + $0x9d8] sm:$0xff]
    %v467 = vld [vmem:[#allocation5 + $0x9e0] sm:$0xff]
    %v468 = vld [vmem:[#allocation5 + $0x9e8] sm:$0xff]
    %v469 = vld [vmem:[#allocation5 + $0x9f0] sm:$0xff]
    %v470 = vld [vmem:[#allocation5 + $0x9f8] sm:$0xff]
    %v471 = vld [vmem:[#allocation5 + $0xa00] sm:$0xff]
    %v472 = vld [vmem:[#allocation5 + $0xa08] sm:$0xff]
    %v473 = vld [vmem:[#allocation5 + $0xa10] sm:$0xff]
    %v474 = vld [vmem:[#allocation5 + $0xa18] sm:$0xff]
    %v475 = vld [vmem:[#allocation5 + $0xa20] sm:$0xff]
    %v476 = vld [vmem:[#allocation5 + $0xa28] sm:$0xff]
    %v477 = vld [vmem:[#allocation5 + $0xa30] sm:$0xff]
    %v478 = vld [vmem:[#allocation5 + $0xa38] sm:$0xff]
    %v479 = vld [vmem:[#allocation5 + $0xa40] sm:$0xff]
    %v480 = vld [vmem:[#allocation5 + $0xa48] sm:$0xff]
    %v481 = vld [vmem:[#allocation5 + $0xa50] sm:$0xff]
    %v482 = vld [vmem:[#allocation5 + $0xa58] sm:$0xff]
    %v483 = vld [vmem:[#allocation5 + $0xa60] sm:$0xff]
    %v484 = vld [vmem:[#allocation5 + $0xa68] sm:$0xff]
    %v485 = vld [vmem:[#allocation5 + $0xa70] sm:$0xff]
    %v486 = vld [vmem:[#allocation5 + $0xa78] sm:$0xff]
    %v487 = vld [vmem:[#allocation5 + $0xa80] sm:$0xff]
    %v488 = vld [vmem:[#allocation5 + $0xa88] sm:$0xff]
    %v489 = vld [vmem:[#allocation5 + $0xa90] sm:$0xff]
    %v490 = vld [vmem:[#allocation5 + $0xa98] sm:$0xff]
    %v491 = vld [vmem:[#allocation5 + $0xaa0] sm:$0xff]
    %v492 = vld [vmem:[#allocation5 + $0xaa8] sm:$0xff]
    %v493 = vld [vmem:[#allocation5 + $0xab0] sm:$0xff]
    %v494 = vld [vmem:[#allocation5 + $0xab8] sm:$0xff]
    %v495 = vld [vmem:[#allocation5 + $0xac0] sm:$0xff]
    %v496 = vld [vmem:[#allocation5 + $0xac8] sm:$0xff]
    %v497 = vld [vmem:[#allocation5 + $0xad0] sm:$0xff]
    %v498 = vld [vmem:[#allocation5 + $0xad8] sm:$0xff]
    %v499 = vld [vmem:[#allocation5 + $0xae0] sm:$0xff]
    %v500 = vld [vmem:[#allocation5 + $0xae8] sm:$0xff]
    %v501 = vld [vmem:[#allocation5 + $0xaf0] sm:$0xff]
    %v502 = vld [vmem:[#allocation5 + $0xaf8] sm:$0xff]
    %v503 = vld [vmem:[#allocation5 + $0xb00] sm:$0xff]
    %v504 = vld [vmem:[#allocation5 + $0xb08] sm:$0xff]
    %v505 = vld [vmem:[#allocation5 + $0xb10] sm:$0xff]
    %v506 = vld [vmem:[#allocation5 + $0xb18] sm:$0xff]
    %v507 = vld [vmem:[#allocation5 + $0xb20] sm:$0xff]
    %v508 = vld [vmem:[#allocation5 + $0xb28] sm:$0xff]
    %v509 = vld [vmem:[#allocation5 + $0xb30] sm:$0xff]
    %v510 = vld [vmem:[#allocation5 + $0xb38] sm:$0xff]
    %v511 = vld [vmem:[#allocation5 + $0xb40] sm:$0xff]
    %v512 = vld [vmem:[#allocation5 + $0xb48] sm:$0xff]
    %v513 = vld [vmem:[#allocation5 + $0xb50] sm:$0xff]
    %v514 = vld [vmem:[#allocation5 + $0xb58] sm:$0xff]
    %v515 = vld [vmem:[#allocation5 + $0xb60] sm:$0xff]
    %v516 = vld [vmem:[#allocation5 + $0xb68] sm:$0xff]
    %v517 = vld [vmem:[#allocation5 + $0xb70] sm:$0xff]
    %v518 = vld [vmem:[#allocation5 + $0xb78] sm:$0xff]
    %v519 = vld [vmem:[#allocation5 + $0xb80] sm:$0xff]
    %v520 = vld [vmem:[#allocation5 + $0xb88] sm:$0xff]
    %v521 = vld [vmem:[#allocation5 + $0xb90] sm:$0xff]
    %v522 = vld [vmem:[#allocation5 + $0xb98] sm:$0xff]
    %v523 = vld [vmem:[#allocation5 + $0xba0] sm:$0xff]
    %v524 = vld [vmem:[#allocation5 + $0xba8] sm:$0xff]
    %v525 = vld [vmem:[#allocation5 + $0xbb0] sm:$0xff]
    %v526 = vld [vmem:[#allocation5 + $0xbb8] sm:$0xff]
    %v527 = vld [vmem:[#allocation5 + $0xbc0] sm:$0xff]
    %v528 = vld [vmem:[#allocation5 + $0xbc8] sm:$0xff]
    %v529 = vld [vmem:[#allocation5 + $0xbd0] sm:$0xff]
    %v530 = vld [vmem:[#allocation5 + $0xbd8] sm:$0xff]
    %v531 = vld [vmem:[#allocation5 + $0xbe0] sm:$0xff]
    %v532 = vld [vmem:[#allocation5 + $0xbe8] sm:$0xff]
    %v533 = vld [vmem:[#allocation5 + $0xbf0] sm:$0xff]
    %v534 = vld [vmem:[#allocation5 + $0xbf8] sm:$0xff]
    %v535 = vld [vmem:[#allocation5 + $0xc00] sm:$0xff]
    %v536 = vld [vmem:[#allocation5 + $0xc08] sm:$0xff]
    %v537 = vld [vmem:[#allocation5 + $0xc10] sm:$0xff]
    %v538 = vld [vmem:[#allocation5 + $0xc18] sm:$0xff]
    %v539 = vld [vmem:[#allocation5 + $0xc20] sm:$0xff]
    %v540 = vld [vmem:[#allocation5 + $0xc28] sm:$0xff]
    %v541 = vld [vmem:[#allocation5 + $0xc30] sm:$0xff]
    %v542 = vld [vmem:[#allocation5 + $0xc38] sm:$0xff]
    %v543 = vld [vmem:[#allocation5 + $0xc40] sm:$0xff]
    %v544 = vld [vmem:[#allocation5 + $0xc48] sm:$0xff]
    %v545 = vld [vmem:[#allocation5 + $0xc50] sm:$0xff]
    %v546 = vld [vmem:[#allocation5 + $0xc58] sm:$0xff]
    %v547 = vld [vmem:[#allocation5 + $0xc60] sm:$0xff]
    %v548 = vld [vmem:[#allocation5 + $0xc68] sm:$0xff]
    %v549 = vld [vmem:[#allocation5 + $0xc70] sm:$0xff]
    %v550 = vld [vmem:[#allocation5 + $0xc78] sm:$0xff]
    %v551 = vld [vmem:[#allocation5 + $0xc80] sm:$0xff]
    %v552 = vld [vmem:[#allocation5 + $0xc88] sm:$0xff]
    %v553 = vld [vmem:[#allocation5 + $0xc90] sm:$0xff]
    %v554 = vld [vmem:[#allocation5 + $0xc98] sm:$0xff]
    %v555 = vld [vmem:[#allocation5 + $0xca0] sm:$0xff]
    %v556 = vld [vmem:[#allocation5 + $0xca8] sm:$0xff]
    %v557 = vld [vmem:[#allocation5 + $0xcb0] sm:$0xff]
    %v558 = vld [vmem:[#allocation5 + $0xcb8] sm:$0xff]
    %v559 = vld [vmem:[#allocation5 + $0xcc0] sm:$0xff]
    %v560 = vld [vmem:[#allocation5 + $0xcc8] sm:$0xff]
    %v561 = vld [vmem:[#allocation5 + $0xcd0] sm:$0xff]
    %v562 = vld [vmem:[#allocation5 + $0xcd8] sm:$0xff]
    %v563 = vld [vmem:[#allocation5 + $0xce0] sm:$0xff]
    %v564 = vld [vmem:[#allocation5 + $0xce8] sm:$0xff]
    %v565 = vld [vmem:[#allocation5 + $0xcf0] sm:$0xff]
    %v566 = vld [vmem:[#allocation5 + $0xcf8] sm:$0xff]
    %v567 = vld [vmem:[#allocation5 + $0xd00] sm:$0xff]
    %v568 = vld [vmem:[#allocation5 + $0xd08] sm:$0xff]
    %v569 = vld [vmem:[#allocation5 + $0xd10] sm:$0xff]
    %v570 = vld [vmem:[#allocation5 + $0xd18] sm:$0xff]
    %v571 = vld [vmem:[#allocation5 + $0xd20] sm:$0xff]
    %v572 = vld [vmem:[#allocation5 + $0xd28] sm:$0xff]
    %v573 = vld [vmem:[#allocation5 + $0xd30] sm:$0xff]
    %v574 = vld [vmem:[#allocation5 + $0xd38] sm:$0xff]
    %v575 = vld [vmem:[#allocation5 + $0xd40] sm:$0xff]
    %v576 = vld [vmem:[#allocation5 + $0xd48] sm:$0xff]
    %v577 = vld [vmem:[#allocation5 + $0xd50] sm:$0xff]
    %v578 = vld [vmem:[#allocation5 + $0xd58] sm:$0xff]
    %v579 = vld [vmem:[#allocation5 + $0xd60] sm:$0xff]
    %v580 = vld [vmem:[#allocation5 + $0xd68] sm:$0xff]
    %v581 = vld [vmem:[#allocation5 + $0xd70] sm:$0xff]
    %v582 = vld [vmem:[#allocation5 + $0xd78] sm:$0xff]
    %v583 = vld [vmem:[#allocation5 + $0xd80] sm:$0xff]
    %v584 = vld [vmem:[#allocation5 + $0xd88] sm:$0xff]
    %v585 = vld [vmem:[#allocation5 + $0xd90] sm:$0xff]
    %v586 = vld [vmem:[#allocation5 + $0xd98] sm:$0xff]
    %v587 = vld [vmem:[#allocation5 + $0xda0] sm:$0xff]
    %v588 = vld [vmem:[#allocation5 + $0xda8] sm:$0xff]
    %v589 = vld [vmem:[#allocation5 + $0xdb0] sm:$0xff]
    %v590 = vld [vmem:[#allocation5 + $0xdb8] sm:$0xff]
    %v591 = vld [vmem:[#allocation5 + $0xdc0] sm:$0xff]
    %v592 = vld [vmem:[#allocation5 + $0xdc8] sm:$0xff]
    %v593 = vld [vmem:[#allocation5 + $0xdd0] sm:$0xff]
    %v594 = vld [vmem:[#allocation5 + $0xdd8] sm:$0xff]
    %v595 = vld [vmem:[#allocation5 + $0xde0] sm:$0xff]
    %v596 = vld [vmem:[#allocation5 + $0xde8] sm:$0xff]
    %v597 = vld [vmem:[#allocation5 + $0xdf0] sm:$0xff]
    %v598 = vld [vmem:[#allocation5 + $0xdf8] sm:$0xff]
    %v599 = vld [vmem:[#allocation5 + $0xe00] sm:$0xff]
    %v600 = vld [vmem:[#allocation5 + $0xe08] sm:$0xff]
    %v601 = vld [vmem:[#allocation5 + $0xe10] sm:$0xff]
    %v602 = vld [vmem:[#allocation5 + $0xe18] sm:$0xff]
    %v603 = vld [vmem:[#allocation5 + $0xe20] sm:$0xff]
    %v604 = vld [vmem:[#allocation5 + $0xe28] sm:$0xff]
    %v605 = vld [vmem:[#allocation5 + $0xe30] sm:$0xff]
    %v606 = vld [vmem:[#allocation5 + $0xe38] sm:$0xff]
    %v607 = vld [vmem:[#allocation5 + $0xe40] sm:$0xff]
    %v608 = vld [vmem:[#allocation5 + $0xe48] sm:$0xff]
    %v609 = vld [vmem:[#allocation5 + $0xe50] sm:$0xff]
    %v610 = vld [vmem:[#allocation5 + $0xe58] sm:$0xff]
    %v611 = vld [vmem:[#allocation5 + $0xe60] sm:$0xff]
    %v612 = vld [vmem:[#allocation5 + $0xe68] sm:$0xff]
    %v613 = vld [vmem:[#allocation5 + $0xe70] sm:$0xff]
    %v614 = vld [vmem:[#allocation5 + $0xe78] sm:$0xff]
    %v615 = vld [vmem:[#allocation5 + $0xe80] sm:$0xff]
    %v616 = vld [vmem:[#allocation5 + $0xe88] sm:$0xff]
    %v617 = vld [vmem:[#allocation5 + $0xe90] sm:$0xff]
    %v618 = vld [vmem:[#allocation5 + $0xe98] sm:$0xff]
    %v619 = vld [vmem:[#allocation5 + $0xea0] sm:$0xff]
    %v620 = vld [vmem:[#allocation5 + $0xea8] sm:$0xff]
    %v621 = vld [vmem:[#allocation5 + $0xeb0] sm:$0xff]
    %v622 = vld [vmem:[#allocation5 + $0xeb8] sm:$0xff]
    %v623 = vld [vmem:[#allocation5 + $0xec0] sm:$0xff]
    %v624 = vld [vmem:[#allocation5 + $0xec8] sm:$0xff]
    %v625 = vld [vmem:[#allocation5 + $0xed0] sm:$0xff]
    %v626 = vld [vmem:[#allocation5 + $0xed8] sm:$0xff]
    %v627 = vld [vmem:[#allocation5 + $0xee0] sm:$0xff]
    %v628 = vld [vmem:[#allocation5 + $0xee8] sm:$0xff]
    %v629 = vld [vmem:[#allocation5 + $0xef0] sm:$0xff]
    %v630 = vld [vmem:[#allocation5 + $0xef8] sm:$0xff]
    %v631 = vld [vmem:[#allocation5 + $0xf00] sm:$0xff]
    %v632 = vld [vmem:[#allocation5 + $0xf08] sm:$0xff]
    %v633 = vld [vmem:[#allocation5 + $0xf10] sm:$0xff]
    %v634 = vld [vmem:[#allocation5 + $0xf18] sm:$0xff]
    %v635 = vld [vmem:[#allocation5 + $0xf20] sm:$0xff]
    %v636 = vld [vmem:[#allocation5 + $0xf28] sm:$0xff]
    %v637 = vld [vmem:[#allocation5 + $0xf30] sm:$0xff]
    %v638 = vld [vmem:[#allocation5 + $0xf38] sm:$0xff]
    %v639 = vld [vmem:[#allocation5 + $0xf40] sm:$0xff]
    %v640 = vld [vmem:[#allocation5 + $0xf48] sm:$0xff]
    %v641 = vld [vmem:[#allocation5 + $0xf50] sm:$0xff]
    %v642 = vld [vmem:[#allocation5 + $0xf58] sm:$0xff]
    %v643 = vld [vmem:[#allocation5 + $0xf60] sm:$0xff]
    %v644 = vld [vmem:[#allocation5 + $0xf68] sm:$0xff]
    %v645 = vld [vmem:[#allocation5 + $0xf70] sm:$0xff]
    %v646 = vld [vmem:[#allocation5 + $0xf78] sm:$0xff]
    %v647 = vld [vmem:[#allocation5 + $0xf80] sm:$0xff]
    %v648 = vld [vmem:[#allocation5 + $0xf88] sm:$0xff]
    %v649 = vld [vmem:[#allocation5 + $0xf90] sm:$0xff]
    %v650 = vld [vmem:[#allocation5 + $0xf98] sm:$0xff]
    %v651 = vld [vmem:[#allocation5 + $0xfa0] sm:$0xff]
    %v652 = vld [vmem:[#allocation5 + $0xfa8] sm:$0xff]
    %v653 = vld [vmem:[#allocation5 + $0xfb0] sm:$0xff]
    %v654 = vld [vmem:[#allocation5 + $0xfb8] sm:$0xff]
    %v655 = vld [vmem:[#allocation5 + $0xfc0] sm:$0xff]
    %v656 = vld [vmem:[#allocation5 + $0xfc8] sm:$0xff]
    %v657 = vld [vmem:[#allocation5 + $0xfd0] sm:$0xff]
    %v658 = vld [vmem:[#allocation5 + $0xfd8] sm:$0xff]
    %v659 = vld [vmem:[#allocation5 + $0xfe0] sm:$0xff]
    %v660 = vld [vmem:[#allocation5 + $0xfe8] sm:$0xff]
    %v661 = vld [vmem:[#allocation5 + $0xff0] sm:$0xff]
    %v662 = vld [vmem:[#allocation5 + $0xff8] sm:$0xff]
    %v663 = vld [vmem:[#allocation5 + $0x1000] sm:$0xff]
    %v664 = vld [vmem:[#allocation5 + $0x1008] sm:$0xff]
    %v665 = vld [vmem:[#allocation5 + $0x1010] sm:$0xff]
    %v666 = vld [vmem:[#allocation5 + $0x1018] sm:$0xff]
    %v667 = vld [vmem:[#allocation5 + $0x1020] sm:$0xff]
    %v668 = vld [vmem:[#allocation5 + $0x1028] sm:$0xff]
    %v669 = vld [vmem:[#allocation5 + $0x1030] sm:$0xff]
    %v670 = vld [vmem:[#allocation5 + $0x1038] sm:$0xff]
    %v671 = vld [vmem:[#allocation5 + $0x1040] sm:$0xff]
    %v672 = vld [vmem:[#allocation5 + $0x1048] sm:$0xff]
    %v673 = vld [vmem:[#allocation5 + $0x1050] sm:$0xff]
    %v674 = vld [vmem:[#allocation5 + $0x1058] sm:$0xff]
    %v675 = vld [vmem:[#allocation5 + $0x1060] sm:$0xff]
    %v676 = vld [vmem:[#allocation5 + $0x1068] sm:$0xff]
    %v677 = vld [vmem:[#allocation5 + $0x1070] sm:$0xff]
    %v678 = vld [vmem:[#allocation5 + $0x1078] sm:$0xff]
    %v679 = vld [vmem:[#allocation5 + $0x1080] sm:$0xff]
    %v680 = vld [vmem:[#allocation5 + $0x1088] sm:$0xff]
    %v681 = vld [vmem:[#allocation5 + $0x1090] sm:$0xff]
    %v682 = vld [vmem:[#allocation5 + $0x1098] sm:$0xff]
    %v683 = vld [vmem:[#allocation5 + $0x10a0] sm:$0xff]
    %v684 = vld [vmem:[#allocation5 + $0x10a8] sm:$0xff]
    %v685 = vld [vmem:[#allocation5 + $0x10b0] sm:$0xff]
    %v686 = vld [vmem:[#allocation5 + $0x10b8] sm:$0xff]
    %v687 = vld [vmem:[#allocation5 + $0x10c0] sm:$0xff]
    %v688 = vld [vmem:[#allocation5 + $0x10c8] sm:$0xff]
    %v689 = vld [vmem:[#allocation5 + $0x10d0] sm:$0xff]
    %v690 = vld [vmem:[#allocation5 + $0x10d8] sm:$0xff]
    %v691 = vld [vmem:[#allocation5 + $0x10e0] sm:$0xff]
    %v692 = vld [vmem:[#allocation5 + $0x10e8] sm:$0xff]
    %v693 = vld [vmem:[#allocation5 + $0x10f0] sm:$0xff]
    %v694 = vld [vmem:[#allocation5 + $0x10f8] sm:$0xff]
    %v695 = vld [vmem:[#allocation5 + $0x1100] sm:$0xff]
    %v696 = vld [vmem:[#allocation5 + $0x1108] sm:$0xff]
    %v697 = vld [vmem:[#allocation5 + $0x1110] sm:$0xff]
    %v698 = vld [vmem:[#allocation5 + $0x1118] sm:$0xff]
    %v699 = vld [vmem:[#allocation5 + $0x1120] sm:$0xff]
    %v700 = vld [vmem:[#allocation5 + $0x1128] sm:$0xff]
    %v701 = vld [vmem:[#allocation5 + $0x1130] sm:$0xff]
    %v702 = vld [vmem:[#allocation5 + $0x1138] sm:$0xff]
    %v703 = vld [vmem:[#allocation5 + $0x1140] sm:$0xff]
    %v704 = vld [vmem:[#allocation5 + $0x1148] sm:$0xff]
    %v705 = vld [vmem:[#allocation5 + $0x1150] sm:$0xff]
    %v706 = vld [vmem:[#allocation5 + $0x1158] sm:$0xff]
    %v707 = vld [vmem:[#allocation5 + $0x1160] sm:$0xff]
    %v708 = vld [vmem:[#allocation5 + $0x1168] sm:$0xff]
    %v709 = vld [vmem:[#allocation5 + $0x1170] sm:$0xff]
    %v710 = vld [vmem:[#allocation5 + $0x1178] sm:$0xff]
    %v711 = vld [vmem:[#allocation5 + $0x1180] sm:$0xff]
    %v712 = vld [vmem:[#allocation5 + $0x1188] sm:$0xff]
    %v713 = vld [vmem:[#allocation5 + $0x1190] sm:$0xff]
    %v714 = vld [vmem:[#allocation5 + $0x1198] sm:$0xff]
    %v715 = vld [vmem:[#allocation5 + $0x11a0] sm:$0xff]
    %v716 = vld [vmem:[#allocation5 + $0x11a8] sm:$0xff]
    %v717 = vld [vmem:[#allocation5 + $0x11b0] sm:$0xff]
    %v718 = vld [vmem:[#allocation5 + $0x11b8] sm:$0xff]
    %v719 = vld [vmem:[#allocation5 + $0x11c0] sm:$0xff]
    %v720 = vld [vmem:[#allocation5 + $0x11c8] sm:$0xff]
    %v721 = vld [vmem:[#allocation5 + $0x11d0] sm:$0xff]
    %v722 = vld [vmem:[#allocation5 + $0x11d8] sm:$0xff]
    %v723 = vld [vmem:[#allocation5 + $0x11e0] sm:$0xff]
    %v724 = vld [vmem:[#allocation5 + $0x11e8] sm:$0xff]
    %v725 = vld [vmem:[#allocation5 + $0x11f0] sm:$0xff]
    %v726 = vld [vmem:[#allocation5 + $0x11f8] sm:$0xff]
    %v727 = vld [vmem:[#allocation5 + $0x1200] sm:$0xff]
    %v728 = vld [vmem:[#allocation5 + $0x1208] sm:$0xff]
    %v729 = vld [vmem:[#allocation5 + $0x1210] sm:$0xff]
    %v730 = vld [vmem:[#allocation5 + $0x1218] sm:$0xff]
    %v731 = vld [vmem:[#allocation5 + $0x1220] sm:$0xff]
    %v732 = vld [vmem:[#allocation5 + $0x1228] sm:$0xff]
    %v733 = vld [vmem:[#allocation5 + $0x1230] sm:$0xff]
    %v734 = vld [vmem:[#allocation5 + $0x1238] sm:$0xff]
    %v735 = vld [vmem:[#allocation5 + $0x1240] sm:$0xff]
    %v736 = vld [vmem:[#allocation5 + $0x1248] sm:$0xff]
    %v737 = vld [vmem:[#allocation5 + $0x1250] sm:$0xff]
    %v738 = vld [vmem:[#allocation5 + $0x1258] sm:$0xff]
    %v739 = vld [vmem:[#allocation5 + $0x1260] sm:$0xff]
    %v740 = vld [vmem:[#allocation5 + $0x1268] sm:$0xff]
    %v741 = vld [vmem:[#allocation5 + $0x1270] sm:$0xff]
    %v742 = vld [vmem:[#allocation5 + $0x1278] sm:$0xff]
    %v743 = vld [vmem:[#allocation5 + $0x1280] sm:$0xff]
    %v744 = vld [vmem:[#allocation5 + $0x1288] sm:$0xff]
    %v745 = vld [vmem:[#allocation5 + $0x1290] sm:$0xff]
    %v746 = vld [vmem:[#allocation5 + $0x1298] sm:$0xff]
    %v747 = vld [vmem:[#allocation5 + $0x12a0] sm:$0xff]
    %v748 = vld [vmem:[#allocation5 + $0x12a8] sm:$0xff]
    %v749 = vld [vmem:[#allocation5 + $0x12b0] sm:$0xff]
    %v750 = vld [vmem:[#allocation5 + $0x12b8] sm:$0xff]
    %v751 = vld [vmem:[#allocation5 + $0x12c0] sm:$0xff]
    %v752 = vld [vmem:[#allocation5 + $0x12c8] sm:$0xff]
    %v753 = vld [vmem:[#allocation5 + $0x12d0] sm:$0xff]
    %v754 = vld [vmem:[#allocation5 + $0x12d8] sm:$0xff]
    %v755 = vld [vmem:[#allocation5 + $0x12e0] sm:$0xff]
    %v756 = vld [vmem:[#allocation5 + $0x12e8] sm:$0xff]
    %v757 = vld [vmem:[#allocation5 + $0x12f0] sm:$0xff]
    %v758 = vld [vmem:[#allocation5 + $0x12f8] sm:$0xff]
    %v759 = vld [vmem:[#allocation5 + $0x1300] sm:$0xff]
    %v760 = vld [vmem:[#allocation5 + $0x1308] sm:$0xff]
    %v761 = vld [vmem:[#allocation5 + $0x1310] sm:$0xff]
    %v762 = vld [vmem:[#allocation5 + $0x1318] sm:$0xff]
    %v763 = vld [vmem:[#allocation5 + $0x1320] sm:$0xff]
    %v764 = vld [vmem:[#allocation5 + $0x1328] sm:$0xff]
    %v765 = vld [vmem:[#allocation5 + $0x1330] sm:$0xff]
    %v766 = vld [vmem:[#allocation5 + $0x1338] sm:$0xff]
    %v767 = vld [vmem:[#allocation5 + $0x1340] sm:$0xff]
    %v768 = vld [vmem:[#allocation5 + $0x1348] sm:$0xff]
    %v769 = vld [vmem:[#allocation5 + $0x1350] sm:$0xff]
    %v770 = vld [vmem:[#allocation5 + $0x1358] sm:$0xff]
    %v771 = vld [vmem:[#allocation5 + $0x1360] sm:$0xff]
    %v772 = vld [vmem:[#allocation5 + $0x1368] sm:$0xff]
    %v773 = vld [vmem:[#allocation5 + $0x1370] sm:$0xff]
    %v774 = vld [vmem:[#allocation5 + $0x1378] sm:$0xff]
    %v775 = vld [vmem:[#allocation5 + $0x1380] sm:$0xff]
    %v776 = vld [vmem:[#allocation5 + $0x1388] sm:$0xff]
    %v777 = vld [vmem:[#allocation5 + $0x1390] sm:$0xff]
    %v778 = vld [vmem:[#allocation5 + $0x1398] sm:$0xff]
    %v779 = vld [vmem:[#allocation5 + $0x13a0] sm:$0xff]
    %v780 = vld [vmem:[#allocation5 + $0x13a8] sm:$0xff]
    %v781 = vld [vmem:[#allocation5 + $0x13b0] sm:$0xff]
    %v782 = vld [vmem:[#allocation5 + $0x13b8] sm:$0xff]
    %v783 = vld [vmem:[#allocation5 + $0x13c0] sm:$0xff]
    %v784 = vld [vmem:[#allocation5 + $0x13c8] sm:$0xff]
    %v785 = vld [vmem:[#allocation5 + $0x13d0] sm:$0xff]
    %v786 = vld [vmem:[#allocation5 + $0x13d8] sm:$0xff]
    %v787 = vld [vmem:[#allocation5 + $0x13e0] sm:$0xff]
    %v788 = vld [vmem:[#allocation5 + $0x13e8] sm:$0xff]
    %v789 = vld [vmem:[#allocation5 + $0x13f0] sm:$0xff]
    %v790 = vld [vmem:[#allocation5 + $0x13f8] sm:$0xff]
    %v791 = vld [vmem:[#allocation5 + $0x1400] sm:$0xff]
    %v792 = vld [vmem:[#allocation5 + $0x1408] sm:$0xff]
    %v793 = vld [vmem:[#allocation5 + $0x1410] sm:$0xff]
    %v794 = vld [vmem:[#allocation5 + $0x1418] sm:$0xff]
    %v795 = vld [vmem:[#allocation5 + $0x1420] sm:$0xff]
    %v796 = vld [vmem:[#allocation5 + $0x1428] sm:$0xff]
    %v797 = vld [vmem:[#allocation5 + $0x1430] sm:$0xff]
    %v798 = vld [vmem:[#allocation5 + $0x1438] sm:$0xff]
    %v799 = vld [vmem:[#allocation5 + $0x1440] sm:$0xff]
    %v800 = vld [vmem:[#allocation5 + $0x1448] sm:$0xff]
    %v801 = vld [vmem:[#allocation5 + $0x1450] sm:$0xff]
    %v802 = vld [vmem:[#allocation5 + $0x1458] sm:$0xff]
    %v803 = vld [vmem:[#allocation5 + $0x1460] sm:$0xff]
    %v804 = vld [vmem:[#allocation5 + $0x1468] sm:$0xff]
    %v805 = vld [vmem:[#allocation5 + $0x1470] sm:$0xff]
    %v806 = vld [vmem:[#allocation5 + $0x1478] sm:$0xff]
    %v807 = vld [vmem:[#allocation5 + $0x1480] sm:$0xff]
    %v808 = vld [vmem:[#allocation5 + $0x1488] sm:$0xff]
    %v809 = vld [vmem:[#allocation5 + $0x1490] sm:$0xff]
    %v810 = vld [vmem:[#allocation5 + $0x1498] sm:$0xff]
    %v811 = vld [vmem:[#allocation5 + $0x14a0] sm:$0xff]
    %v812 = vld [vmem:[#allocation5 + $0x14a8] sm:$0xff]
    %v813 = vld [vmem:[#allocation5 + $0x14b0] sm:$0xff]
    %v814 = vld [vmem:[#allocation5 + $0x14b8] sm:$0xff]
    %v815 = vld [vmem:[#allocation5 + $0x14c0] sm:$0xff]
    %v816 = vld [vmem:[#allocation5 + $0x14c8] sm:$0xff]
    %v817 = vld [vmem:[#allocation5 + $0x14d0] sm:$0xff]
    %v818 = vld [vmem:[#allocation5 + $0x14d8] sm:$0xff]
    %v819 = vld [vmem:[#allocation5 + $0x14e0] sm:$0xff]
    %v820 = vld [vmem:[#allocation5 + $0x14e8] sm:$0xff]
    %v821 = vld [vmem:[#allocation5 + $0x14f0] sm:$0xff]
    %v822 = vld [vmem:[#allocation5 + $0x14f8] sm:$0xff]
    %v823 = vld [vmem:[#allocation5 + $0x1500] sm:$0xff]
    %v824 = vld [vmem:[#allocation5 + $0x1508] sm:$0xff]
    %v825 = vld [vmem:[#allocation5 + $0x1510] sm:$0xff]
    %v826 = vld [vmem:[#allocation5 + $0x1518] sm:$0xff]
    %v827 = vld [vmem:[#allocation5 + $0x1520] sm:$0xff]
    %v828 = vld [vmem:[#allocation5 + $0x1528] sm:$0xff]
    %v829 = vld [vmem:[#allocation5 + $0x1530] sm:$0xff]
    %v830 = vld [vmem:[#allocation5 + $0x1538] sm:$0xff]
    %v831 = vld [vmem:[#allocation5 + $0x1540] sm:$0xff]
    %v832 = vld [vmem:[#allocation5 + $0x1548] sm:$0xff]
    %v833 = vld [vmem:[#allocation5 + $0x1550] sm:$0xff]
    %v834 = vld [vmem:[#allocation5 + $0x1558] sm:$0xff]
    %v835 = vld [vmem:[#allocation5 + $0x1560] sm:$0xff]
    %v836 = vld [vmem:[#allocation5 + $0x1568] sm:$0xff]
    %v837 = vld [vmem:[#allocation5 + $0x1570] sm:$0xff]
    %v838 = vld [vmem:[#allocation5 + $0x1578] sm:$0xff]
    %v839 = vld [vmem:[#allocation5 + $0x1580] sm:$0xff]
    %v840 = vld [vmem:[#allocation5 + $0x1588] sm:$0xff]
    %v841 = vld [vmem:[#allocation5 + $0x1590] sm:$0xff]
    %v842 = vld [vmem:[#allocation5 + $0x1598] sm:$0xff]
    %v843 = vld [vmem:[#allocation5 + $0x15a0] sm:$0xff]
    %v844 = vld [vmem:[#allocation5 + $0x15a8] sm:$0xff]
    %v845 = vld [vmem:[#allocation5 + $0x15b0] sm:$0xff]
    %v846 = vld [vmem:[#allocation5 + $0x15b8] sm:$0xff]
    %v847 = vld [vmem:[#allocation5 + $0x15c0] sm:$0xff]
    %v848 = vld [vmem:[#allocation5 + $0x15c8] sm:$0xff]
    %v849 = vld [vmem:[#allocation5 + $0x15d0] sm:$0xff]
    %v850 = vld [vmem:[#allocation5 + $0x15d8] sm:$0xff]
    %v851 = vld [vmem:[#allocation5 + $0x15e0] sm:$0xff]
    %v852 = vld [vmem:[#allocation5 + $0x15e8] sm:$0xff]
    %v853 = vld [vmem:[#allocation5 + $0x15f0] sm:$0xff]
    %v854 = vld [vmem:[#allocation5 + $0x15f8] sm:$0xff]
    %v855 = vld [vmem:[#allocation5 + $0x1600] sm:$0xff]
    %v856 = vld [vmem:[#allocation5 + $0x1608] sm:$0xff]
    %v857 = vld [vmem:[#allocation5 + $0x1610] sm:$0xff]
    %v858 = vld [vmem:[#allocation5 + $0x1618] sm:$0xff]
    %v859 = vld [vmem:[#allocation5 + $0x1620] sm:$0xff]
    %v860 = vld [vmem:[#allocation5 + $0x1628] sm:$0xff]
    %v861 = vld [vmem:[#allocation5 + $0x1630] sm:$0xff]
    %v862 = vld [vmem:[#allocation5 + $0x1638] sm:$0xff]
    %v863 = vld [vmem:[#allocation5 + $0x1640] sm:$0xff]
    %v864 = vld [vmem:[#allocation5 + $0x1648] sm:$0xff]
    %v865 = vld [vmem:[#allocation5 + $0x1650] sm:$0xff]
    %v866 = vld [vmem:[#allocation5 + $0x1658] sm:$0xff]
    %v867 = vld [vmem:[#allocation5 + $0x1660] sm:$0xff]
    %v868 = vld [vmem:[#allocation5 + $0x1668] sm:$0xff]
    %v869 = vld [vmem:[#allocation5 + $0x1670] sm:$0xff]
    %v870 = vld [vmem:[#allocation5 + $0x1678] sm:$0xff]
    %v871 = vld [vmem:[#allocation5 + $0x1680] sm:$0xff]
    %v872 = vld [vmem:[#allocation5 + $0x1688] sm:$0xff]
    %v873 = vld [vmem:[#allocation5 + $0x1690] sm:$0xff]
    %v874 = vld [vmem:[#allocation5 + $0x1698] sm:$0xff]
    %v875 = vld [vmem:[#allocation5 + $0x16a0] sm:$0xff]
    %v876 = vld [vmem:[#allocation5 + $0x16a8] sm:$0xff]
    %v877 = vld [vmem:[#allocation5 + $0x16b0] sm:$0xff]
    %v878 = vld [vmem:[#allocation5 + $0x16b8] sm:$0xff]
    %v879 = vld [vmem:[#allocation5 + $0x16c0] sm:$0xff]
    %v880 = vld [vmem:[#allocation5 + $0x16c8] sm:$0xff]
    %v881 = vld [vmem:[#allocation5 + $0x16d0] sm:$0xff]
    %v882 = vld [vmem:[#allocation5 + $0x16d8] sm:$0xff]
    %v883 = vld [vmem:[#allocation5 + $0x16e0] sm:$0xff]
    %v884 = vld [vmem:[#allocation5 + $0x16e8] sm:$0xff]
    %v885 = vld [vmem:[#allocation5 + $0x16f0] sm:$0xff]
    %v886 = vld [vmem:[#allocation5 + $0x16f8] sm:$0xff]
    %v887 = vld [vmem:[#allocation5 + $0x1700] sm:$0xff]
    %v888 = vld [vmem:[#allocation5 + $0x1708] sm:$0xff]
    %v889 = vld [vmem:[#allocation5 + $0x1710] sm:$0xff]
    %v890 = vld [vmem:[#allocation5 + $0x1718] sm:$0xff]
    %v891 = vld [vmem:[#allocation5 + $0x1720] sm:$0xff]
    %v892 = vld [vmem:[#allocation5 + $0x1728] sm:$0xff]
    %v893 = vld [vmem:[#allocation5 + $0x1730] sm:$0xff]
    %v894 = vld [vmem:[#allocation5 + $0x1738] sm:$0xff]
    %v895 = vld [vmem:[#allocation5 + $0x1740] sm:$0xff]
    %v896 = vld [vmem:[#allocation5 + $0x1748] sm:$0xff]
    %v897 = vld [vmem:[#allocation5 + $0x1750] sm:$0xff]
    %v898 = vld [vmem:[#allocation5 + $0x1758] sm:$0xff]
    %v899 = vld [vmem:[#allocation5 + $0x1760] sm:$0xff]
    %v900 = vld [vmem:[#allocation5 + $0x1768] sm:$0xff]
    %v901 = vld [vmem:[#allocation5 + $0x1770] sm:$0xff]
    %v902 = vld [vmem:[#allocation5 + $0x1778] sm:$0xff]
    %v903 = vld [vmem:[#allocation5 + $0x1780] sm:$0xff]
    %v904 = vld [vmem:[#allocation5 + $0x1788] sm:$0xff]
    %v905 = vld [vmem:[#allocation5 + $0x1790] sm:$0xff]
    %v906 = vld [vmem:[#allocation5 + $0x1798] sm:$0xff]
    %v907 = vld [vmem:[#allocation5 + $0x17a0] sm:$0xff]
    %v908 = vld [vmem:[#allocation5 + $0x17a8] sm:$0xff]
    %v909 = vld [vmem:[#allocation5 + $0x17b0] sm:$0xff]
    %v910 = vld [vmem:[#allocation5 + $0x17b8] sm:$0xff]
    %v911 = vld [vmem:[#allocation5 + $0x17c0] sm:$0xff]
    %v912 = vld [vmem:[#allocation5 + $0x17c8] sm:$0xff]
    %v913 = vld [vmem:[#allocation5 + $0x17d0] sm:$0xff]
    %v914 = vld [vmem:[#allocation5 + $0x17d8] sm:$0xff]
    %v915 = vld [vmem:[#allocation5 + $0x17e0] sm:$0xff]
    %v916 = vld [vmem:[#allocation5 + $0x17e8] sm:$0xff]
    %v917 = vld [vmem:[#allocation5 + $0x17f0] sm:$0xff]
    %v918 = vld [vmem:[#allocation5 + $0x17f8] sm:$0xff]
    %v919 = vld [vmem:[#allocation5 + $0x1800] sm:$0xff]
    %v920 = vld [vmem:[#allocation5 + $0x1808] sm:$0xff]
    %v921 = vld [vmem:[#allocation5 + $0x1810] sm:$0xff]
    %v922 = vld [vmem:[#allocation5 + $0x1818] sm:$0xff]
    %v923 = vld [vmem:[#allocation5 + $0x1820] sm:$0xff]
    %v924 = vld [vmem:[#allocation5 + $0x1828] sm:$0xff]
    %v925 = vld [vmem:[#allocation5 + $0x1830] sm:$0xff]
    %v926 = vld [vmem:[#allocation5 + $0x1838] sm:$0xff]
    %v927 = vld [vmem:[#allocation5 + $0x1840] sm:$0xff]
    %v928 = vld [vmem:[#allocation5 + $0x1848] sm:$0xff]
    %v929 = vld [vmem:[#allocation5 + $0x1850] sm:$0xff]
    %v930 = vld [vmem:[#allocation5 + $0x1858] sm:$0xff]
    %v931 = vld [vmem:[#allocation5 + $0x1860] sm:$0xff]
    %v932 = vld [vmem:[#allocation5 + $0x1868] sm:$0xff]
    %v933 = vld [vmem:[#allocation5 + $0x1870] sm:$0xff]
    %v934 = vld [vmem:[#allocation5 + $0x1878] sm:$0xff]
    %v935 = vld [vmem:[#allocation5 + $0x1880] sm:$0xff]
    %v936 = vld [vmem:[#allocation5 + $0x1888] sm:$0xff]
    %v937 = vld [vmem:[#allocation5 + $0x1890] sm:$0xff]
    %v938 = vld [vmem:[#allocation5 + $0x1898] sm:$0xff]
    %v939 = vld [vmem:[#allocation5 + $0x18a0] sm:$0xff]
    %v940 = vld [vmem:[#allocation5 + $0x18a8] sm:$0xff]
    %v941 = vld [vmem:[#allocation5 + $0x18b0] sm:$0xff]
    %v942 = vld [vmem:[#allocation5 + $0x18b8] sm:$0xff]
    %v943 = vld [vmem:[#allocation5 + $0x18c0] sm:$0xff]
    %v944 = vld [vmem:[#allocation5 + $0x18c8] sm:$0xff]
    %v945 = vld [vmem:[#allocation5 + $0x18d0] sm:$0xff]
    %v946 = vld [vmem:[#allocation5 + $0x18d8] sm:$0xff]
    %v947 = vld [vmem:[#allocation5 + $0x18e0] sm:$0xff]
    %v948 = vld [vmem:[#allocation5 + $0x18e8] sm:$0xff]
    %v949 = vld [vmem:[#allocation5 + $0x18f0] sm:$0xff]
    %v950 = vld [vmem:[#allocation5 + $0x18f8] sm:$0xff]
    %v951 = vld [vmem:[#allocation5 + $0x1900] sm:$0xff]
    %v952 = vld [vmem:[#allocation5 + $0x1908] sm:$0xff]
    %v953 = vld [vmem:[#allocation5 + $0x1910] sm:$0xff]
    %v954 = vld [vmem:[#allocation5 + $0x1918] sm:$0xff]
    %v955 = vld [vmem:[#allocation5 + $0x1920] sm:$0xff]
    %v956 = vld [vmem:[#allocation5 + $0x1928] sm:$0xff]
    %v957 = vld [vmem:[#allocation5 + $0x1930] sm:$0xff]
    %v958 = vld [vmem:[#allocation5 + $0x1938] sm:$0xff]
    %v959 = vld [vmem:[#allocation5 + $0x1940] sm:$0xff]
    %v960 = vld [vmem:[#allocation5 + $0x1948] sm:$0xff]
    %v961 = vld [vmem:[#allocation5 + $0x1950] sm:$0xff]
    %v962 = vld [vmem:[#allocation5 + $0x1958] sm:$0xff]
    %v963 = vld [vmem:[#allocation5 + $0x1960] sm:$0xff]
    %v964 = vld [vmem:[#allocation5 + $0x1968] sm:$0xff]
    %v965 = vld [vmem:[#allocation5 + $0x1970] sm:$0xff]
    %v966 = vld [vmem:[#allocation5 + $0x1978] sm:$0xff]
    %v967 = vld [vmem:[#allocation5 + $0x1980] sm:$0xff]
    %v968 = vld [vmem:[#allocation5 + $0x1988] sm:$0xff]
    %v969 = vld [vmem:[#allocation5 + $0x1990] sm:$0xff]
    %v970 = vld [vmem:[#allocation5 + $0x1998] sm:$0xff]
    %v971 = vld [vmem:[#allocation5 + $0x19a0] sm:$0xff]
    %v972 = vld [vmem:[#allocation5 + $0x19a8] sm:$0xff]
    %v973 = vld [vmem:[#allocation5 + $0x19b0] sm:$0xff]
    %v974 = vld [vmem:[#allocation5 + $0x19b8] sm:$0xff]
    %v975 = vld [vmem:[#allocation5 + $0x19c0] sm:$0xff]
    %v976 = vld [vmem:[#allocation5 + $0x19c8] sm:$0xff]
    %v977 = vld [vmem:[#allocation5 + $0x19d0] sm:$0xff]
    %v978 = vld [vmem:[#allocation5 + $0x19d8] sm:$0xff]
    %v979 = vld [vmem:[#allocation5 + $0x19e0] sm:$0xff]
    %v980 = vld [vmem:[#allocation5 + $0x19e8] sm:$0xff]
    %v981 = vld [vmem:[#allocation5 + $0x19f0] sm:$0xff]
    %v982 = vld [vmem:[#allocation5 + $0x19f8] sm:$0xff]
    %v983 = vld [vmem:[#allocation5 + $0x1a00] sm:$0xff]
    %v984 = vld [vmem:[#allocation5 + $0x1a08] sm:$0xff]
    %v985 = vld [vmem:[#allocation5 + $0x1a10] sm:$0xff]
    %v986 = vld [vmem:[#allocation5 + $0x1a18] sm:$0xff]
    %v987 = vld [vmem:[#allocation5 + $0x1a20] sm:$0xff]
    %v988 = vld [vmem:[#allocation5 + $0x1a28] sm:$0xff]
    %v989 = vld [vmem:[#allocation5 + $0x1a30] sm:$0xff]
    %v990 = vld [vmem:[#allocation5 + $0x1a38] sm:$0xff]
    %v991 = vld [vmem:[#allocation5 + $0x1a40] sm:$0xff]
    %v992 = vld [vmem:[#allocation5 + $0x1a48] sm:$0xff]
    %v993 = vld [vmem:[#allocation5 + $0x1a50] sm:$0xff]
    %v994 = vld [vmem:[#allocation5 + $0x1a58] sm:$0xff]
    %v995 = vld [vmem:[#allocation5 + $0x1a60] sm:$0xff]
    %v996 = vld [vmem:[#allocation5 + $0x1a68] sm:$0xff]
    %v997 = vld [vmem:[#allocation5 + $0x1a70] sm:$0xff]
    %v998 = vld [vmem:[#allocation5 + $0x1a78] sm:$0xff]
    %v999 = vld [vmem:[#allocation5 + $0x1a80] sm:$0xff]
    %v1000 = vld [vmem:[#allocation5 + $0x1a88] sm:$0xff]
    %v1001 = vld [vmem:[#allocation5 + $0x1a90] sm:$0xff]
    %v1002 = vld [vmem:[#allocation5 + $0x1a98] sm:$0xff]
    %v1003 = vld [vmem:[#allocation5 + $0x1aa0] sm:$0xff]
    %v1004 = vld [vmem:[#allocation5 + $0x1aa8] sm:$0xff]
    %v1005 = vld [vmem:[#allocation5 + $0x1ab0] sm:$0xff]
    %v1006 = vld [vmem:[#allocation5 + $0x1ab8] sm:$0xff]
    %v1007 = vld [vmem:[#allocation5 + $0x1ac0] sm:$0xff]
    %v1008 = vld [vmem:[#allocation5 + $0x1ac8] sm:$0xff]
    %v1009 = vld [vmem:[#allocation5 + $0x1ad0] sm:$0xff]
    %v1010 = vld [vmem:[#allocation5 + $0x1ad8] sm:$0xff]
    %v1011 = vld [vmem:[#allocation5 + $0x1ae0] sm:$0xff]
    %v1012 = vld [vmem:[#allocation5 + $0x1ae8] sm:$0xff]
    %v1013 = vld [vmem:[#allocation5 + $0x1af0] sm:$0xff]
    %v1014 = vld [vmem:[#allocation5 + $0x1af8] sm:$0xff]
    %v1015 = vld [vmem:[#allocation5 + $0x1b00] sm:$0xff]
    %v1016 = vld [vmem:[#allocation5 + $0x1b08] sm:$0xff]
    %v1017 = vld [vmem:[#allocation5 + $0x1b10] sm:$0xff]
    %v1018 = vld [vmem:[#allocation5 + $0x1b18] sm:$0xff]
    %v1019 = vld [vmem:[#allocation5 + $0x1b20] sm:$0xff]
    %v1020 = vld [vmem:[#allocation5 + $0x1b28] sm:$0xff]
    %v1021 = vld [vmem:[#allocation5 + $0x1b30] sm:$0xff]
    %v1022 = vld [vmem:[#allocation5 + $0x1b38] sm:$0xff]
    %v1023 = vld [vmem:[#allocation5 + $0x1b40] sm:$0xff]
    %v1024 = vld [vmem:[#allocation5 + $0x1b48] sm:$0xff]
    %v1025 = vld [vmem:[#allocation5 + $0x1b50] sm:$0xff]
    %v1026 = vld [vmem:[#allocation5 + $0x1b58] sm:$0xff]
    %v1027 = vld [vmem:[#allocation5 + $0x1b60] sm:$0xff]
    %v1028 = vld [vmem:[#allocation5 + $0x1b68] sm:$0xff]
    %v1029 = vld [vmem:[#allocation5 + $0x1b70] sm:$0xff]
    %v1030 = vld [vmem:[#allocation5 + $0x1b78] sm:$0xff]
    %v1031 = vld [vmem:[#allocation5 + $0x1b80] sm:$0xff]
    %v1032 = vld [vmem:[#allocation5 + $0x1b88] sm:$0xff]
    %v1033 = vld [vmem:[#allocation5 + $0x1b90] sm:$0xff]
    %v1034 = vld [vmem:[#allocation5 + $0x1b98] sm:$0xff]
    %v1035 = vld [vmem:[#allocation5 + $0x1ba0] sm:$0xff]
    %v1036 = vld [vmem:[#allocation5 + $0x1ba8] sm:$0xff]
    %v1037 = vld [vmem:[#allocation5 + $0x1bb0] sm:$0xff]
    %v1038 = vld [vmem:[#allocation5 + $0x1bb8] sm:$0xff]
    %v1039 = vld [vmem:[#allocation5 + $0x1bc0] sm:$0xff]
    %v1040 = vld [vmem:[#allocation5 + $0x1bc8] sm:$0xff]
    %v1041 = vld [vmem:[#allocation5 + $0x1bd0] sm:$0xff]
    %v1042 = vld [vmem:[#allocation5 + $0x1bd8] sm:$0xff]
    %v1043 = vld [vmem:[#allocation5 + $0x1be0] sm:$0xff]
    %v1044 = vld [vmem:[#allocation5 + $0x1be8] sm:$0xff]
    %v1045 = vld [vmem:[#allocation5 + $0x1bf0] sm:$0xff]
    %v1046 = vld [vmem:[#allocation5 + $0x1bf8] sm:$0xff]
    %v1047 = vld [vmem:[#allocation5 + $0x1c00] sm:$0xff]
    %v1048 = vld [vmem:[#allocation5 + $0x1c08] sm:$0xff]
    %v1049 = vld [vmem:[#allocation5 + $0x1c10] sm:$0xff]
    %v1050 = vld [vmem:[#allocation5 + $0x1c18] sm:$0xff]
    %v1051 = vld [vmem:[#allocation5 + $0x1c20] sm:$0xff]
    %v1052 = vld [vmem:[#allocation5 + $0x1c28] sm:$0xff]
    %v1053 = vld [vmem:[#allocation5 + $0x1c30] sm:$0xff]
    %v1054 = vld [vmem:[#allocation5 + $0x1c38] sm:$0xff]
    %v1055 = vld [vmem:[#allocation5 + $0x1c40] sm:$0xff]
    %v1056 = vld [vmem:[#allocation5 + $0x1c48] sm:$0xff]
    %v1057 = vld [vmem:[#allocation5 + $0x1c50] sm:$0xff]
    %v1058 = vld [vmem:[#allocation5 + $0x1c58] sm:$0xff]
    %v1059 = vld [vmem:[#allocation5 + $0x1c60] sm:$0xff]
    %v1060 = vld [vmem:[#allocation5 + $0x1c68] sm:$0xff]
    %v1061 = vld [vmem:[#allocation5 + $0x1c70] sm:$0xff]
    %v1062 = vld [vmem:[#allocation5 + $0x1c78] sm:$0xff]
    %v1063 = vld [vmem:[#allocation5 + $0x1c80] sm:$0xff]
    %v1064 = vld [vmem:[#allocation5 + $0x1c88] sm:$0xff]
    %v1065 = vld [vmem:[#allocation5 + $0x1c90] sm:$0xff]
    %v1066 = vld [vmem:[#allocation5 + $0x1c98] sm:$0xff]
    %v1067 = vld [vmem:[#allocation5 + $0x1ca0] sm:$0xff]
    %v1068 = vld [vmem:[#allocation5 + $0x1ca8] sm:$0xff]
    %v1069 = vld [vmem:[#allocation5 + $0x1cb0] sm:$0xff]
    %v1070 = vld [vmem:[#allocation5 + $0x1cb8] sm:$0xff]
    %v1071 = vld [vmem:[#allocation5 + $0x1cc0] sm:$0xff]
    %v1072 = vld [vmem:[#allocation5 + $0x1cc8] sm:$0xff]
    %v1073 = vld [vmem:[#allocation5 + $0x1cd0] sm:$0xff]
    %v1074 = vld [vmem:[#allocation5 + $0x1cd8] sm:$0xff]
    %v1075 = vld [vmem:[#allocation5 + $0x1ce0] sm:$0xff]
    %v1076 = vld [vmem:[#allocation5 + $0x1ce8] sm:$0xff]
    %v1077 = vld [vmem:[#allocation5 + $0x1cf0] sm:$0xff]
    %v1078 = vld [vmem:[#allocation5 + $0x1cf8] sm:$0xff]
    %v1079 = vld [vmem:[#allocation5 + $0x1d00] sm:$0xff]
    %v1080 = vld [vmem:[#allocation5 + $0x1d08] sm:$0xff]
    %v1081 = vld [vmem:[#allocation5 + $0x1d10] sm:$0xff]
    %v1082 = vld [vmem:[#allocation5 + $0x1d18] sm:$0xff]
    %v1083 = vld [vmem:[#allocation5 + $0x1d20] sm:$0xff]
    %v1084 = vld [vmem:[#allocation5 + $0x1d28] sm:$0xff]
    %v1085 = vld [vmem:[#allocation5 + $0x1d30] sm:$0xff]
    %v1086 = vld [vmem:[#allocation5 + $0x1d38] sm:$0xff]
    %v1087 = vld [vmem:[#allocation5 + $0x1d40] sm:$0xff]
    %v1088 = vld [vmem:[#allocation5 + $0x1d48] sm:$0xff]
    %v1089 = vld [vmem:[#allocation5 + $0x1d50] sm:$0xff]
    %v1090 = vld [vmem:[#allocation5 + $0x1d58] sm:$0xff]
    %v1091 = vld [vmem:[#allocation5 + $0x1d60] sm:$0xff]
    %v1092 = vld [vmem:[#allocation5 + $0x1d68] sm:$0xff]
    %v1093 = vld [vmem:[#allocation5 + $0x1d70] sm:$0xff]
    %v1094 = vld [vmem:[#allocation5 + $0x1d78] sm:$0xff]
    %v1095 = vld [vmem:[#allocation5 + $0x1d80] sm:$0xff]
    %v1096 = vld [vmem:[#allocation5 + $0x1d88] sm:$0xff]
    %v1097 = vld [vmem:[#allocation5 + $0x1d90] sm:$0xff]
    %v1098 = vld [vmem:[#allocation5 + $0x1d98] sm:$0xff]
    %v1099 = vld [vmem:[#allocation5 + $0x1da0] sm:$0xff]
    %v1100 = vld [vmem:[#allocation5 + $0x1da8] sm:$0xff]
    %v1101 = vld [vmem:[#allocation5 + $0x1db0] sm:$0xff]
    %v1102 = vld [vmem:[#allocation5 + $0x1db8] sm:$0xff]
    %v1103 = vld [vmem:[#allocation5 + $0x1dc0] sm:$0xff]
    %v1104 = vld [vmem:[#allocation5 + $0x1dc8] sm:$0xff]
    %v1105 = vld [vmem:[#allocation5 + $0x1dd0] sm:$0xff]
    %v1106 = vld [vmem:[#allocation5 + $0x1dd8] sm:$0xff]
    %v1107 = vld [vmem:[#allocation5 + $0x1de0] sm:$0xff]
    %v1108 = vld [vmem:[#allocation5 + $0x1de8] sm:$0xff]
    %v1109 = vld [vmem:[#allocation5 + $0x1df0] sm:$0xff]
    %v1110 = vld [vmem:[#allocation5 + $0x1df8] sm:$0xff]
    %v1111 = vld [vmem:[#allocation5 + $0x1e00] sm:$0xff]
    %v1112 = vld [vmem:[#allocation5 + $0x1e08] sm:$0xff]
    %v1113 = vld [vmem:[#allocation5 + $0x1e10] sm:$0xff]
    %v1114 = vld [vmem:[#allocation5 + $0x1e18] sm:$0xff]
    %v1115 = vld [vmem:[#allocation5 + $0x1e20] sm:$0xff]
    %v1116 = vld [vmem:[#allocation5 + $0x1e28] sm:$0xff]
    %v1117 = vld [vmem:[#allocation5 + $0x1e30] sm:$0xff]
    %v1118 = vld [vmem:[#allocation5 + $0x1e38] sm:$0xff]
    %v1119 = vld [vmem:[#allocation5 + $0x1e40] sm:$0xff]
    %v1120 = vld [vmem:[#allocation5 + $0x1e48] sm:$0xff]
    %v1121 = vld [vmem:[#allocation5 + $0x1e50] sm:$0xff]
    %v1122 = vld [vmem:[#allocation5 + $0x1e58] sm:$0xff]
    %v1123 = vld [vmem:[#allocation5 + $0x1e60] sm:$0xff]
    %v1124 = vld [vmem:[#allocation5 + $0x1e68] sm:$0xff]
    %v1125 = vld [vmem:[#allocation5 + $0x1e70] sm:$0xff]
    %v1126 = vld [vmem:[#allocation5 + $0x1e78] sm:$0xff]
    %v1127 = vld [vmem:[#allocation5 + $0x1e80] sm:$0xff]
    %v1128 = vld [vmem:[#allocation5 + $0x1e88] sm:$0xff]
    %v1129 = vld [vmem:[#allocation5 + $0x1e90] sm:$0xff]
    %v1130 = vld [vmem:[#allocation5 + $0x1e98] sm:$0xff]
    %v1131 = vld [vmem:[#allocation5 + $0x1ea0] sm:$0xff]
    %v1132 = vld [vmem:[#allocation5 + $0x1ea8] sm:$0xff]
    %v1133 = vld [vmem:[#allocation5 + $0x1eb0] sm:$0xff]
    %v1134 = vld [vmem:[#allocation5 + $0x1eb8] sm:$0xff]
    %v1135 = vld [vmem:[#allocation5 + $0x1ec0] sm:$0xff]
    %v1136 = vld [vmem:[#allocation5 + $0x1ec8] sm:$0xff]
    %v1137 = vld [vmem:[#allocation5 + $0x1ed0] sm:$0xff]
    %v1138 = vld [vmem:[#allocation5 + $0x1ed8] sm:$0xff]
    %v1139 = vld [vmem:[#allocation5 + $0x1ee0] sm:$0xff]
    %v1140 = vld [vmem:[#allocation5 + $0x1ee8] sm:$0xff]
    %v1141 = vld [vmem:[#allocation5 + $0x1ef0] sm:$0xff]
    %v1142 = vld [vmem:[#allocation5 + $0x1ef8] sm:$0xff]
    %v1143 = vld [vmem:[#allocation5 + $0x1f00] sm:$0xff]
    %v1144 = vld [vmem:[#allocation5 + $0x1f08] sm:$0xff]
    %v1145 = vld [vmem:[#allocation5 + $0x1f10] sm:$0xff]
    %v1146 = vld [vmem:[#allocation5 + $0x1f18] sm:$0xff]
    %v1147 = vld [vmem:[#allocation5 + $0x1f20] sm:$0xff]
    %v1148 = vld [vmem:[#allocation5 + $0x1f28] sm:$0xff]
    %v1149 = vld [vmem:[#allocation5 + $0x1f30] sm:$0xff]
    %v1150 = vld [vmem:[#allocation5 + $0x1f38] sm:$0xff]
    %v1151 = vld [vmem:[#allocation5 + $0x1f40] sm:$0xff]
    %v1152 = vld [vmem:[#allocation5 + $0x1f48] sm:$0xff]
    %v1153 = vld [vmem:[#allocation5 + $0x1f50] sm:$0xff]
    %v1154 = vld [vmem:[#allocation5 + $0x1f58] sm:$0xff]
    %v1155 = vld [vmem:[#allocation5 + $0x1f60] sm:$0xff]
    %v1156 = vld [vmem:[#allocation5 + $0x1f68] sm:$0xff]
    %v1157 = vld [vmem:[#allocation5 + $0x1f70] sm:$0xff]
    %v1158 = vld [vmem:[#allocation5 + $0x1f78] sm:$0xff]
    %v1159 = vld [vmem:[#allocation5 + $0x1f80] sm:$0xff]
    %v1160 = vld [vmem:[#allocation5 + $0x1f88] sm:$0xff]
    %v1161 = vld [vmem:[#allocation5 + $0x1f90] sm:$0xff]
    %v1162 = vld [vmem:[#allocation5 + $0x1f98] sm:$0xff]
    %v1163 = vld [vmem:[#allocation5 + $0x1fa0] sm:$0xff]
    %v1164 = vld [vmem:[#allocation5 + $0x1fa8] sm:$0xff]
    %v1165 = vld [vmem:[#allocation5 + $0x1fb0] sm:$0xff]
    %v1166 = vld [vmem:[#allocation5 + $0x1fb8] sm:$0xff]
    %v1167 = vld [vmem:[#allocation5 + $0x1fc0] sm:$0xff]
    %v1168 = vld [vmem:[#allocation5 + $0x1fc8] sm:$0xff]
    %v1169 = vld [vmem:[#allocation5 + $0x1fd0] sm:$0xff]
    %v1170 = vld [vmem:[#allocation5 + $0x1fd8] sm:$0xff]
    %v1171 = vld [vmem:[#allocation5 + $0x1fe0] sm:$0xff]
    %v1172 = vld [vmem:[#allocation5 + $0x1fe8] sm:$0xff]
    %v1173 = vld [vmem:[#allocation5 + $0x1ff0] sm:$0xff]
    %v1174 = vld [vmem:[#allocation5 + $0x1ff8] sm:$0xff]
    %1175 = vmatprep.subr.mxu0 %v152
    %1176 = vmatpush1.msra.mxu0 %v151
    %1177 = vmatprep.subr.mxu0 %v160
    %1178 = vmatpush1.msra.mxu0 %v159
    %1179 = vmatprep.subr.mxu0 %v168
    %1180 = vmatpush1.msra.mxu0 %v167
    %1181 = vmatprep.subr.mxu0 %v176
    %1182 = vmatpush1.msra.mxu0 %v175
    %1183 = vmatprep.subr.mxu0 %v184
    %1184 = vmatpush1.msra.mxu0 %v183
    %1185 = vmatprep.subr.mxu0 %v192
    %1186 = vmatpush1.msra.mxu0 %v191
    %1187 = vmatprep.subr.mxu0 %v200
    %1188 = vmatpush1.msra.mxu0 %v199
    %1189 = vmatprep.subr.mxu0 %v208
    %1190 = vmatpush1.msra.mxu0 %v207
    %1191 = vmatprep.subr.mxu0 %v216
    %1192 = vmatpush1.msra.mxu0 %v215
    %1193 = vmatprep.subr.mxu0 %v224
    %1194 = vmatpush1.msra.mxu0 %v223
    %1195 = vmatprep.subr.mxu0 %v232
    %1196 = vmatpush1.msra.mxu0 %v231
    %1197 = vmatprep.subr.mxu0 %v240
    %1198 = vmatpush1.msra.mxu0 %v239
    %1199 = vmatprep.subr.mxu0 %v248
    %1200 = vmatpush1.msra.mxu0 %v247
    %1201 = vmatprep.subr.mxu0 %v256
    %1202 = vmatpush1.msra.mxu0 %v255
    %1203 = vmatprep.subr.mxu0 %v264
    %1204 = vmatpush1.msra.mxu0 %v263
    %1205 = vmatprep.subr.mxu0 %v272
    %1206 = vmatpush1.msra.mxu0 %v271
    %1207 = vmatprep.subr.mxu0 %v280
    %1208 = vmatpush1.msra.mxu0 %v279
    %1209 = vmatprep.subr.mxu0 %v288
    %1210 = vmatpush1.msra.mxu0 %v287
    %1211 = vmatprep.subr.mxu0 %v296
    %1212 = vmatpush1.msra.mxu0 %v295
    %1213 = vmatprep.subr.mxu0 %v304
    %1214 = vmatpush1.msra.mxu0 %v303
    %1215 = vmatprep.subr.mxu0 %v312
    %1216 = vmatpush1.msra.mxu0 %v311
    %1217 = vmatprep.subr.mxu0 %v320
    %1218 = vmatpush1.msra.mxu0 %v319
    %1219 = vmatprep.subr.mxu0 %v328
    %1220 = vmatpush1.msra.mxu0 %v327
    %1221 = vmatprep.subr.mxu0 %v336
    %1222 = vmatpush1.msra.mxu0 %v335
    %1223 = vmatprep.subr.mxu0 %v344
    %1224 = vmatpush1.msra.mxu0 %v343
    %1225 = vmatprep.subr.mxu0 %v352
    %1226 = vmatpush1.msra.mxu0 %v351
    %1227 = vmatprep.subr.mxu0 %v360
    %1228 = vmatpush1.msra.mxu0 %v359
    %1229 = vmatprep.subr.mxu0 %v368
    %1230 = vmatpush1.msra.mxu0 %v367
    %1231 = vmatprep.subr.mxu0 %v376
    %1232 = vmatpush1.msra.mxu0 %v375
    %1233 = vmatprep.subr.mxu0 %v384
    %1234 = vmatpush1.msra.mxu0 %v383
    %1235 = vmatprep.subr.mxu0 %v392
    %1236 = vmatpush1.msra.mxu0 %v391
    %1237 = vmatprep.subr.mxu0 %v400
    %1238 = vmatpush1.msra.mxu0 %v399
    %1239 = vmatprep.mubr.f32.mxu0 %v144
    %1240 = vmatmul.mubr.f32.gmra.mrb[0].mxu0 %v143
    %v1241 = vpop.f32.mrb[0].mxu0
    %v1242 = vadd.f32 0.0, %v1241
    %v1243 = vpop.f32.mrb[0].mxu0
    %v1244 = vadd.f32 0.0, %v1243
    %1245 = vdwg.mxu0
    %1246 = vmatprep.subr.mxu0 %v408
    %1247 = vmatpush1.msra.mxu0 %v407
    %1248 = vmatprep.subr.mxu0 %v416
    %1249 = vmatpush1.msra.mxu0 %v415
    %1250 = vmatprep.subr.mxu0 %v424
    %1251 = vmatpush1.msra.mxu0 %v423
    %1252 = vmatprep.subr.mxu0 %v432
    %1253 = vmatpush1.msra.mxu0 %v431
    %1254 = vmatprep.subr.mxu0 %v440
    %1255 = vmatpush1.msra.mxu0 %v439
    %1256 = vmatprep.subr.mxu0 %v448
    %1257 = vmatpush1.msra.mxu0 %v447
    %1258 = vmatprep.subr.mxu0 %v456
    %1259 = vmatpush1.msra.mxu0 %v455
    %1260 = vmatprep.subr.mxu0 %v464
    %1261 = vmatpush1.msra.mxu0 %v463
    %1262 = vmatprep.subr.mxu0 %v472
    %1263 = vmatpush1.msra.mxu0 %v471
    %1264 = vmatprep.subr.mxu0 %v480
    %1265 = vmatpush1.msra.mxu0 %v479
    %1266 = vmatprep.subr.mxu0 %v488
    %1267 = vmatpush1.msra.mxu0 %v487
    %1268 = vmatprep.subr.mxu0 %v496
    %1269 = vmatpush1.msra.mxu0 %v495
    %1270 = vmatprep.subr.mxu0 %v504
    %1271 = vmatpush1.msra.mxu0 %v503
    %1272 = vmatprep.subr.mxu0 %v512
    %1273 = vmatpush1.msra.mxu0 %v511
    %1274 = vmatprep.subr.mxu0 %v520
    %1275 = vmatpush1.msra.mxu0 %v519
    %1276 = vmatprep.subr.mxu0 %v528
    %1277 = vmatpush1.msra.mxu0 %v527
    %1278 = vmatprep.subr.mxu0 %v536
    %1279 = vmatpush1.msra.mxu0 %v535
    %1280 = vmatprep.subr.mxu0 %v544
    %1281 = vmatpush1.msra.mxu0 %v543
    %1282 = vmatprep.subr.mxu0 %v552
    %1283 = vmatpush1.msra.mxu0 %v551
    %1284 = vmatprep.subr.mxu0 %v560
    %1285 = vmatpush1.msra.mxu0 %v559
    %1286 = vmatprep.subr.mxu0 %v568
    %1287 = vmatpush1.msra.mxu0 %v567
    %1288 = vmatprep.subr.mxu0 %v576
    %1289 = vmatpush1.msra.mxu0 %v575
    %1290 = vmatprep.subr.mxu0 %v584
    %1291 = vmatpush1.msra.mxu0 %v583
    %1292 = vmatprep.subr.mxu0 %v592
    %1293 = vmatpush1.msra.mxu0 %v591
    %1294 = vmatprep.subr.mxu0 %v600
    %1295 = vmatpush1.msra.mxu0 %v599
    %1296 = vmatprep.subr.mxu0 %v608
    %1297 = vmatpush1.msra.mxu0 %v607
    %1298 = vmatprep.subr.mxu0 %v616
    %1299 = vmatpush1.msra.mxu0 %v615
    %1300 = vmatprep.subr.mxu0 %v624
    %1301 = vmatpush1.msra.mxu0 %v623
    %1302 = vmatprep.subr.mxu0 %v632
    %1303 = vmatpush1.msra.mxu0 %v631
    %1304 = vmatprep.subr.mxu0 %v640
    %1305 = vmatpush1.msra.mxu0 %v639
    %1306 = vmatprep.subr.mxu0 %v648
    %1307 = vmatpush1.msra.mxu0 %v647
    %1308 = vmatprep.subr.mxu0 %v656
    %1309 = vmatpush1.msra.mxu0 %v655
    %1310 = vmatprep.mubr.f32.mxu0 %v146
    %1311 = vmatmul.mubr.f32.gmra.mrb[0].mxu0 %v145
    %v1312 = vpop.f32.mrb[0].mxu0
    %v1313 = vadd.f32 %v1242, %v1312
    %v1314 = vpop.f32.mrb[0].mxu0
    %v1315 = vadd.f32 %v1244, %v1314
    %1316 = vdwg.mxu0
    %1317 = vmatprep.subr.mxu0 %v664
    %1318 = vmatpush1.msra.mxu0 %v663
    %1319 = vmatprep.subr.mxu0 %v672
    %1320 = vmatpush1.msra.mxu0 %v671
    %1321 = vmatprep.subr.mxu0 %v680
    %1322 = vmatpush1.msra.mxu0 %v679
    %1323 = vmatprep.subr.mxu0 %v688
    %1324 = vmatpush1.msra.mxu0 %v687
    %1325 = vmatprep.subr.mxu0 %v696
    %1326 = vmatpush1.msra.mxu0 %v695
    %1327 = vmatprep.subr.mxu0 %v704
    %1328 = vmatpush1.msra.mxu0 %v703
    %1329 = vmatprep.subr.mxu0 %v712
    %1330 = vmatpush1.msra.mxu0 %v711
    %1331 = vmatprep.subr.mxu0 %v720
    %1332 = vmatpush1.msra.mxu0 %v719
    %1333 = vmatprep.subr.mxu0 %v728
    %1334 = vmatpush1.msra.mxu0 %v727
    %1335 = vmatprep.subr.mxu0 %v736
    %1336 = vmatpush1.msra.mxu0 %v735
    %1337 = vmatprep.subr.mxu0 %v744
    %1338 = vmatpush1.msra.mxu0 %v743
    %1339 = vmatprep.subr.mxu0 %v752
    %1340 = vmatpush1.msra.mxu0 %v751
    %1341 = vmatprep.subr.mxu0 %v760
    %1342 = vmatpush1.msra.mxu0 %v759
    %1343 = vmatprep.subr.mxu0 %v768
    %1344 = vmatpush1.msra.mxu0 %v767
    %1345 = vmatprep.subr.mxu0 %v776
    %1346 = vmatpush1.msra.mxu0 %v775
    %1347 = vmatprep.subr.mxu0 %v784
    %1348 = vmatpush1.msra.mxu0 %v783
    %1349 = vmatprep.subr.mxu0 %v792
    %1350 = vmatpush1.msra.mxu0 %v791
    %1351 = vmatprep.subr.mxu0 %v800
    %1352 = vmatpush1.msra.mxu0 %v799
    %1353 = vmatprep.subr.mxu0 %v808
    %1354 = vmatpush1.msra.mxu0 %v807
    %1355 = vmatprep.subr.mxu0 %v816
    %1356 = vmatpush1.msra.mxu0 %v815
    %1357 = vmatprep.subr.mxu0 %v824
    %1358 = vmatpush1.msra.mxu0 %v823
    %1359 = vmatprep.subr.mxu0 %v832
    %1360 = vmatpush1.msra.mxu0 %v831
    %1361 = vmatprep.subr.mxu0 %v840
    %1362 = vmatpush1.msra.mxu0 %v839
    %1363 = vmatprep.subr.mxu0 %v848
    %1364 = vmatpush1.msra.mxu0 %v847
    %1365 = vmatprep.subr.mxu0 %v856
    %1366 = vmatpush1.msra.mxu0 %v855
    %1367 = vmatprep.subr.mxu0 %v864
    %1368 = vmatpush1.msra.mxu0 %v863
    %1369 = vmatprep.subr.mxu0 %v872
    %1370 = vmatpush1.msra.mxu0 %v871
    %1371 = vmatprep.subr.mxu0 %v880
    %1372 = vmatpush1.msra.mxu0 %v879
    %1373 = vmatprep.subr.mxu0 %v888
    %1374 = vmatpush1.msra.mxu0 %v887
    %1375 = vmatprep.subr.mxu0 %v896
    %1376 = vmatpush1.msra.mxu0 %v895
    %1377 = vmatprep.subr.mxu0 %v904
    %1378 = vmatpush1.msra.mxu0 %v903
    %1379 = vmatprep.subr.mxu0 %v912
    %1380 = vmatpush1.msra.mxu0 %v911
    %1381 = vmatprep.mubr.f32.mxu0 %v148
    %1382 = vmatmul.mubr.f32.gmra.mrb[0].mxu0 %v147
    %v1383 = vpop.f32.mrb[0].mxu0
    %v1384 = vadd.f32 %v1313, %v1383
    %v1385 = vpop.f32.mrb[0].mxu0
    %v1386 = vadd.f32 %v1315, %v1385
    %1387 = vdwg.mxu0
    %1388 = vmatprep.subr.mxu0 %v920
    %1389 = vmatpush1.msra.mxu0 %v919
    %1390 = vmatprep.subr.mxu0 %v928
    %1391 = vmatpush1.msra.mxu0 %v927
    %1392 = vmatprep.subr.mxu0 %v936
    %1393 = vmatpush1.msra.mxu0 %v935
    %1394 = vmatprep.subr.mxu0 %v944
    %1395 = vmatpush1.msra.mxu0 %v943
    %1396 = vmatprep.subr.mxu0 %v952
    %1397 = vmatpush1.msra.mxu0 %v951
    %1398 = vmatprep.subr.mxu0 %v960
    %1399 = vmatpush1.msra.mxu0 %v959
    %1400 = vmatprep.subr.mxu0 %v968
    %1401 = vmatpush1.msra.mxu0 %v967
    %1402 = vmatprep.subr.mxu0 %v976
    %1403 = vmatpush1.msra.mxu0 %v975
    %1404 = vmatprep.subr.mxu0 %v984
    %1405 = vmatpush1.msra.mxu0 %v983
    %1406 = vmatprep.subr.mxu0 %v992
    %1407 = vmatpush1.msra.mxu0 %v991
    %1408 = vmatprep.subr.mxu0 %v1000
    %1409 = vmatpush1.msra.mxu0 %v999
    %1410 = vmatprep.subr.mxu0 %v1008
    %1411 = vmatpush1.msra.mxu0 %v1007
    %1412 = vmatprep.subr.mxu0 %v1016
    %1413 = vmatpush1.msra.mxu0 %v1015
    %1414 = vmatprep.subr.mxu0 %v1024
    %1415 = vmatpush1.msra.mxu0 %v1023
    %1416 = vmatprep.subr.mxu0 %v1032
    %1417 = vmatpush1.msra.mxu0 %v1031
    %1418 = vmatprep.subr.mxu0 %v1040
    %1419 = vmatpush1.msra.mxu0 %v1039
    %1420 = vmatprep.subr.mxu0 %v1048
    %1421 = vmatpush1.msra.mxu0 %v1047
    %1422 = vmatprep.subr.mxu0 %v1056
    %1423 = vmatpush1.msra.mxu0 %v1055
    %1424 = vmatprep.subr.mxu0 %v1064
    %1425 = vmatpush1.msra.mxu0 %v1063
    %1426 = vmatprep.subr.mxu0 %v1072
    %1427 = vmatpush1.msra.mxu0 %v1071
    %1428 = vmatprep.subr.mxu0 %v1080
    %1429 = vmatpush1.msra.mxu0 %v1079
    %1430 = vmatprep.subr.mxu0 %v1088
    %1431 = vmatpush1.msra.mxu0 %v1087
    %1432 = vmatprep.subr.mxu0 %v1096
    %1433 = vmatpush1.msra.mxu0 %v1095
    %1434 = vmatprep.subr.mxu0 %v1104
    %1435 = vmatpush1.msra.mxu0 %v1103
    %1436 = vmatprep.subr.mxu0 %v1112
    %1437 = vmatpush1.msra.mxu0 %v1111
    %1438 = vmatprep.subr.mxu0 %v1120
    %1439 = vmatpush1.msra.mxu0 %v1119
    %1440 = vmatprep.subr.mxu0 %v1128
    %1441 = vmatpush1.msra.mxu0 %v1127
    %1442 = vmatprep.subr.mxu0 %v1136
    %1443 = vmatpush1.msra.mxu0 %v1135
    %1444 = vmatprep.subr.mxu0 %v1144
    %1445 = vmatpush1.msra.mxu0 %v1143
    %1446 = vmatprep.subr.mxu0 %v1152
    %1447 = vmatpush1.msra.mxu0 %v1151
    %1448 = vmatprep.subr.mxu0 %v1160
    %1449 = vmatpush1.msra.mxu0 %v1159
    %1450 = vmatprep.subr.mxu0 %v1168
    %1451 = vmatpush1.msra.mxu0 %v1167
    %1452 = vmatprep.mubr.f32.mxu0 %v150
    %1453 = vmatmul.mubr.f32.gmra.mrb[0].mxu0 %v149
    %v1454 = vpop.f32.mrb[0].mxu0
    %v1455 = vadd.f32 %v1384, %v1454
    %v1456 = vpop.f32.mrb[0].mxu0
    %v1457 = vadd.f32 %v1386, %v1456
    %1458 = vdwg.mxu0
    %1459 = vmatprep.subr.mxu0 %v154
    %1460 = vmatpush1.msra.mxu0 %v153
    %1461 = vmatprep.subr.mxu0 %v162
    %1462 = vmatpush1.msra.mxu0 %v161
    %1463 = vmatprep.subr.mxu0 %v170
    %1464 = vmatpush1.msra.mxu0 %v169
    %1465 = vmatprep.subr.mxu0 %v178
    %1466 = vmatpush1.msra.mxu0 %v177
    %1467 = vmatprep.subr.mxu0 %v186
    %1468 = vmatpush1.msra.mxu0 %v185
    %1469 = vmatprep.subr.mxu0 %v194
    %1470 = vmatpush1.msra.mxu0 %v193
    %1471 = vmatprep.subr.mxu0 %v202
    %1472 = vmatpush1.msra.mxu0 %v201
    %1473 = vmatprep.subr.mxu0 %v210
    %1474 = vmatpush1.msra.mxu0 %v209
    %1475 = vmatprep.subr.mxu0 %v218
    %1476 = vmatpush1.msra.mxu0 %v217
    %1477 = vmatprep.subr.mxu0 %v226
    %1478 = vmatpush1.msra.mxu0 %v225
    %1479 = vmatprep.subr.mxu0 %v234
    %1480 = vmatpush1.msra.mxu0 %v233
    %1481 = vmatprep.subr.mxu0 %v242
    %1482 = vmatpush1.msra.mxu0 %v241
    %1483 = vmatprep.subr.mxu0 %v250
    %1484 = vmatpush1.msra.mxu0 %v249
    %1485 = vmatprep.subr.mxu0 %v258
    %1486 = vmatpush1.msra.mxu0 %v257
    %1487 = vmatprep.subr.mxu0 %v266
    %1488 = vmatpush1.msra.mxu0 %v265
    %1489 = vmatprep.subr.mxu0 %v274
    %1490 = vmatpush1.msra.mxu0 %v273
    %1491 = vmatprep.subr.mxu0 %v282
    %1492 = vmatpush1.msra.mxu0 %v281
    %1493 = vmatprep.subr.mxu0 %v290
    %1494 = vmatpush1.msra.mxu0 %v289
    %1495 = vmatprep.subr.mxu0 %v298
    %1496 = vmatpush1.msra.mxu0 %v297
    %1497 = vmatprep.subr.mxu0 %v306
    %1498 = vmatpush1.msra.mxu0 %v305
    %1499 = vmatprep.subr.mxu0 %v314
    %1500 = vmatpush1.msra.mxu0 %v313
    %1501 = vmatprep.subr.mxu0 %v322
    %1502 = vmatpush1.msra.mxu0 %v321
    %1503 = vmatprep.subr.mxu0 %v330
    %1504 = vmatpush1.msra.mxu0 %v329
    %1505 = vmatprep.subr.mxu0 %v338
    %1506 = vmatpush1.msra.mxu0 %v337
    %1507 = vmatprep.subr.mxu0 %v346
    %1508 = vmatpush1.msra.mxu0 %v345
    %1509 = vmatprep.subr.mxu0 %v354
    %1510 = vmatpush1.msra.mxu0 %v353
    %1511 = vmatprep.subr.mxu0 %v362
    %1512 = vmatpush1.msra.mxu0 %v361
    %1513 = vmatprep.subr.mxu0 %v370
    %1514 = vmatpush1.msra.mxu0 %v369
    %1515 = vmatprep.subr.mxu0 %v378
    %1516 = vmatpush1.msra.mxu0 %v377
    %1517 = vmatprep.subr.mxu0 %v386
    %1518 = vmatpush1.msra.mxu0 %v385
    %1519 = vmatprep.subr.mxu0 %v394
    %1520 = vmatpush1.msra.mxu0 %v393
    %1521 = vmatprep.subr.mxu0 %v402
    %1522 = vmatpush1.msra.mxu0 %v401
    %1523 = vmatprep.mubr.f32.mxu0 %v144
    %1524 = vmatmul.mubr.f32.gmra.mrb[0].mxu0 %v143
    %v1525 = vpop.f32.mrb[0].mxu0
    %v1526 = vadd.f32 0.0, %v1525
    %v1527 = vpop.f32.mrb[0].mxu0
    %v1528 = vadd.f32 0.0, %v1527
    %1529 = vdwg.mxu0
    %1530 = vmatprep.subr.mxu0 %v410
    %1531 = vmatpush1.msra.mxu0 %v409
    %1532 = vmatprep.subr.mxu0 %v418
    %1533 = vmatpush1.msra.mxu0 %v417
    %1534 = vmatprep.subr.mxu0 %v426
    %1535 = vmatpush1.msra.mxu0 %v425
    %1536 = vmatprep.subr.mxu0 %v434
    %1537 = vmatpush1.msra.mxu0 %v433
    %1538 = vmatprep.subr.mxu0 %v442
    %1539 = vmatpush1.msra.mxu0 %v441
    %1540 = vmatprep.subr.mxu0 %v450
    %1541 = vmatpush1.msra.mxu0 %v449
    %1542 = vmatprep.subr.mxu0 %v458
    %1543 = vmatpush1.msra.mxu0 %v457
    %1544 = vmatprep.subr.mxu0 %v466
    %1545 = vmatpush1.msra.mxu0 %v465
    %1546 = vmatprep.subr.mxu0 %v474
    %1547 = vmatpush1.msra.mxu0 %v473
    %1548 = vmatprep.subr.mxu0 %v482
    %1549 = vmatpush1.msra.mxu0 %v481
    %1550 = vmatprep.subr.mxu0 %v490
    %1551 = vmatpush1.msra.mxu0 %v489
    %1552 = vmatprep.subr.mxu0 %v498
    %1553 = vmatpush1.msra.mxu0 %v497
    %1554 = vmatprep.subr.mxu0 %v506
    %1555 = vmatpush1.msra.mxu0 %v505
    %1556 = vmatprep.subr.mxu0 %v514
    %1557 = vmatpush1.msra.mxu0 %v513
    %1558 = vmatprep.subr.mxu0 %v522
    %1559 = vmatpush1.msra.mxu0 %v521
    %1560 = vmatprep.subr.mxu0 %v530
    %1561 = vmatpush1.msra.mxu0 %v529
    %1562 = vmatprep.subr.mxu0 %v538
    %1563 = vmatpush1.msra.mxu0 %v537
    %1564 = vmatprep.subr.mxu0 %v546
    %1565 = vmatpush1.msra.mxu0 %v545
    %1566 = vmatprep.subr.mxu0 %v554
    %1567 = vmatpush1.msra.mxu0 %v553
    %1568 = vmatprep.subr.mxu0 %v562
    %1569 = vmatpush1.msra.mxu0 %v561
    %1570 = vmatprep.subr.mxu0 %v570
    %1571 = vmatpush1.msra.mxu0 %v569
    %1572 = vmatprep.subr.mxu0 %v578
    %1573 = vmatpush1.msra.mxu0 %v577
    %1574 = vmatprep.subr.mxu0 %v586
    %1575 = vmatpush1.msra.mxu0 %v585
    %1576 = vmatprep.subr.mxu0 %v594
    %1577 = vmatpush1.msra.mxu0 %v593
    %1578 = vmatprep.subr.mxu0 %v602
    %1579 = vmatpush1.msra.mxu0 %v601
    %1580 = vmatprep.subr.mxu0 %v610
    %1581 = vmatpush1.msra.mxu0 %v609
    %1582 = vmatprep.subr.mxu0 %v618
    %1583 = vmatpush1.msra.mxu0 %v617
    %1584 = vmatprep.subr.mxu0 %v626
    %1585 = vmatpush1.msra.mxu0 %v625
    %1586 = vmatprep.subr.mxu0 %v634
    %1587 = vmatpush1.msra.mxu0 %v633
    %1588 = vmatprep.subr.mxu0 %v642
    %1589 = vmatpush1.msra.mxu0 %v641
    %1590 = vmatprep.subr.mxu0 %v650
    %1591 = vmatpush1.msra.mxu0 %v649
    %1592 = vmatprep.subr.mxu0 %v658
    %1593 = vmatpush1.msra.mxu0 %v657
    %1594 = vmatprep.mubr.f32.mxu0 %v146
    %1595 = vmatmul.mubr.f32.gmra.mrb[0].mxu0 %v145
    %v1596 = vpop.f32.mrb[0].mxu0
    %v1597 = vadd.f32 %v1526, %v1596
    %v1598 = vpop.f32.mrb[0].mxu0
    %v1599 = vadd.f32 %v1528, %v1598
    %1600 = vdwg.mxu0
    %1601 = vmatprep.subr.mxu0 %v666
    %1602 = vmatpush1.msra.mxu0 %v665
    %1603 = vmatprep.subr.mxu0 %v674
    %1604 = vmatpush1.msra.mxu0 %v673
    %1605 = vmatprep.subr.mxu0 %v682
    %1606 = vmatpush1.msra.mxu0 %v681
    %1607 = vmatprep.subr.mxu0 %v690
    %1608 = vmatpush1.msra.mxu0 %v689
    %1609 = vmatprep.subr.mxu0 %v698
    %1610 = vmatpush1.msra.mxu0 %v697
    %1611 = vmatprep.subr.mxu0 %v706
    %1612 = vmatpush1.msra.mxu0 %v705
    %1613 = vmatprep.subr.mxu0 %v714
    %1614 = vmatpush1.msra.mxu0 %v713
    %1615 = vmatprep.subr.mxu0 %v722
    %1616 = vmatpush1.msra.mxu0 %v721
    %1617 = vmatprep.subr.mxu0 %v730
    %1618 = vmatpush1.msra.mxu0 %v729
    %1619 = vmatprep.subr.mxu0 %v738
    %1620 = vmatpush1.msra.mxu0 %v737
    %1621 = vmatprep.subr.mxu0 %v746
    %1622 = vmatpush1.msra.mxu0 %v745
    %1623 = vmatprep.subr.mxu0 %v754
    %1624 = vmatpush1.msra.mxu0 %v753
    %1625 = vmatprep.subr.mxu0 %v762
    %1626 = vmatpush1.msra.mxu0 %v761
    %1627 = vmatprep.subr.mxu0 %v770
    %1628 = vmatpush1.msra.mxu0 %v769
    %1629 = vmatprep.subr.mxu0 %v778
    %1630 = vmatpush1.msra.mxu0 %v777
    %1631 = vmatprep.subr.mxu0 %v786
    %1632 = vmatpush1.msra.mxu0 %v785
    %1633 = vmatprep.subr.mxu0 %v794
    %1634 = vmatpush1.msra.mxu0 %v793
    %1635 = vmatprep.subr.mxu0 %v802
    %1636 = vmatpush1.msra.mxu0 %v801
    %1637 = vmatprep.subr.mxu0 %v810
    %1638 = vmatpush1.msra.mxu0 %v809
    %1639 = vmatprep.subr.mxu0 %v818
    %1640 = vmatpush1.msra.mxu0 %v817
    %1641 = vmatprep.subr.mxu0 %v826
    %1642 = vmatpush1.msra.mxu0 %v825
    %1643 = vmatprep.subr.mxu0 %v834
    %1644 = vmatpush1.msra.mxu0 %v833
    %1645 = vmatprep.subr.mxu0 %v842
    %1646 = vmatpush1.msra.mxu0 %v841
    %1647 = vmatprep.subr.mxu0 %v850
    %1648 = vmatpush1.msra.mxu0 %v849
    %1649 = vmatprep.subr.mxu0 %v858
    %1650 = vmatpush1.msra.mxu0 %v857
    %1651 = vmatprep.subr.mxu0 %v866
    %1652 = vmatpush1.msra.mxu0 %v865
    %1653 = vmatprep.subr.mxu0 %v874
    %1654 = vmatpush1.msra.mxu0 %v873
    %1655 = vmatprep.subr.mxu0 %v882
    %1656 = vmatpush1.msra.mxu0 %v881
    %1657 = vmatprep.subr.mxu0 %v890
    %1658 = vmatpush1.msra.mxu0 %v889
    %1659 = vmatprep.subr.mxu0 %v898
    %1660 = vmatpush1.msra.mxu0 %v897
    %1661 = vmatprep.subr.mxu0 %v906
    %1662 = vmatpush1.msra.mxu0 %v905
    %1663 = vmatprep.subr.mxu0 %v914
    %1664 = vmatpush1.msra.mxu0 %v913
    %1665 = vmatprep.mubr.f32.mxu0 %v148
    %1666 = vmatmul.mubr.f32.gmra.mrb[0].mxu0 %v147
    %v1667 = vpop.f32.mrb[0].mxu0
    %v1668 = vadd.f32 %v1597, %v1667
    %v1669 = vpop.f32.mrb[0].mxu0
    %v1670 = vadd.f32 %v1599, %v1669
    %1671 = vdwg.mxu0
    %1672 = vmatprep.subr.mxu0 %v922
    %1673 = vmatpush1.msra.mxu0 %v921
    %1674 = vmatprep.subr.mxu0 %v930
    %1675 = vmatpush1.msra.mxu0 %v929
    %1676 = vmatprep.subr.mxu0 %v938
    %1677 = vmatpush1.msra.mxu0 %v937
    %1678 = vmatprep.subr.mxu0 %v946
    %1679 = vmatpush1.msra.mxu0 %v945
    %1680 = vmatprep.subr.mxu0 %v954
    %1681 = vmatpush1.msra.mxu0 %v953
    %1682 = vmatprep.subr.mxu0 %v962
    %1683 = vmatpush1.msra.mxu0 %v961
    %1684 = vmatprep.subr.mxu0 %v970
    %1685 = vmatpush1.msra.mxu0 %v969
    %1686 = vmatprep.subr.mxu0 %v978
    %1687 = vmatpush1.msra.mxu0 %v977
    %1688 = vmatprep.subr.mxu0 %v986
    %1689 = vmatpush1.msra.mxu0 %v985
    %1690 = vmatprep.subr.mxu0 %v994
    %1691 = vmatpush1.msra.mxu0 %v993
    %1692 = vmatprep.subr.mxu0 %v1002
    %1693 = vmatpush1.msra.mxu0 %v1001
    %1694 = vmatprep.subr.mxu0 %v1010
    %1695 = vmatpush1.msra.mxu0 %v1009
    %1696 = vmatprep.subr.mxu0 %v1018
    %1697 = vmatpush1.msra.mxu0 %v1017
    %1698 = vmatprep.subr.mxu0 %v1026
    %1699 = vmatpush1.msra.mxu0 %v1025
    %1700 = vmatprep.subr.mxu0 %v1034
    %1701 = vmatpush1.msra.mxu0 %v1033
    %1702 = vmatprep.subr.mxu0 %v1042
    %1703 = vmatpush1.msra.mxu0 %v1041
    %1704 = vmatprep.subr.mxu0 %v1050
    %1705 = vmatpush1.msra.mxu0 %v1049
    %1706 = vmatprep.subr.mxu0 %v1058
    %1707 = vmatpush1.msra.mxu0 %v1057
    %1708 = vmatprep.subr.mxu0 %v1066
    %1709 = vmatpush1.msra.mxu0 %v1065
    %1710 = vmatprep.subr.mxu0 %v1074
    %1711 = vmatpush1.msra.mxu0 %v1073
    %1712 = vmatprep.subr.mxu0 %v1082
    %1713 = vmatpush1.msra.mxu0 %v1081
    %1714 = vmatprep.subr.mxu0 %v1090
    %1715 = vmatpush1.msra.mxu0 %v1089
    %1716 = vmatprep.subr.mxu0 %v1098
    %1717 = vmatpush1.msra.mxu0 %v1097
    %1718 = vmatprep.subr.mxu0 %v1106
    %1719 = vmatpush1.msra.mxu0 %v1105
    %1720 = vmatprep.subr.mxu0 %v1114
    %1721 = vmatpush1.msra.mxu0 %v1113
    %1722 = vmatprep.subr.mxu0 %v1122
    %1723 = vmatpush1.msra.mxu0 %v1121
    %1724 = vmatprep.subr.mxu0 %v1130
    %1725 = vmatpush1.msra.mxu0 %v1129
    %1726 = vmatprep.subr.mxu0 %v1138
    %1727 = vmatpush1.msra.mxu0 %v1137
    %1728 = vmatprep.subr.mxu0 %v1146
    %1729 = vmatpush1.msra.mxu0 %v1145
    %1730 = vmatprep.subr.mxu0 %v1154
    %1731 = vmatpush1.msra.mxu0 %v1153
    %1732 = vmatprep.subr.mxu0 %v1162
    %1733 = vmatpush1.msra.mxu0 %v1161
    %1734 = vmatprep.subr.mxu0 %v1170
    %1735 = vmatpush1.msra.mxu0 %v1169
    %1736 = vmatprep.mubr.f32.mxu0 %v150
    %1737 = vmatmul.mubr.f32.gmra.mrb[0].mxu0 %v149
    %v1738 = vpop.f32.mrb[0].mxu0
    %v1739 = vadd.f32 %v1668, %v1738
    %v1740 = vpop.f32.mrb[0].mxu0
    %v1741 = vadd.f32 %v1670, %v1740
    %1742 = vdwg.mxu0
    %1743 = vmatprep.subr.mxu0 %v156
    %1744 = vmatpush1.msra.mxu0 %v155
    %1745 = vmatprep.subr.mxu0 %v164
    %1746 = vmatpush1.msra.mxu0 %v163
    %1747 = vmatprep.subr.mxu0 %v172
    %1748 = vmatpush1.msra.mxu0 %v171
    %1749 = vmatprep.subr.mxu0 %v180
    %1750 = vmatpush1.msra.mxu0 %v179
    %1751 = vmatprep.subr.mxu0 %v188
    %1752 = vmatpush1.msra.mxu0 %v187
    %1753 = vmatprep.subr.mxu0 %v196
    %1754 = vmatpush1.msra.mxu0 %v195
    %1755 = vmatprep.subr.mxu0 %v204
    %1756 = vmatpush1.msra.mxu0 %v203
    %1757 = vmatprep.subr.mxu0 %v212
    %1758 = vmatpush1.msra.mxu0 %v211
    %1759 = vmatprep.subr.mxu0 %v220
    %1760 = vmatpush1.msra.mxu0 %v219
    %1761 = vmatprep.subr.mxu0 %v228
    %1762 = vmatpush1.msra.mxu0 %v227
    %1763 = vmatprep.subr.mxu0 %v236
    %1764 = vmatpush1.msra.mxu0 %v235
    %1765 = vmatprep.subr.mxu0 %v244
    %1766 = vmatpush1.msra.mxu0 %v243
    %1767 = vmatprep.subr.mxu0 %v252
    %1768 = vmatpush1.msra.mxu0 %v251
    %1769 = vmatprep.subr.mxu0 %v260
    %1770 = vmatpush1.msra.mxu0 %v259
    %1771 = vmatprep.subr.mxu0 %v268
    %1772 = vmatpush1.msra.mxu0 %v267
    %1773 = vmatprep.subr.mxu0 %v276
    %1774 = vmatpush1.msra.mxu0 %v275
    %1775 = vmatprep.subr.mxu0 %v284
    %1776 = vmatpush1.msra.mxu0 %v283
    %1777 = vmatprep.subr.mxu0 %v292
    %1778 = vmatpush1.msra.mxu0 %v291
    %1779 = vmatprep.subr.mxu0 %v300
    %1780 = vmatpush1.msra.mxu0 %v299
    %1781 = vmatprep.subr.mxu0 %v308
    %1782 = vmatpush1.msra.mxu0 %v307
    %1783 = vmatprep.subr.mxu0 %v316
    %1784 = vmatpush1.msra.mxu0 %v315
    %1785 = vmatprep.subr.mxu0 %v324
    %1786 = vmatpush1.msra.mxu0 %v323
    %1787 = vmatprep.subr.mxu0 %v332
    %1788 = vmatpush1.msra.mxu0 %v331
    %1789 = vmatprep.subr.mxu0 %v340
    %1790 = vmatpush1.msra.mxu0 %v339
    %1791 = vmatprep.subr.mxu0 %v348
    %1792 = vmatpush1.msra.mxu0 %v347
    %1793 = vmatprep.subr.mxu0 %v356
    %1794 = vmatpush1.msra.mxu0 %v355
    %1795 = vmatprep.subr.mxu0 %v364
    %1796 = vmatpush1.msra.mxu0 %v363
    %1797 = vmatprep.subr.mxu0 %v372
    %1798 = vmatpush1.msra.mxu0 %v371
    %1799 = vmatprep.subr.mxu0 %v380
    %1800 = vmatpush1.msra.mxu0 %v379
    %1801 = vmatprep.subr.mxu0 %v388
    %1802 = vmatpush1.msra.mxu0 %v387
    %1803 = vmatprep.subr.mxu0 %v396
    %1804 = vmatpush1.msra.mxu0 %v395
    %1805 = vmatprep.subr.mxu0 %v404
    %1806 = vmatpush1.msra.mxu0 %v403
    %1807 = vmatprep.mubr.f32.mxu0 %v144
    %1808 = vmatmul.mubr.f32.gmra.mrb[0].mxu0 %v143
    %v1809 = vpop.f32.mrb[0].mxu0
    %v1810 = vadd.f32 0.0, %v1809
    %v1811 = vpop.f32.mrb[0].mxu0
    %v1812 = vadd.f32 0.0, %v1811
    %1813 = vdwg.mxu0
    %1814 = vmatprep.subr.mxu0 %v412
    %1815 = vmatpush1.msra.mxu0 %v411
    %1816 = vmatprep.subr.mxu0 %v420
    %1817 = vmatpush1.msra.mxu0 %v419
    %1818 = vmatprep.subr.mxu0 %v428
    %1819 = vmatpush1.msra.mxu0 %v427
    %1820 = vmatprep.subr.mxu0 %v436
    %1821 = vmatpush1.msra.mxu0 %v435
    %1822 = vmatprep.subr.mxu0 %v444
    %1823 = vmatpush1.msra.mxu0 %v443
    %1824 = vmatprep.subr.mxu0 %v452
    %1825 = vmatpush1.msra.mxu0 %v451
    %1826 = vmatprep.subr.mxu0 %v460
    %1827 = vmatpush1.msra.mxu0 %v459
    %1828 = vmatprep.subr.mxu0 %v468
    %1829 = vmatpush1.msra.mxu0 %v467
    %1830 = vmatprep.subr.mxu0 %v476
    %1831 = vmatpush1.msra.mxu0 %v475
    %1832 = vmatprep.subr.mxu0 %v484
    %1833 = vmatpush1.msra.mxu0 %v483
    %1834 = vmatprep.subr.mxu0 %v492
    %1835 = vmatpush1.msra.mxu0 %v491
    %1836 = vmatprep.subr.mxu0 %v500
    %1837 = vmatpush1.msra.mxu0 %v499
    %1838 = vmatprep.subr.mxu0 %v508
    %1839 = vmatpush1.msra.mxu0 %v507
    %1840 = vmatprep.subr.mxu0 %v516
    %1841 = vmatpush1.msra.mxu0 %v515
    %1842 = vmatprep.subr.mxu0 %v524
    %1843 = vmatpush1.msra.mxu0 %v523
    %1844 = vmatprep.subr.mxu0 %v532
    %1845 = vmatpush1.msra.mxu0 %v531
    %1846 = vmatprep.subr.mxu0 %v540
    %1847 = vmatpush1.msra.mxu0 %v539
    %1848 = vmatprep.subr.mxu0 %v548
    %1849 = vmatpush1.msra.mxu0 %v547
    %1850 = vmatprep.subr.mxu0 %v556
    %1851 = vmatpush1.msra.mxu0 %v555
    %1852 = vmatprep.subr.mxu0 %v564
    %1853 = vmatpush1.msra.mxu0 %v563
    %1854 = vmatprep.subr.mxu0 %v572
    %1855 = vmatpush1.msra.mxu0 %v571
    %1856 = vmatprep.subr.mxu0 %v580
    %1857 = vmatpush1.msra.mxu0 %v579
    %1858 = vmatprep.subr.mxu0 %v588
    %1859 = vmatpush1.msra.mxu0 %v587
    %1860 = vmatprep.subr.mxu0 %v596
    %1861 = vmatpush1.msra.mxu0 %v595
    %1862 = vmatprep.subr.mxu0 %v604
    %1863 = vmatpush1.msra.mxu0 %v603
    %1864 = vmatprep.subr.mxu0 %v612
    %1865 = vmatpush1.msra.mxu0 %v611
    %1866 = vmatprep.subr.mxu0 %v620
    %1867 = vmatpush1.msra.mxu0 %v619
    %1868 = vmatprep.subr.mxu0 %v628
    %1869 = vmatpush1.msra.mxu0 %v627
    %1870 = vmatprep.subr.mxu0 %v636
    %1871 = vmatpush1.msra.mxu0 %v635
    %1872 = vmatprep.subr.mxu0 %v644
    %1873 = vmatpush1.msra.mxu0 %v643
    %1874 = vmatprep.subr.mxu0 %v652
    %1875 = vmatpush1.msra.mxu0 %v651
    %1876 = vmatprep.subr.mxu0 %v660
    %1877 = vmatpush1.msra.mxu0 %v659
    %1878 = vmatprep.mubr.f32.mxu0 %v146
    %1879 = vmatmul.mubr.f32.gmra.mrb[0].mxu0 %v145
    %v1880 = vpop.f32.mrb[0].mxu0
    %v1881 = vadd.f32 %v1810, %v1880
    %v1882 = vpop.f32.mrb[0].mxu0
    %v1883 = vadd.f32 %v1812, %v1882
    %1884 = vdwg.mxu0
    %1885 = vmatprep.subr.mxu0 %v668
    %1886 = vmatpush1.msra.mxu0 %v667
    %1887 = vmatprep.subr.mxu0 %v676
    %1888 = vmatpush1.msra.mxu0 %v675
    %1889 = vmatprep.subr.mxu0 %v684
    %1890 = vmatpush1.msra.mxu0 %v683
    %1891 = vmatprep.subr.mxu0 %v692
    %1892 = vmatpush1.msra.mxu0 %v691
    %1893 = vmatprep.subr.mxu0 %v700
    %1894 = vmatpush1.msra.mxu0 %v699
    %1895 = vmatprep.subr.mxu0 %v708
    %1896 = vmatpush1.msra.mxu0 %v707
    %1897 = vmatprep.subr.mxu0 %v716
    %1898 = vmatpush1.msra.mxu0 %v715
    %1899 = vmatprep.subr.mxu0 %v724
    %1900 = vmatpush1.msra.mxu0 %v723
    %1901 = vmatprep.subr.mxu0 %v732
    %1902 = vmatpush1.msra.mxu0 %v731
    %1903 = vmatprep.subr.mxu0 %v740
    %1904 = vmatpush1.msra.mxu0 %v739
    %1905 = vmatprep.subr.mxu0 %v748
    %1906 = vmatpush1.msra.mxu0 %v747
    %1907 = vmatprep.subr.mxu0 %v756
    %1908 = vmatpush1.msra.mxu0 %v755
    %1909 = vmatprep.subr.mxu0 %v764
    %1910 = vmatpush1.msra.mxu0 %v763
    %1911 = vmatprep.subr.mxu0 %v772
    %1912 = vmatpush1.msra.mxu0 %v771
    %1913 = vmatprep.subr.mxu0 %v780
    %1914 = vmatpush1.msra.mxu0 %v779
    %1915 = vmatprep.subr.mxu0 %v788
    %1916 = vmatpush1.msra.mxu0 %v787
    %1917 = vmatprep.subr.mxu0 %v796
    %1918 = vmatpush1.msra.mxu0 %v795
    %1919 = vmatprep.subr.mxu0 %v804
    %1920 = vmatpush1.msra.mxu0 %v803
    %1921 = vmatprep.subr.mxu0 %v812
    %1922 = vmatpush1.msra.mxu0 %v811
    %1923 = vmatprep.subr.mxu0 %v820
    %1924 = vmatpush1.msra.mxu0 %v819
    %1925 = vmatprep.subr.mxu0 %v828
    %1926 = vmatpush1.msra.mxu0 %v827
    %1927 = vmatprep.subr.mxu0 %v836
    %1928 = vmatpush1.msra.mxu0 %v835
    %1929 = vmatprep.subr.mxu0 %v844
    %1930 = vmatpush1.msra.mxu0 %v843
    %1931 = vmatprep.subr.mxu0 %v852
    %1932 = vmatpush1.msra.mxu0 %v851
    %1933 = vmatprep.subr.mxu0 %v860
    %1934 = vmatpush1.msra.mxu0 %v859
    %1935 = vmatprep.subr.mxu0 %v868
    %1936 = vmatpush1.msra.mxu0 %v867
    %1937 = vmatprep.subr.mxu0 %v876
    %1938 = vmatpush1.msra.mxu0 %v875
    %1939 = vmatprep.subr.mxu0 %v884
    %1940 = vmatpush1.msra.mxu0 %v883
    %1941 = vmatprep.subr.mxu0 %v892
    %1942 = vmatpush1.msra.mxu0 %v891
    %1943 = vmatprep.subr.mxu0 %v900
    %1944 = vmatpush1.msra.mxu0 %v899
    %1945 = vmatprep.subr.mxu0 %v908
    %1946 = vmatpush1.msra.mxu0 %v907
    %1947 = vmatprep.subr.mxu0 %v916
    %1948 = vmatpush1.msra.mxu0 %v915
    %1949 = vmatprep.mubr.f32.mxu0 %v148
    %1950 = vmatmul.mubr.f32.gmra.mrb[0].mxu0 %v147
    %v1951 = vpop.f32.mrb[0].mxu0
    %v1952 = vadd.f32 %v1881, %v1951
    %v1953 = vpop.f32.mrb[0].mxu0
    %v1954 = vadd.f32 %v1883, %v1953
    %1955 = vdwg.mxu0
    %1956 = vmatprep.subr.mxu0 %v924
    %1957 = vmatpush1.msra.mxu0 %v923
    %1958 = vmatprep.subr.mxu0 %v932
    %1959 = vmatpush1.msra.mxu0 %v931
    %1960 = vmatprep.subr.mxu0 %v940
    %1961 = vmatpush1.msra.mxu0 %v939
    %1962 = vmatprep.subr.mxu0 %v948
    %1963 = vmatpush1.msra.mxu0 %v947
    %1964 = vmatprep.subr.mxu0 %v956
    %1965 = vmatpush1.msra.mxu0 %v955
    %1966 = vmatprep.subr.mxu0 %v964
    %1967 = vmatpush1.msra.mxu0 %v963
    %1968 = vmatprep.subr.mxu0 %v972
    %1969 = vmatpush1.msra.mxu0 %v971
    %1970 = vmatprep.subr.mxu0 %v980
    %1971 = vmatpush1.msra.mxu0 %v979
    %1972 = vmatprep.subr.mxu0 %v988
    %1973 = vmatpush1.msra.mxu0 %v987
    %1974 = vmatprep.subr.mxu0 %v996
    %1975 = vmatpush1.msra.mxu0 %v995
    %1976 = vmatprep.subr.mxu0 %v1004
    %1977 = vmatpush1.msra.mxu0 %v1003
    %1978 = vmatprep.subr.mxu0 %v1012
    %1979 = vmatpush1.msra.mxu0 %v1011
    %1980 = vmatprep.subr.mxu0 %v1020
    %1981 = vmatpush1.msra.mxu0 %v1019
    %1982 = vmatprep.subr.mxu0 %v1028
    %1983 = vmatpush1.msra.mxu0 %v1027
    %1984 = vmatprep.subr.mxu0 %v1036
    %1985 = vmatpush1.msra.mxu0 %v1035
    %1986 = vmatprep.subr.mxu0 %v1044
    %1987 = vmatpush1.msra.mxu0 %v1043
    %1988 = vmatprep.subr.mxu0 %v1052
    %1989 = vmatpush1.msra.mxu0 %v1051
    %1990 = vmatprep.subr.mxu0 %v1060
    %1991 = vmatpush1.msra.mxu0 %v1059
    %1992 = vmatprep.subr.mxu0 %v1068
    %1993 = vmatpush1.msra.mxu0 %v1067
    %1994 = vmatprep.subr.mxu0 %v1076
    %1995 = vmatpush1.msra.mxu0 %v1075
    %1996 = vmatprep.subr.mxu0 %v1084
    %1997 = vmatpush1.msra.mxu0 %v1083
    %1998 = vmatprep.subr.mxu0 %v1092
    %1999 = vmatpush1.msra.mxu0 %v1091
    %2000 = vmatprep.subr.mxu0 %v1100
    %2001 = vmatpush1.msra.mxu0 %v1099
    %2002 = vmatprep.subr.mxu0 %v1108
    %2003 = vmatpush1.msra.mxu0 %v1107
    %2004 = vmatprep.subr.mxu0 %v1116
    %2005 = vmatpush1.msra.mxu0 %v1115
    %2006 = vmatprep.subr.mxu0 %v1124
    %2007 = vmatpush1.msra.mxu0 %v1123
    %2008 = vmatprep.subr.mxu0 %v1132
    %2009 = vmatpush1.msra.mxu0 %v1131
    %2010 = vmatprep.subr.mxu0 %v1140
    %2011 = vmatpush1.msra.mxu0 %v1139
    %2012 = vmatprep.subr.mxu0 %v1148
    %2013 = vmatpush1.msra.mxu0 %v1147
    %2014 = vmatprep.subr.mxu0 %v1156
    %2015 = vmatpush1.msra.mxu0 %v1155
    %2016 = vmatprep.subr.mxu0 %v1164
    %2017 = vmatpush1.msra.mxu0 %v1163
    %2018 = vmatprep.subr.mxu0 %v1172
    %2019 = vmatpush1.msra.mxu0 %v1171
    %2020 = vmatprep.mubr.f32.mxu0 %v150
    %2021 = vmatmul.mubr.f32.gmra.mrb[0].mxu0 %v149
    %v2022 = vpop.f32.mrb[0].mxu0
    %v2023 = vadd.f32 %v1952, %v2022
    %v2024 = vpop.f32.mrb[0].mxu0
    %v2025 = vadd.f32 %v1954, %v2024
    %2026 = vdwg.mxu0
    %2027 = vmatprep.subr.mxu0 %v158
    %2028 = vmatpush1.msra.mxu0 %v157
    %2029 = vmatprep.subr.mxu0 %v166
    %2030 = vmatpush1.msra.mxu0 %v165
    %2031 = vmatprep.subr.mxu0 %v174
    %2032 = vmatpush1.msra.mxu0 %v173
    %2033 = vmatprep.subr.mxu0 %v182
    %2034 = vmatpush1.msra.mxu0 %v181
    %2035 = vmatprep.subr.mxu0 %v190
    %2036 = vmatpush1.msra.mxu0 %v189
    %2037 = vmatprep.subr.mxu0 %v198
    %2038 = vmatpush1.msra.mxu0 %v197
    %2039 = vmatprep.subr.mxu0 %v206
    %2040 = vmatpush1.msra.mxu0 %v205
    %2041 = vmatprep.subr.mxu0 %v214
    %2042 = vmatpush1.msra.mxu0 %v213
    %2043 = vmatprep.subr.mxu0 %v222
    %2044 = vmatpush1.msra.mxu0 %v221
    %2045 = vmatprep.subr.mxu0 %v230
    %2046 = vmatpush1.msra.mxu0 %v229
    %2047 = vmatprep.subr.mxu0 %v238
    %2048 = vmatpush1.msra.mxu0 %v237
    %2049 = vmatprep.subr.mxu0 %v246
    %2050 = vmatpush1.msra.mxu0 %v245
    %2051 = vmatprep.subr.mxu0 %v254
    %2052 = vmatpush1.msra.mxu0 %v253
    %2053 = vmatprep.subr.mxu0 %v262
    %2054 = vmatpush1.msra.mxu0 %v261
    %2055 = vmatprep.subr.mxu0 %v270
    %2056 = vmatpush1.msra.mxu0 %v269
    %2057 = vmatprep.subr.mxu0 %v278
    %2058 = vmatpush1.msra.mxu0 %v277
    %2059 = vmatprep.subr.mxu0 %v286
    %2060 = vmatpush1.msra.mxu0 %v285
    %2061 = vmatprep.subr.mxu0 %v294
    %2062 = vmatpush1.msra.mxu0 %v293
    %2063 = vmatprep.subr.mxu0 %v302
    %2064 = vmatpush1.msra.mxu0 %v301
    %2065 = vmatprep.subr.mxu0 %v310
    %2066 = vmatpush1.msra.mxu0 %v309
    %2067 = vmatprep.subr.mxu0 %v318
    %2068 = vmatpush1.msra.mxu0 %v317
    %2069 = vmatprep.subr.mxu0 %v326
    %2070 = vmatpush1.msra.mxu0 %v325
    %2071 = vmatprep.subr.mxu0 %v334
    %2072 = vmatpush1.msra.mxu0 %v333
    %2073 = vmatprep.subr.mxu0 %v342
    %2074 = vmatpush1.msra.mxu0 %v341
    %2075 = vmatprep.subr.mxu0 %v350
    %2076 = vmatpush1.msra.mxu0 %v349
    %2077 = vmatprep.subr.mxu0 %v358
    %2078 = vmatpush1.msra.mxu0 %v357
    %2079 = vmatprep.subr.mxu0 %v366
    %2080 = vmatpush1.msra.mxu0 %v365
    %2081 = vmatprep.subr.mxu0 %v374
    %2082 = vmatpush1.msra.mxu0 %v373
    %2083 = vmatprep.subr.mxu0 %v382
    %2084 = vmatpush1.msra.mxu0 %v381
    %2085 = vmatprep.subr.mxu0 %v390
    %2086 = vmatpush1.msra.mxu0 %v389
    %2087 = vmatprep.subr.mxu0 %v398
    %2088 = vmatpush1.msra.mxu0 %v397
    %2089 = vmatprep.subr.mxu0 %v406
    %2090 = vmatpush1.msra.mxu0 %v405
    %2091 = vmatprep.mubr.f32.mxu0 %v144
    %2092 = vmatmul.mubr.f32.gmra.mrb[0].mxu0 %v143
    %v2093 = vpop.f32.mrb[0].mxu0
    %v2094 = vadd.f32 0.0, %v2093
    %v2095 = vpop.f32.mrb[0].mxu0
    %v2096 = vadd.f32 0.0, %v2095
    %2097 = vdwg.mxu0
    %2098 = vmatprep.subr.mxu0 %v414
    %2099 = vmatpush1.msra.mxu0 %v413
    %2100 = vmatprep.subr.mxu0 %v422
    %2101 = vmatpush1.msra.mxu0 %v421
    %2102 = vmatprep.subr.mxu0 %v430
    %2103 = vmatpush1.msra.mxu0 %v429
    %2104 = vmatprep.subr.mxu0 %v438
    %2105 = vmatpush1.msra.mxu0 %v437
    %2106 = vmatprep.subr.mxu0 %v446
    %2107 = vmatpush1.msra.mxu0 %v445
    %2108 = vmatprep.subr.mxu0 %v454
    %2109 = vmatpush1.msra.mxu0 %v453
    %2110 = vmatprep.subr.mxu0 %v462
    %2111 = vmatpush1.msra.mxu0 %v461
    %2112 = vmatprep.subr.mxu0 %v470
    %2113 = vmatpush1.msra.mxu0 %v469
    %2114 = vmatprep.subr.mxu0 %v478
    %2115 = vmatpush1.msra.mxu0 %v477
    %2116 = vmatprep.subr.mxu0 %v486
    %2117 = vmatpush1.msra.mxu0 %v485
    %2118 = vmatprep.subr.mxu0 %v494
    %2119 = vmatpush1.msra.mxu0 %v493
    %2120 = vmatprep.subr.mxu0 %v502
    %2121 = vmatpush1.msra.mxu0 %v501
    %2122 = vmatprep.subr.mxu0 %v510
    %2123 = vmatpush1.msra.mxu0 %v509
    %2124 = vmatprep.subr.mxu0 %v518
    %2125 = vmatpush1.msra.mxu0 %v517
    %2126 = vmatprep.subr.mxu0 %v526
    %2127 = vmatpush1.msra.mxu0 %v525
    %2128 = vmatprep.subr.mxu0 %v534
    %2129 = vmatpush1.msra.mxu0 %v533
    %2130 = vmatprep.subr.mxu0 %v542
    %2131 = vmatpush1.msra.mxu0 %v541
    %2132 = vmatprep.subr.mxu0 %v550
    %2133 = vmatpush1.msra.mxu0 %v549
    %2134 = vmatprep.subr.mxu0 %v558
    %2135 = vmatpush1.msra.mxu0 %v557
    %2136 = vmatprep.subr.mxu0 %v566
    %2137 = vmatpush1.msra.mxu0 %v565
    %2138 = vmatprep.subr.mxu0 %v574
    %2139 = vmatpush1.msra.mxu0 %v573
    %2140 = vmatprep.subr.mxu0 %v582
    %2141 = vmatpush1.msra.mxu0 %v581
    %2142 = vmatprep.subr.mxu0 %v590
    %2143 = vmatpush1.msra.mxu0 %v589
    %2144 = vmatprep.subr.mxu0 %v598
    %2145 = vmatpush1.msra.mxu0 %v597
    %2146 = vmatprep.subr.mxu0 %v606
    %2147 = vmatpush1.msra.mxu0 %v605
    %2148 = vmatprep.subr.mxu0 %v614
    %2149 = vmatpush1.msra.mxu0 %v613
    %2150 = vmatprep.subr.mxu0 %v622
    %2151 = vmatpush1.msra.mxu0 %v621
    %2152 = vmatprep.subr.mxu0 %v630
    %2153 = vmatpush1.msra.mxu0 %v629
    %2154 = vmatprep.subr.mxu0 %v638
    %2155 = vmatpush1.msra.mxu0 %v637
    %2156 = vmatprep.subr.mxu0 %v646
    %2157 = vmatpush1.msra.mxu0 %v645
    %2158 = vmatprep.subr.mxu0 %v654
    %2159 = vmatpush1.msra.mxu0 %v653
    %2160 = vmatprep.subr.mxu0 %v662
    %2161 = vmatpush1.msra.mxu0 %v661
    %2162 = vmatprep.mubr.f32.mxu0 %v146
    %2163 = vmatmul.mubr.f32.gmra.mrb[0].mxu0 %v145
    %v2164 = vpop.f32.mrb[0].mxu0
    %v2165 = vadd.f32 %v2094, %v2164
    %v2166 = vpop.f32.mrb[0].mxu0
    %v2167 = vadd.f32 %v2096, %v2166
    %2168 = vdwg.mxu0
    %2169 = vmatprep.subr.mxu0 %v670
    %2170 = vmatpush1.msra.mxu0 %v669
    %2171 = vmatprep.subr.mxu0 %v678
    %2172 = vmatpush1.msra.mxu0 %v677
    %2173 = vmatprep.subr.mxu0 %v686
    %2174 = vmatpush1.msra.mxu0 %v685
    %2175 = vmatprep.subr.mxu0 %v694
    %2176 = vmatpush1.msra.mxu0 %v693
    %2177 = vmatprep.subr.mxu0 %v702
    %2178 = vmatpush1.msra.mxu0 %v701
    %2179 = vmatprep.subr.mxu0 %v710
    %2180 = vmatpush1.msra.mxu0 %v709
    %2181 = vmatprep.subr.mxu0 %v718
    %2182 = vmatpush1.msra.mxu0 %v717
    %2183 = vmatprep.subr.mxu0 %v726
    %2184 = vmatpush1.msra.mxu0 %v725
    %2185 = vmatprep.subr.mxu0 %v734
    %2186 = vmatpush1.msra.mxu0 %v733
    %2187 = vmatprep.subr.mxu0 %v742
    %2188 = vmatpush1.msra.mxu0 %v741
    %2189 = vmatprep.subr.mxu0 %v750
    %2190 = vmatpush1.msra.mxu0 %v749
    %2191 = vmatprep.subr.mxu0 %v758
    %2192 = vmatpush1.msra.mxu0 %v757
    %2193 = vmatprep.subr.mxu0 %v766
    %2194 = vmatpush1.msra.mxu0 %v765
    %2195 = vmatprep.subr.mxu0 %v774
    %2196 = vmatpush1.msra.mxu0 %v773
    %2197 = vmatprep.subr.mxu0 %v782
    %2198 = vmatpush1.msra.mxu0 %v781
    %2199 = vmatprep.subr.mxu0 %v790
    %2200 = vmatpush1.msra.mxu0 %v789
    %2201 = vmatprep.subr.mxu0 %v798
    %2202 = vmatpush1.msra.mxu0 %v797
    %2203 = vmatprep.subr.mxu0 %v806
    %2204 = vmatpush1.msra.mxu0 %v805
    %2205 = vmatprep.subr.mxu0 %v814
    %2206 = vmatpush1.msra.mxu0 %v813
    %2207 = vmatprep.subr.mxu0 %v822
    %2208 = vmatpush1.msra.mxu0 %v821
    %2209 = vmatprep.subr.mxu0 %v830
    %2210 = vmatpush1.msra.mxu0 %v829
    %2211 = vmatprep.subr.mxu0 %v838
    %2212 = vmatpush1.msra.mxu0 %v837
    %2213 = vmatprep.subr.mxu0 %v846
    %2214 = vmatpush1.msra.mxu0 %v845
    %2215 = vmatprep.subr.mxu0 %v854
    %2216 = vmatpush1.msra.mxu0 %v853
    %2217 = vmatprep.subr.mxu0 %v862
    %2218 = vmatpush1.msra.mxu0 %v861
    %2219 = vmatprep.subr.mxu0 %v870
    %2220 = vmatpush1.msra.mxu0 %v869
    %2221 = vmatprep.subr.mxu0 %v878
    %2222 = vmatpush1.msra.mxu0 %v877
    %2223 = vmatprep.subr.mxu0 %v886
    %2224 = vmatpush1.msra.mxu0 %v885
    %2225 = vmatprep.subr.mxu0 %v894
    %2226 = vmatpush1.msra.mxu0 %v893
    %2227 = vmatprep.subr.mxu0 %v902
    %2228 = vmatpush1.msra.mxu0 %v901
    %2229 = vmatprep.subr.mxu0 %v910
    %2230 = vmatpush1.msra.mxu0 %v909
    %2231 = vmatprep.subr.mxu0 %v918
    %2232 = vmatpush1.msra.mxu0 %v917
    %2233 = vmatprep.mubr.f32.mxu0 %v148
    %2234 = vmatmul.mubr.f32.gmra.mrb[0].mxu0 %v147
    %v2235 = vpop.f32.mrb[0].mxu0
    %v2236 = vadd.f32 %v2165, %v2235
    %v2237 = vpop.f32.mrb[0].mxu0
    %v2238 = vadd.f32 %v2167, %v2237
    %2239 = vdwg.mxu0
    %2240 = vmatprep.subr.mxu0 %v926
    %2241 = vmatpush1.msra.mxu0 %v925
    %2242 = vmatprep.subr.mxu0 %v934
    %2243 = vmatpush1.msra.mxu0 %v933
    %2244 = vmatprep.subr.mxu0 %v942
    %2245 = vmatpush1.msra.mxu0 %v941
    %2246 = vmatprep.subr.mxu0 %v950
    %2247 = vmatpush1.msra.mxu0 %v949
    %2248 = vmatprep.subr.mxu0 %v958
    %2249 = vmatpush1.msra.mxu0 %v957
    %2250 = vmatprep.subr.mxu0 %v966
    %2251 = vmatpush1.msra.mxu0 %v965
    %2252 = vmatprep.subr.mxu0 %v974
    %2253 = vmatpush1.msra.mxu0 %v973
    %2254 = vmatprep.subr.mxu0 %v982
    %2255 = vmatpush1.msra.mxu0 %v981
    %2256 = vmatprep.subr.mxu0 %v990
    %2257 = vmatpush1.msra.mxu0 %v989
    %2258 = vmatprep.subr.mxu0 %v998
    %2259 = vmatpush1.msra.mxu0 %v997
    %2260 = vmatprep.subr.mxu0 %v1006
    %2261 = vmatpush1.msra.mxu0 %v1005
    %2262 = vmatprep.subr.mxu0 %v1014
    %2263 = vmatpush1.msra.mxu0 %v1013
    %2264 = vmatprep.subr.mxu0 %v1022
    %2265 = vmatpush1.msra.mxu0 %v1021
    %2266 = vmatprep.subr.mxu0 %v1030
    %2267 = vmatpush1.msra.mxu0 %v1029
    %2268 = vmatprep.subr.mxu0 %v1038
    %2269 = vmatpush1.msra.mxu0 %v1037
    %2270 = vmatprep.subr.mxu0 %v1046
    %2271 = vmatpush1.msra.mxu0 %v1045
    %2272 = vmatprep.subr.mxu0 %v1054
    %2273 = vmatpush1.msra.mxu0 %v1053
    %2274 = vmatprep.subr.mxu0 %v1062
    %2275 = vmatpush1.msra.mxu0 %v1061
    %2276 = vmatprep.subr.mxu0 %v1070
    %2277 = vmatpush1.msra.mxu0 %v1069
    %2278 = vmatprep.subr.mxu0 %v1078
    %2279 = vmatpush1.msra.mxu0 %v1077
    %2280 = vmatprep.subr.mxu0 %v1086
    %2281 = vmatpush1.msra.mxu0 %v1085
    %2282 = vmatprep.subr.mxu0 %v1094
    %2283 = vmatpush1.msra.mxu0 %v1093
    %2284 = vmatprep.subr.mxu0 %v1102
    %2285 = vmatpush1.msra.mxu0 %v1101
    %2286 = vmatprep.subr.mxu0 %v1110
    %2287 = vmatpush1.msra.mxu0 %v1109
    %2288 = vmatprep.subr.mxu0 %v1118
    %2289 = vmatpush1.msra.mxu0 %v1117
    %2290 = vmatprep.subr.mxu0 %v1126
    %2291 = vmatpush1.msra.mxu0 %v1125
    %2292 = vmatprep.subr.mxu0 %v1134
    %2293 = vmatpush1.msra.mxu0 %v1133
    %2294 = vmatprep.subr.mxu0 %v1142
    %2295 = vmatpush1.msra.mxu0 %v1141
    %2296 = vmatprep.subr.mxu0 %v1150
    %2297 = vmatpush1.msra.mxu0 %v1149
    %2298 = vmatprep.subr.mxu0 %v1158
    %2299 = vmatpush1.msra.mxu0 %v1157
    %2300 = vmatprep.subr.mxu0 %v1166
    %2301 = vmatpush1.msra.mxu0 %v1165
    %2302 = vmatprep.subr.mxu0 %v1174
    %2303 = vmatpush1.msra.mxu0 %v1173
    %2304 = vmatprep.mubr.f32.mxu0 %v150
    %2305 = vmatmul.mubr.f32.gmra.mrb[0].mxu0 %v149
    %v2306 = vpop.f32.mrb[0].mxu0
    %v2307 = vadd.f32 %v2236, %v2306
    %v2308 = vpop.f32.mrb[0].mxu0
    %v2309 = vadd.f32 %v2238, %v2308
    %2310 = vdwg.mxu0
    %v2311 = vld [vmem:[#allocation7] sm:$0xff]
    %v2313 = vlaneseq
    %v2314 = vshrl.u32 %v2313, 7
    %v2315 = vsub.s32 0, %v2314
    %v2316 = vrot.slane %v2311, %v2315
    %v2317 = vlaneseq
    %v2318 = vshrl.u32 %v2317, 7
    %v2319 = vsub.s32 1, %v2318
    %v2320 = vrot.slane %v2311, %v2319
    %v2321 = vlaneseq
    %v2322 = vshrl.u32 %v2321, 7
    %v2323 = vsub.s32 2, %v2322
    %v2324 = vrot.slane %v2311, %v2323
    %v2325 = vlaneseq
    %v2326 = vshrl.u32 %v2325, 7
    %v2327 = vsub.s32 3, %v2326
    %v2328 = vrot.slane %v2311, %v2327
    %v2329 = vlaneseq
    %v2330 = vshrl.u32 %v2329, 7
    %v2331 = vsub.s32 4, %v2330
    %v2332 = vrot.slane %v2311, %v2331
    %v2333 = vlaneseq
    %v2334 = vshrl.u32 %v2333, 7
    %v2335 = vsub.s32 5, %v2334
    %v2336 = vrot.slane %v2311, %v2335
    %v2337 = vlaneseq
    %v2338 = vshrl.u32 %v2337, 7
    %v2339 = vsub.s32 6, %v2338
    %v2340 = vrot.slane %v2311, %v2339
    %v2341 = vlaneseq
    %v2342 = vshrl.u32 %v2341, 7
    %v2343 = vsub.s32 7, %v2342
    %v2344 = vrot.slane %v2311, %v2343
    %v2353 = vmul.f32 %v1455, %v2316
    %v2354 = vmul.f32 %v1457, %v2320
    %v2355 = vmul.f32 %v1739, %v2324
    %v2356 = vmul.f32 %v1741, %v2328
    %v2357 = vmul.f32 %v2023, %v2332
    %v2358 = vmul.f32 %v2025, %v2336
    %v2359 = vmul.f32 %v2307, %v2340
    %v2360 = vmul.f32 %v2309, %v2344
    %v2361 = vld [vmem:[#allocation8] sm:$0xff]
    %v2363 = vlaneseq
    %v2364 = vshrl.u32 %v2363, 7
    %v2365 = vsub.s32 0, %v2364
    %v2366 = vrot.slane %v2361, %v2365
    %v2367 = vlaneseq
    %v2368 = vshrl.u32 %v2367, 7
    %v2369 = vsub.s32 1, %v2368
    %v2370 = vrot.slane %v2361, %v2369
    %v2371 = vlaneseq
    %v2372 = vshrl.u32 %v2371, 7
    %v2373 = vsub.s32 2, %v2372
    %v2374 = vrot.slane %v2361, %v2373
    %v2375 = vlaneseq
    %v2376 = vshrl.u32 %v2375, 7
    %v2377 = vsub.s32 3, %v2376
    %v2378 = vrot.slane %v2361, %v2377
    %v2379 = vlaneseq
    %v2380 = vshrl.u32 %v2379, 7
    %v2381 = vsub.s32 4, %v2380
    %v2382 = vrot.slane %v2361, %v2381
    %v2383 = vlaneseq
    %v2384 = vshrl.u32 %v2383, 7
    %v2385 = vsub.s32 5, %v2384
    %v2386 = vrot.slane %v2361, %v2385
    %v2387 = vlaneseq
    %v2388 = vshrl.u32 %v2387, 7
    %v2389 = vsub.s32 6, %v2388
    %v2390 = vrot.slane %v2361, %v2389
    %v2391 = vlaneseq
    %v2392 = vshrl.u32 %v2391, 7
    %v2393 = vsub.s32 7, %v2392
    %v2394 = vrot.slane %v2361, %v2393
    %v2403 = vadd.f32 %v2353, %v2366
    %v2404 = vadd.f32 %v2354, %v2370
    %v2405 = vadd.f32 %v2355, %v2374
    %v2406 = vadd.f32 %v2356, %v2378
    %v2407 = vadd.f32 %v2357, %v2382
    %v2408 = vadd.f32 %v2358, %v2386
    %v2409 = vadd.f32 %v2359, %v2390
    %v2410 = vadd.f32 %v2360, %v2394
    %v2411 = vmax.f32 %v2403, 0.0
    %v2412 = vmax.f32 %v2404, 0.0
    %v2413 = vmax.f32 %v2405, 0.0
    %v2414 = vmax.f32 %v2406, 0.0
    %v2415 = vmax.f32 %v2407, 0.0
    %v2416 = vmax.f32 %v2408, 0.0
    %v2417 = vmax.f32 %v2409, 0.0
    %v2418 = vmax.f32 %v2410, 0.0
    %v2419 = vld [vmem:[#allocation10] sm:$0xff]
    %v2420 = vld [vmem:[#allocation10 + $0x8] sm:$0xff]
    %v2421 = vld [vmem:[#allocation10 + $0x10] sm:$0xff]
    %v2422 = vld [vmem:[#allocation10 + $0x18] sm:$0xff]
    %v2423 = vld [vmem:[#allocation10 + $0x20] sm:$0xff]
    %v2424 = vld [vmem:[#allocation10 + $0x28] sm:$0xff]
    %v2425 = vld [vmem:[#allocation10 + $0x30] sm:$0xff]
    %v2426 = vld [vmem:[#allocation10 + $0x38] sm:$0xff]
    %v2427 = vld [vmem:[#allocation10 + $0x40] sm:$0xff]
    %v2428 = vld [vmem:[#allocation10 + $0x48] sm:$0xff]
    %v2429 = vld [vmem:[#allocation10 + $0x50] sm:$0xff]
    %v2430 = vld [vmem:[#allocation10 + $0x58] sm:$0xff]
    %v2431 = vld [vmem:[#allocation10 + $0x60] sm:$0xff]
    %v2432 = vld [vmem:[#allocation10 + $0x68] sm:$0xff]
    %v2433 = vld [vmem:[#allocation10 + $0x70] sm:$0xff]
    %v2434 = vld [vmem:[#allocation10 + $0x78] sm:$0xff]
    %v2435 = vld [vmem:[#allocation10 + $0x80] sm:$0xff]
    %v2436 = vld [vmem:[#allocation10 + $0x88] sm:$0xff]
    %v2437 = vld [vmem:[#allocation10 + $0x90] sm:$0xff]
    %v2438 = vld [vmem:[#allocation10 + $0x98] sm:$0xff]
    %v2439 = vld [vmem:[#allocation10 + $0xa0] sm:$0xff]
    %v2440 = vld [vmem:[#allocation10 + $0xa8] sm:$0xff]
    %v2441 = vld [vmem:[#allocation10 + $0xb0] sm:$0xff]
    %v2442 = vld [vmem:[#allocation10 + $0xb8] sm:$0xff]
    %v2443 = vld [vmem:[#allocation10 + $0xc0] sm:$0xff]
    %v2444 = vld [vmem:[#allocation10 + $0xc8] sm:$0xff]
    %v2445 = vld [vmem:[#allocation10 + $0xd0] sm:$0xff]
    %v2446 = vld [vmem:[#allocation10 + $0xd8] sm:$0xff]
    %v2447 = vld [vmem:[#allocation10 + $0xe0] sm:$0xff]
    %v2448 = vld [vmem:[#allocation10 + $0xe8] sm:$0xff]
    %v2449 = vld [vmem:[#allocation10 + $0xf0] sm:$0xff]
    %v2450 = vld [vmem:[#allocation10 + $0xf8] sm:$0xff]
    %v2451 = vld [vmem:[#allocation10 + $0x100] sm:$0xff]
    %v2452 = vld [vmem:[#allocation10 + $0x108] sm:$0xff]
    %v2453 = vld [vmem:[#allocation10 + $0x110] sm:$0xff]
    %v2454 = vld [vmem:[#allocation10 + $0x118] sm:$0xff]
    %v2455 = vld [vmem:[#allocation10 + $0x120] sm:$0xff]
    %v2456 = vld [vmem:[#allocation10 + $0x128] sm:$0xff]
    %v2457 = vld [vmem:[#allocation10 + $0x130] sm:$0xff]
    %v2458 = vld [vmem:[#allocation10 + $0x138] sm:$0xff]
    %v2459 = vld [vmem:[#allocation10 + $0x140] sm:$0xff]
    %v2460 = vld [vmem:[#allocation10 + $0x148] sm:$0xff]
    %v2461 = vld [vmem:[#allocation10 + $0x150] sm:$0xff]
    %v2462 = vld [vmem:[#allocation10 + $0x158] sm:$0xff]
    %v2463 = vld [vmem:[#allocation10 + $0x160] sm:$0xff]
    %v2464 = vld [vmem:[#allocation10 + $0x168] sm:$0xff]
    %v2465 = vld [vmem:[#allocation10 + $0x170] sm:$0xff]
    %v2466 = vld [vmem:[#allocation10 + $0x178] sm:$0xff]
    %v2467 = vld [vmem:[#allocation10 + $0x180] sm:$0xff]
    %v2468 = vld [vmem:[#allocation10 + $0x188] sm:$0xff]
    %v2469 = vld [vmem:[#allocation10 + $0x190] sm:$0xff]
    %v2470 = vld [vmem:[#allocation10 + $0x198] sm:$0xff]
    %v2471 = vld [vmem:[#allocation10 + $0x1a0] sm:$0xff]
    %v2472 = vld [vmem:[#allocation10 + $0x1a8] sm:$0xff]
    %v2473 = vld [vmem:[#allocation10 + $0x1b0] sm:$0xff]
    %v2474 = vld [vmem:[#allocation10 + $0x1b8] sm:$0xff]
    %v2475 = vld [vmem:[#allocation10 + $0x1c0] sm:$0xff]
    %v2476 = vld [vmem:[#allocation10 + $0x1c8] sm:$0xff]
    %v2477 = vld [vmem:[#allocation10 + $0x1d0] sm:$0xff]
    %v2478 = vld [vmem:[#allocation10 + $0x1d8] sm:$0xff]
    %v2479 = vld [vmem:[#allocation10 + $0x1e0] sm:$0xff]
    %v2480 = vld [vmem:[#allocation10 + $0x1e8] sm:$0xff]
    %v2481 = vld [vmem:[#allocation10 + $0x1f0] sm:$0xff]
    %v2482 = vld [vmem:[#allocation10 + $0x1f8] sm:$0xff]
    %v2483 = vld [vmem:[#allocation10 + $0x200] sm:$0xff]
    %v2484 = vld [vmem:[#allocation10 + $0x208] sm:$0xff]
    %v2485 = vld [vmem:[#allocation10 + $0x210] sm:$0xff]
    %v2486 = vld [vmem:[#allocation10 + $0x218] sm:$0xff]
    %v2487 = vld [vmem:[#allocation10 + $0x220] sm:$0xff]
    %v2488 = vld [vmem:[#allocation10 + $0x228] sm:$0xff]
    %v2489 = vld [vmem:[#allocation10 + $0x230] sm:$0xff]
    %v2490 = vld [vmem:[#allocation10 + $0x238] sm:$0xff]
    %v2491 = vld [vmem:[#allocation10 + $0x240] sm:$0xff]
    %v2492 = vld [vmem:[#allocation10 + $0x248] sm:$0xff]
    %v2493 = vld [vmem:[#allocation10 + $0x250] sm:$0xff]
    %v2494 = vld [vmem:[#allocation10 + $0x258] sm:$0xff]
    %v2495 = vld [vmem:[#allocation10 + $0x260] sm:$0xff]
    %v2496 = vld [vmem:[#allocation10 + $0x268] sm:$0xff]
    %v2497 = vld [vmem:[#allocation10 + $0x270] sm:$0xff]
    %v2498 = vld [vmem:[#allocation10 + $0x278] sm:$0xff]
    %v2499 = vld [vmem:[#allocation10 + $0x280] sm:$0xff]
    %v2500 = vld [vmem:[#allocation10 + $0x288] sm:$0xff]
    %v2501 = vld [vmem:[#allocation10 + $0x290] sm:$0xff]
    %v2502 = vld [vmem:[#allocation10 + $0x298] sm:$0xff]
    %v2503 = vld [vmem:[#allocation10 + $0x2a0] sm:$0xff]
    %v2504 = vld [vmem:[#allocation10 + $0x2a8] sm:$0xff]
    %v2505 = vld [vmem:[#allocation10 + $0x2b0] sm:$0xff]
    %v2506 = vld [vmem:[#allocation10 + $0x2b8] sm:$0xff]
    %v2507 = vld [vmem:[#allocation10 + $0x2c0] sm:$0xff]
    %v2508 = vld [vmem:[#allocation10 + $0x2c8] sm:$0xff]
    %v2509 = vld [vmem:[#allocation10 + $0x2d0] sm:$0xff]
    %v2510 = vld [vmem:[#allocation10 + $0x2d8] sm:$0xff]
    %v2511 = vld [vmem:[#allocation10 + $0x2e0] sm:$0xff]
    %v2512 = vld [vmem:[#allocation10 + $0x2e8] sm:$0xff]
    %v2513 = vld [vmem:[#allocation10 + $0x2f0] sm:$0xff]
    %v2514 = vld [vmem:[#allocation10 + $0x2f8] sm:$0xff]
    %v2515 = vld [vmem:[#allocation10 + $0x300] sm:$0xff]
    %v2516 = vld [vmem:[#allocation10 + $0x308] sm:$0xff]
    %v2517 = vld [vmem:[#allocation10 + $0x310] sm:$0xff]
    %v2518 = vld [vmem:[#allocation10 + $0x318] sm:$0xff]
    %v2519 = vld [vmem:[#allocation10 + $0x320] sm:$0xff]
    %v2520 = vld [vmem:[#allocation10 + $0x328] sm:$0xff]
    %v2521 = vld [vmem:[#allocation10 + $0x330] sm:$0xff]
    %v2522 = vld [vmem:[#allocation10 + $0x338] sm:$0xff]
    %v2523 = vld [vmem:[#allocation10 + $0x340] sm:$0xff]
    %v2524 = vld [vmem:[#allocation10 + $0x348] sm:$0xff]
    %v2525 = vld [vmem:[#allocation10 + $0x350] sm:$0xff]
    %v2526 = vld [vmem:[#allocation10 + $0x358] sm:$0xff]
    %v2527 = vld [vmem:[#allocation10 + $0x360] sm:$0xff]
    %v2528 = vld [vmem:[#allocation10 + $0x368] sm:$0xff]
    %v2529 = vld [vmem:[#allocation10 + $0x370] sm:$0xff]
    %v2530 = vld [vmem:[#allocation10 + $0x378] sm:$0xff]
    %v2531 = vld [vmem:[#allocation10 + $0x380] sm:$0xff]
    %v2532 = vld [vmem:[#allocation10 + $0x388] sm:$0xff]
    %v2533 = vld [vmem:[#allocation10 + $0x390] sm:$0xff]
    %v2534 = vld [vmem:[#allocation10 + $0x398] sm:$0xff]
    %v2535 = vld [vmem:[#allocation10 + $0x3a0] sm:$0xff]
    %v2536 = vld [vmem:[#allocation10 + $0x3a8] sm:$0xff]
    %v2537 = vld [vmem:[#allocation10 + $0x3b0] sm:$0xff]
    %v2538 = vld [vmem:[#allocation10 + $0x3b8] sm:$0xff]
    %v2539 = vld [vmem:[#allocation10 + $0x3c0] sm:$0xff]
    %v2540 = vld [vmem:[#allocation10 + $0x3c8] sm:$0xff]
    %v2541 = vld [vmem:[#allocation10 + $0x3d0] sm:$0xff]
    %v2542 = vld [vmem:[#allocation10 + $0x3d8] sm:$0xff]
    %v2543 = vld [vmem:[#allocation10 + $0x3e0] sm:$0xff]
    %v2544 = vld [vmem:[#allocation10 + $0x3e8] sm:$0xff]
    %v2545 = vld [vmem:[#allocation10 + $0x3f0] sm:$0xff]
    %v2546 = vld [vmem:[#allocation10 + $0x3f8] sm:$0xff]
    %v2547 = vld [vmem:[#allocation10 + $0x400] sm:$0xff]
    %v2548 = vld [vmem:[#allocation10 + $0x408] sm:$0xff]
    %v2549 = vld [vmem:[#allocation10 + $0x410] sm:$0xff]
    %v2550 = vld [vmem:[#allocation10 + $0x418] sm:$0xff]
    %v2551 = vld [vmem:[#allocation10 + $0x420] sm:$0xff]
    %v2552 = vld [vmem:[#allocation10 + $0x428] sm:$0xff]
    %v2553 = vld [vmem:[#allocation10 + $0x430] sm:$0xff]
    %v2554 = vld [vmem:[#allocation10 + $0x438] sm:$0xff]
    %v2555 = vld [vmem:[#allocation10 + $0x440] sm:$0xff]
    %v2556 = vld [vmem:[#allocation10 + $0x448] sm:$0xff]
    %v2557 = vld [vmem:[#allocation10 + $0x450] sm:$0xff]
    %v2558 = vld [vmem:[#allocation10 + $0x458] sm:$0xff]
    %v2559 = vld [vmem:[#allocation10 + $0x460] sm:$0xff]
    %v2560 = vld [vmem:[#allocation10 + $0x468] sm:$0xff]
    %v2561 = vld [vmem:[#allocation10 + $0x470] sm:$0xff]
    %v2562 = vld [vmem:[#allocation10 + $0x478] sm:$0xff]
    %v2563 = vld [vmem:[#allocation10 + $0x480] sm:$0xff]
    %v2564 = vld [vmem:[#allocation10 + $0x488] sm:$0xff]
    %v2565 = vld [vmem:[#allocation10 + $0x490] sm:$0xff]
    %v2566 = vld [vmem:[#allocation10 + $0x498] sm:$0xff]
    %v2567 = vld [vmem:[#allocation10 + $0x4a0] sm:$0xff]
    %v2568 = vld [vmem:[#allocation10 + $0x4a8] sm:$0xff]
    %v2569 = vld [vmem:[#allocation10 + $0x4b0] sm:$0xff]
    %v2570 = vld [vmem:[#allocation10 + $0x4b8] sm:$0xff]
    %v2571 = vld [vmem:[#allocation10 + $0x4c0] sm:$0xff]
    %v2572 = vld [vmem:[#allocation10 + $0x4c8] sm:$0xff]
    %v2573 = vld [vmem:[#allocation10 + $0x4d0] sm:$0xff]
    %v2574 = vld [vmem:[#allocation10 + $0x4d8] sm:$0xff]
    %v2575 = vld [vmem:[#allocation10 + $0x4e0] sm:$0xff]
    %v2576 = vld [vmem:[#allocation10 + $0x4e8] sm:$0xff]
    %v2577 = vld [vmem:[#allocation10 + $0x4f0] sm:$0xff]
    %v2578 = vld [vmem:[#allocation10 + $0x4f8] sm:$0xff]
    %v2579 = vld [vmem:[#allocation10 + $0x500] sm:$0xff]
    %v2580 = vld [vmem:[#allocation10 + $0x508] sm:$0xff]
    %v2581 = vld [vmem:[#allocation10 + $0x510] sm:$0xff]
    %v2582 = vld [vmem:[#allocation10 + $0x518] sm:$0xff]
    %v2583 = vld [vmem:[#allocation10 + $0x520] sm:$0xff]
    %v2584 = vld [vmem:[#allocation10 + $0x528] sm:$0xff]
    %v2585 = vld [vmem:[#allocation10 + $0x530] sm:$0xff]
    %v2586 = vld [vmem:[#allocation10 + $0x538] sm:$0xff]
    %v2587 = vld [vmem:[#allocation10 + $0x540] sm:$0xff]
    %v2588 = vld [vmem:[#allocation10 + $0x548] sm:$0xff]
    %v2589 = vld [vmem:[#allocation10 + $0x550] sm:$0xff]
    %v2590 = vld [vmem:[#allocation10 + $0x558] sm:$0xff]
    %v2591 = vld [vmem:[#allocation10 + $0x560] sm:$0xff]
    %v2592 = vld [vmem:[#allocation10 + $0x568] sm:$0xff]
    %v2593 = vld [vmem:[#allocation10 + $0x570] sm:$0xff]
    %v2594 = vld [vmem:[#allocation10 + $0x578] sm:$0xff]
    %v2595 = vld [vmem:[#allocation10 + $0x580] sm:$0xff]
    %v2596 = vld [vmem:[#allocation10 + $0x588] sm:$0xff]
    %v2597 = vld [vmem:[#allocation10 + $0x590] sm:$0xff]
    %v2598 = vld [vmem:[#allocation10 + $0x598] sm:$0xff]
    %v2599 = vld [vmem:[#allocation10 + $0x5a0] sm:$0xff]
    %v2600 = vld [vmem:[#allocation10 + $0x5a8] sm:$0xff]
    %v2601 = vld [vmem:[#allocation10 + $0x5b0] sm:$0xff]
    %v2602 = vld [vmem:[#allocation10 + $0x5b8] sm:$0xff]
    %v2603 = vld [vmem:[#allocation10 + $0x5c0] sm:$0xff]
    %v2604 = vld [vmem:[#allocation10 + $0x5c8] sm:$0xff]
    %v2605 = vld [vmem:[#allocation10 + $0x5d0] sm:$0xff]
    %v2606 = vld [vmem:[#allocation10 + $0x5d8] sm:$0xff]
    %v2607 = vld [vmem:[#allocation10 + $0x5e0] sm:$0xff]
    %v2608 = vld [vmem:[#allocation10 + $0x5e8] sm:$0xff]
    %v2609 = vld [vmem:[#allocation10 + $0x5f0] sm:$0xff]
    %v2610 = vld [vmem:[#allocation10 + $0x5f8] sm:$0xff]
    %v2611 = vld [vmem:[#allocation10 + $0x600] sm:$0xff]
    %v2612 = vld [vmem:[#allocation10 + $0x608] sm:$0xff]
    %v2613 = vld [vmem:[#allocation10 + $0x610] sm:$0xff]
    %v2614 = vld [vmem:[#allocation10 + $0x618] sm:$0xff]
    %v2615 = vld [vmem:[#allocation10 + $0x620] sm:$0xff]
    %v2616 = vld [vmem:[#allocation10 + $0x628] sm:$0xff]
    %v2617 = vld [vmem:[#allocation10 + $0x630] sm:$0xff]
    %v2618 = vld [vmem:[#allocation10 + $0x638] sm:$0xff]
    %v2619 = vld [vmem:[#allocation10 + $0x640] sm:$0xff]
    %v2620 = vld [vmem:[#allocation10 + $0x648] sm:$0xff]
    %v2621 = vld [vmem:[#allocation10 + $0x650] sm:$0xff]
    %v2622 = vld [vmem:[#allocation10 + $0x658] sm:$0xff]
    %v2623 = vld [vmem:[#allocation10 + $0x660] sm:$0xff]
    %v2624 = vld [vmem:[#allocation10 + $0x668] sm:$0xff]
    %v2625 = vld [vmem:[#allocation10 + $0x670] sm:$0xff]
    %v2626 = vld [vmem:[#allocation10 + $0x678] sm:$0xff]
    %v2627 = vld [vmem:[#allocation10 + $0x680] sm:$0xff]
    %v2628 = vld [vmem:[#allocation10 + $0x688] sm:$0xff]
    %v2629 = vld [vmem:[#allocation10 + $0x690] sm:$0xff]
    %v2630 = vld [vmem:[#allocation10 + $0x698] sm:$0xff]
    %v2631 = vld [vmem:[#allocation10 + $0x6a0] sm:$0xff]
    %v2632 = vld [vmem:[#allocation10 + $0x6a8] sm:$0xff]
    %v2633 = vld [vmem:[#allocation10 + $0x6b0] sm:$0xff]
    %v2634 = vld [vmem:[#allocation10 + $0x6b8] sm:$0xff]
    %v2635 = vld [vmem:[#allocation10 + $0x6c0] sm:$0xff]
    %v2636 = vld [vmem:[#allocation10 + $0x6c8] sm:$0xff]
    %v2637 = vld [vmem:[#allocation10 + $0x6d0] sm:$0xff]
    %v2638 = vld [vmem:[#allocation10 + $0x6d8] sm:$0xff]
    %v2639 = vld [vmem:[#allocation10 + $0x6e0] sm:$0xff]
    %v2640 = vld [vmem:[#allocation10 + $0x6e8] sm:$0xff]
    %v2641 = vld [vmem:[#allocation10 + $0x6f0] sm:$0xff]
    %v2642 = vld [vmem:[#allocation10 + $0x6f8] sm:$0xff]
    %v2643 = vld [vmem:[#allocation10 + $0x700] sm:$0xff]
    %v2644 = vld [vmem:[#allocation10 + $0x708] sm:$0xff]
    %v2645 = vld [vmem:[#allocation10 + $0x710] sm:$0xff]
    %v2646 = vld [vmem:[#allocation10 + $0x718] sm:$0xff]
    %v2647 = vld [vmem:[#allocation10 + $0x720] sm:$0xff]
    %v2648 = vld [vmem:[#allocation10 + $0x728] sm:$0xff]
    %v2649 = vld [vmem:[#allocation10 + $0x730] sm:$0xff]
    %v2650 = vld [vmem:[#allocation10 + $0x738] sm:$0xff]
    %v2651 = vld [vmem:[#allocation10 + $0x740] sm:$0xff]
    %v2652 = vld [vmem:[#allocation10 + $0x748] sm:$0xff]
    %v2653 = vld [vmem:[#allocation10 + $0x750] sm:$0xff]
    %v2654 = vld [vmem:[#allocation10 + $0x758] sm:$0xff]
    %v2655 = vld [vmem:[#allocation10 + $0x760] sm:$0xff]
    %v2656 = vld [vmem:[#allocation10 + $0x768] sm:$0xff]
    %v2657 = vld [vmem:[#allocation10 + $0x770] sm:$0xff]
    %v2658 = vld [vmem:[#allocation10 + $0x778] sm:$0xff]
    %v2659 = vld [vmem:[#allocation10 + $0x780] sm:$0xff]
    %v2660 = vld [vmem:[#allocation10 + $0x788] sm:$0xff]
    %v2661 = vld [vmem:[#allocation10 + $0x790] sm:$0xff]
    %v2662 = vld [vmem:[#allocation10 + $0x798] sm:$0xff]
    %v2663 = vld [vmem:[#allocation10 + $0x7a0] sm:$0xff]
    %v2664 = vld [vmem:[#allocation10 + $0x7a8] sm:$0xff]
    %v2665 = vld [vmem:[#allocation10 + $0x7b0] sm:$0xff]
    %v2666 = vld [vmem:[#allocation10 + $0x7b8] sm:$0xff]
    %v2667 = vld [vmem:[#allocation10 + $0x7c0] sm:$0xff]
    %v2668 = vld [vmem:[#allocation10 + $0x7c8] sm:$0xff]
    %v2669 = vld [vmem:[#allocation10 + $0x7d0] sm:$0xff]
    %v2670 = vld [vmem:[#allocation10 + $0x7d8] sm:$0xff]
    %v2671 = vld [vmem:[#allocation10 + $0x7e0] sm:$0xff]
    %v2672 = vld [vmem:[#allocation10 + $0x7e8] sm:$0xff]
    %v2673 = vld [vmem:[#allocation10 + $0x7f0] sm:$0xff]
    %v2674 = vld [vmem:[#allocation10 + $0x7f8] sm:$0xff]
    %v2675 = vld [vmem:[#allocation10 + $0x800] sm:$0xff]
    %v2676 = vld [vmem:[#allocation10 + $0x808] sm:$0xff]
    %v2677 = vld [vmem:[#allocation10 + $0x810] sm:$0xff]
    %v2678 = vld [vmem:[#allocation10 + $0x818] sm:$0xff]
    %v2679 = vld [vmem:[#allocation10 + $0x820] sm:$0xff]
    %v2680 = vld [vmem:[#allocation10 + $0x828] sm:$0xff]
    %v2681 = vld [vmem:[#allocation10 + $0x830] sm:$0xff]
    %v2682 = vld [vmem:[#allocation10 + $0x838] sm:$0xff]
    %v2683 = vld [vmem:[#allocation10 + $0x840] sm:$0xff]
    %v2684 = vld [vmem:[#allocation10 + $0x848] sm:$0xff]
    %v2685 = vld [vmem:[#allocation10 + $0x850] sm:$0xff]
    %v2686 = vld [vmem:[#allocation10 + $0x858] sm:$0xff]
    %v2687 = vld [vmem:[#allocation10 + $0x860] sm:$0xff]
    %v2688 = vld [vmem:[#allocation10 + $0x868] sm:$0xff]
    %v2689 = vld [vmem:[#allocation10 + $0x870] sm:$0xff]
    %v2690 = vld [vmem:[#allocation10 + $0x878] sm:$0xff]
    %v2691 = vld [vmem:[#allocation10 + $0x880] sm:$0xff]
    %v2692 = vld [vmem:[#allocation10 + $0x888] sm:$0xff]
    %v2693 = vld [vmem:[#allocation10 + $0x890] sm:$0xff]
    %v2694 = vld [vmem:[#allocation10 + $0x898] sm:$0xff]
    %v2695 = vld [vmem:[#allocation10 + $0x8a0] sm:$0xff]
    %v2696 = vld [vmem:[#allocation10 + $0x8a8] sm:$0xff]
    %v2697 = vld [vmem:[#allocation10 + $0x8b0] sm:$0xff]
    %v2698 = vld [vmem:[#allocation10 + $0x8b8] sm:$0xff]
    %v2699 = vld [vmem:[#allocation10 + $0x8c0] sm:$0xff]
    %v2700 = vld [vmem:[#allocation10 + $0x8c8] sm:$0xff]
    %v2701 = vld [vmem:[#allocation10 + $0x8d0] sm:$0xff]
    %v2702 = vld [vmem:[#allocation10 + $0x8d8] sm:$0xff]
    %v2703 = vld [vmem:[#allocation10 + $0x8e0] sm:$0xff]
    %v2704 = vld [vmem:[#allocation10 + $0x8e8] sm:$0xff]
    %v2705 = vld [vmem:[#allocation10 + $0x8f0] sm:$0xff]
    %v2706 = vld [vmem:[#allocation10 + $0x8f8] sm:$0xff]
    %v2707 = vld [vmem:[#allocation10 + $0x900] sm:$0xff]
    %v2708 = vld [vmem:[#allocation10 + $0x908] sm:$0xff]
    %v2709 = vld [vmem:[#allocation10 + $0x910] sm:$0xff]
    %v2710 = vld [vmem:[#allocation10 + $0x918] sm:$0xff]
    %v2711 = vld [vmem:[#allocation10 + $0x920] sm:$0xff]
    %v2712 = vld [vmem:[#allocation10 + $0x928] sm:$0xff]
    %v2713 = vld [vmem:[#allocation10 + $0x930] sm:$0xff]
    %v2714 = vld [vmem:[#allocation10 + $0x938] sm:$0xff]
    %v2715 = vld [vmem:[#allocation10 + $0x940] sm:$0xff]
    %v2716 = vld [vmem:[#allocation10 + $0x948] sm:$0xff]
    %v2717 = vld [vmem:[#allocation10 + $0x950] sm:$0xff]
    %v2718 = vld [vmem:[#allocation10 + $0x958] sm:$0xff]
    %v2719 = vld [vmem:[#allocation10 + $0x960] sm:$0xff]
    %v2720 = vld [vmem:[#allocation10 + $0x968] sm:$0xff]
    %v2721 = vld [vmem:[#allocation10 + $0x970] sm:$0xff]
    %v2722 = vld [vmem:[#allocation10 + $0x978] sm:$0xff]
    %v2723 = vld [vmem:[#allocation10 + $0x980] sm:$0xff]
    %v2724 = vld [vmem:[#allocation10 + $0x988] sm:$0xff]
    %v2725 = vld [vmem:[#allocation10 + $0x990] sm:$0xff]
    %v2726 = vld [vmem:[#allocation10 + $0x998] sm:$0xff]
    %v2727 = vld [vmem:[#allocation10 + $0x9a0] sm:$0xff]
    %v2728 = vld [vmem:[#allocation10 + $0x9a8] sm:$0xff]
    %v2729 = vld [vmem:[#allocation10 + $0x9b0] sm:$0xff]
    %v2730 = vld [vmem:[#allocation10 + $0x9b8] sm:$0xff]
    %v2731 = vld [vmem:[#allocation10 + $0x9c0] sm:$0xff]
    %v2732 = vld [vmem:[#allocation10 + $0x9c8] sm:$0xff]
    %v2733 = vld [vmem:[#allocation10 + $0x9d0] sm:$0xff]
    %v2734 = vld [vmem:[#allocation10 + $0x9d8] sm:$0xff]
    %v2735 = vld [vmem:[#allocation10 + $0x9e0] sm:$0xff]
    %v2736 = vld [vmem:[#allocation10 + $0x9e8] sm:$0xff]
    %v2737 = vld [vmem:[#allocation10 + $0x9f0] sm:$0xff]
    %v2738 = vld [vmem:[#allocation10 + $0x9f8] sm:$0xff]
    %v2739 = vld [vmem:[#allocation10 + $0xa00] sm:$0xff]
    %v2740 = vld [vmem:[#allocation10 + $0xa08] sm:$0xff]
    %v2741 = vld [vmem:[#allocation10 + $0xa10] sm:$0xff]
    %v2742 = vld [vmem:[#allocation10 + $0xa18] sm:$0xff]
    %v2743 = vld [vmem:[#allocation10 + $0xa20] sm:$0xff]
    %v2744 = vld [vmem:[#allocation10 + $0xa28] sm:$0xff]
    %v2745 = vld [vmem:[#allocation10 + $0xa30] sm:$0xff]
    %v2746 = vld [vmem:[#allocation10 + $0xa38] sm:$0xff]
    %v2747 = vld [vmem:[#allocation10 + $0xa40] sm:$0xff]
    %v2748 = vld [vmem:[#allocation10 + $0xa48] sm:$0xff]
    %v2749 = vld [vmem:[#allocation10 + $0xa50] sm:$0xff]
    %v2750 = vld [vmem:[#allocation10 + $0xa58] sm:$0xff]
    %v2751 = vld [vmem:[#allocation10 + $0xa60] sm:$0xff]
    %v2752 = vld [vmem:[#allocation10 + $0xa68] sm:$0xff]
    %v2753 = vld [vmem:[#allocation10 + $0xa70] sm:$0xff]
    %v2754 = vld [vmem:[#allocation10 + $0xa78] sm:$0xff]
    %v2755 = vld [vmem:[#allocation10 + $0xa80] sm:$0xff]
    %v2756 = vld [vmem:[#allocation10 + $0xa88] sm:$0xff]
    %v2757 = vld [vmem:[#allocation10 + $0xa90] sm:$0xff]
    %v2758 = vld [vmem:[#allocation10 + $0xa98] sm:$0xff]
    %v2759 = vld [vmem:[#allocation10 + $0xaa0] sm:$0xff]
    %v2760 = vld [vmem:[#allocation10 + $0xaa8] sm:$0xff]
    %v2761 = vld [vmem:[#allocation10 + $0xab0] sm:$0xff]
    %v2762 = vld [vmem:[#allocation10 + $0xab8] sm:$0xff]
    %v2763 = vld [vmem:[#allocation10 + $0xac0] sm:$0xff]
    %v2764 = vld [vmem:[#allocation10 + $0xac8] sm:$0xff]
    %v2765 = vld [vmem:[#allocation10 + $0xad0] sm:$0xff]
    %v2766 = vld [vmem:[#allocation10 + $0xad8] sm:$0xff]
    %v2767 = vld [vmem:[#allocation10 + $0xae0] sm:$0xff]
    %v2768 = vld [vmem:[#allocation10 + $0xae8] sm:$0xff]
    %v2769 = vld [vmem:[#allocation10 + $0xaf0] sm:$0xff]
    %v2770 = vld [vmem:[#allocation10 + $0xaf8] sm:$0xff]
    %v2771 = vld [vmem:[#allocation10 + $0xb00] sm:$0xff]
    %v2772 = vld [vmem:[#allocation10 + $0xb08] sm:$0xff]
    %v2773 = vld [vmem:[#allocation10 + $0xb10] sm:$0xff]
    %v2774 = vld [vmem:[#allocation10 + $0xb18] sm:$0xff]
    %v2775 = vld [vmem:[#allocation10 + $0xb20] sm:$0xff]
    %v2776 = vld [vmem:[#allocation10 + $0xb28] sm:$0xff]
    %v2777 = vld [vmem:[#allocation10 + $0xb30] sm:$0xff]
    %v2778 = vld [vmem:[#allocation10 + $0xb38] sm:$0xff]
    %v2779 = vld [vmem:[#allocation10 + $0xb40] sm:$0xff]
    %v2780 = vld [vmem:[#allocation10 + $0xb48] sm:$0xff]
    %v2781 = vld [vmem:[#allocation10 + $0xb50] sm:$0xff]
    %v2782 = vld [vmem:[#allocation10 + $0xb58] sm:$0xff]
    %v2783 = vld [vmem:[#allocation10 + $0xb60] sm:$0xff]
    %v2784 = vld [vmem:[#allocation10 + $0xb68] sm:$0xff]
    %v2785 = vld [vmem:[#allocation10 + $0xb70] sm:$0xff]
    %v2786 = vld [vmem:[#allocation10 + $0xb78] sm:$0xff]
    %v2787 = vld [vmem:[#allocation10 + $0xb80] sm:$0xff]
    %v2788 = vld [vmem:[#allocation10 + $0xb88] sm:$0xff]
    %v2789 = vld [vmem:[#allocation10 + $0xb90] sm:$0xff]
    %v2790 = vld [vmem:[#allocation10 + $0xb98] sm:$0xff]
    %v2791 = vld [vmem:[#allocation10 + $0xba0] sm:$0xff]
    %v2792 = vld [vmem:[#allocation10 + $0xba8] sm:$0xff]
    %v2793 = vld [vmem:[#allocation10 + $0xbb0] sm:$0xff]
    %v2794 = vld [vmem:[#allocation10 + $0xbb8] sm:$0xff]
    %v2795 = vld [vmem:[#allocation10 + $0xbc0] sm:$0xff]
    %v2796 = vld [vmem:[#allocation10 + $0xbc8] sm:$0xff]
    %v2797 = vld [vmem:[#allocation10 + $0xbd0] sm:$0xff]
    %v2798 = vld [vmem:[#allocation10 + $0xbd8] sm:$0xff]
    %v2799 = vld [vmem:[#allocation10 + $0xbe0] sm:$0xff]
    %v2800 = vld [vmem:[#allocation10 + $0xbe8] sm:$0xff]
    %v2801 = vld [vmem:[#allocation10 + $0xbf0] sm:$0xff]
    %v2802 = vld [vmem:[#allocation10 + $0xbf8] sm:$0xff]
    %v2803 = vld [vmem:[#allocation10 + $0xc00] sm:$0xff]
    %v2804 = vld [vmem:[#allocation10 + $0xc08] sm:$0xff]
    %v2805 = vld [vmem:[#allocation10 + $0xc10] sm:$0xff]
    %v2806 = vld [vmem:[#allocation10 + $0xc18] sm:$0xff]
    %v2807 = vld [vmem:[#allocation10 + $0xc20] sm:$0xff]
    %v2808 = vld [vmem:[#allocation10 + $0xc28] sm:$0xff]
    %v2809 = vld [vmem:[#allocation10 + $0xc30] sm:$0xff]
    %v2810 = vld [vmem:[#allocation10 + $0xc38] sm:$0xff]
    %v2811 = vld [vmem:[#allocation10 + $0xc40] sm:$0xff]
    %v2812 = vld [vmem:[#allocation10 + $0xc48] sm:$0xff]
    %v2813 = vld [vmem:[#allocation10 + $0xc50] sm:$0xff]
    %v2814 = vld [vmem:[#allocation10 + $0xc58] sm:$0xff]
    %v2815 = vld [vmem:[#allocation10 + $0xc60] sm:$0xff]
    %v2816 = vld [vmem:[#allocation10 + $0xc68] sm:$0xff]
    %v2817 = vld [vmem:[#allocation10 + $0xc70] sm:$0xff]
    %v2818 = vld [vmem:[#allocation10 + $0xc78] sm:$0xff]
    %v2819 = vld [vmem:[#allocation10 + $0xc80] sm:$0xff]
    %v2820 = vld [vmem:[#allocation10 + $0xc88] sm:$0xff]
    %v2821 = vld [vmem:[#allocation10 + $0xc90] sm:$0xff]
    %v2822 = vld [vmem:[#allocation10 + $0xc98] sm:$0xff]
    %v2823 = vld [vmem:[#allocation10 + $0xca0] sm:$0xff]
    %v2824 = vld [vmem:[#allocation10 + $0xca8] sm:$0xff]
    %v2825 = vld [vmem:[#allocation10 + $0xcb0] sm:$0xff]
    %v2826 = vld [vmem:[#allocation10 + $0xcb8] sm:$0xff]
    %v2827 = vld [vmem:[#allocation10 + $0xcc0] sm:$0xff]
    %v2828 = vld [vmem:[#allocation10 + $0xcc8] sm:$0xff]
    %v2829 = vld [vmem:[#allocation10 + $0xcd0] sm:$0xff]
    %v2830 = vld [vmem:[#allocation10 + $0xcd8] sm:$0xff]
    %v2831 = vld [vmem:[#allocation10 + $0xce0] sm:$0xff]
    %v2832 = vld [vmem:[#allocation10 + $0xce8] sm:$0xff]
    %v2833 = vld [vmem:[#allocation10 + $0xcf0] sm:$0xff]
    %v2834 = vld [vmem:[#allocation10 + $0xcf8] sm:$0xff]
    %v2835 = vld [vmem:[#allocation10 + $0xd00] sm:$0xff]
    %v2836 = vld [vmem:[#allocation10 + $0xd08] sm:$0xff]
    %v2837 = vld [vmem:[#allocation10 + $0xd10] sm:$0xff]
    %v2838 = vld [vmem:[#allocation10 + $0xd18] sm:$0xff]
    %v2839 = vld [vmem:[#allocation10 + $0xd20] sm:$0xff]
    %v2840 = vld [vmem:[#allocation10 + $0xd28] sm:$0xff]
    %v2841 = vld [vmem:[#allocation10 + $0xd30] sm:$0xff]
    %v2842 = vld [vmem:[#allocation10 + $0xd38] sm:$0xff]
    %v2843 = vld [vmem:[#allocation10 + $0xd40] sm:$0xff]
    %v2844 = vld [vmem:[#allocation10 + $0xd48] sm:$0xff]
    %v2845 = vld [vmem:[#allocation10 + $0xd50] sm:$0xff]
    %v2846 = vld [vmem:[#allocation10 + $0xd58] sm:$0xff]
    %v2847 = vld [vmem:[#allocation10 + $0xd60] sm:$0xff]
    %v2848 = vld [vmem:[#allocation10 + $0xd68] sm:$0xff]
    %v2849 = vld [vmem:[#allocation10 + $0xd70] sm:$0xff]
    %v2850 = vld [vmem:[#allocation10 + $0xd78] sm:$0xff]
    %v2851 = vld [vmem:[#allocation10 + $0xd80] sm:$0xff]
    %v2852 = vld [vmem:[#allocation10 + $0xd88] sm:$0xff]
    %v2853 = vld [vmem:[#allocation10 + $0xd90] sm:$0xff]
    %v2854 = vld [vmem:[#allocation10 + $0xd98] sm:$0xff]
    %v2855 = vld [vmem:[#allocation10 + $0xda0] sm:$0xff]
    %v2856 = vld [vmem:[#allocation10 + $0xda8] sm:$0xff]
    %v2857 = vld [vmem:[#allocation10 + $0xdb0] sm:$0xff]
    %v2858 = vld [vmem:[#allocation10 + $0xdb8] sm:$0xff]
    %v2859 = vld [vmem:[#allocation10 + $0xdc0] sm:$0xff]
    %v2860 = vld [vmem:[#allocation10 + $0xdc8] sm:$0xff]
    %v2861 = vld [vmem:[#allocation10 + $0xdd0] sm:$0xff]
    %v2862 = vld [vmem:[#allocation10 + $0xdd8] sm:$0xff]
    %v2863 = vld [vmem:[#allocation10 + $0xde0] sm:$0xff]
    %v2864 = vld [vmem:[#allocation10 + $0xde8] sm:$0xff]
    %v2865 = vld [vmem:[#allocation10 + $0xdf0] sm:$0xff]
    %v2866 = vld [vmem:[#allocation10 + $0xdf8] sm:$0xff]
    %v2867 = vld [vmem:[#allocation10 + $0xe00] sm:$0xff]
    %v2868 = vld [vmem:[#allocation10 + $0xe08] sm:$0xff]
    %v2869 = vld [vmem:[#allocation10 + $0xe10] sm:$0xff]
    %v2870 = vld [vmem:[#allocation10 + $0xe18] sm:$0xff]
    %v2871 = vld [vmem:[#allocation10 + $0xe20] sm:$0xff]
    %v2872 = vld [vmem:[#allocation10 + $0xe28] sm:$0xff]
    %v2873 = vld [vmem:[#allocation10 + $0xe30] sm:$0xff]
    %v2874 = vld [vmem:[#allocation10 + $0xe38] sm:$0xff]
    %v2875 = vld [vmem:[#allocation10 + $0xe40] sm:$0xff]
    %v2876 = vld [vmem:[#allocation10 + $0xe48] sm:$0xff]
    %v2877 = vld [vmem:[#allocation10 + $0xe50] sm:$0xff]
    %v2878 = vld [vmem:[#allocation10 + $0xe58] sm:$0xff]
    %v2879 = vld [vmem:[#allocation10 + $0xe60] sm:$0xff]
    %v2880 = vld [vmem:[#allocation10 + $0xe68] sm:$0xff]
    %v2881 = vld [vmem:[#allocation10 + $0xe70] sm:$0xff]
    %v2882 = vld [vmem:[#allocation10 + $0xe78] sm:$0xff]
    %v2883 = vld [vmem:[#allocation10 + $0xe80] sm:$0xff]
    %v2884 = vld [vmem:[#allocation10 + $0xe88] sm:$0xff]
    %v2885 = vld [vmem:[#allocation10 + $0xe90] sm:$0xff]
    %v2886 = vld [vmem:[#allocation10 + $0xe98] sm:$0xff]
    %v2887 = vld [vmem:[#allocation10 + $0xea0] sm:$0xff]
    %v2888 = vld [vmem:[#allocation10 + $0xea8] sm:$0xff]
    %v2889 = vld [vmem:[#allocation10 + $0xeb0] sm:$0xff]
    %v2890 = vld [vmem:[#allocation10 + $0xeb8] sm:$0xff]
    %v2891 = vld [vmem:[#allocation10 + $0xec0] sm:$0xff]
    %v2892 = vld [vmem:[#allocation10 + $0xec8] sm:$0xff]
    %v2893 = vld [vmem:[#allocation10 + $0xed0] sm:$0xff]
    %v2894 = vld [vmem:[#allocation10 + $0xed8] sm:$0xff]
    %v2895 = vld [vmem:[#allocation10 + $0xee0] sm:$0xff]
    %v2896 = vld [vmem:[#allocation10 + $0xee8] sm:$0xff]
    %v2897 = vld [vmem:[#allocation10 + $0xef0] sm:$0xff]
    %v2898 = vld [vmem:[#allocation10 + $0xef8] sm:$0xff]
    %v2899 = vld [vmem:[#allocation10 + $0xf00] sm:$0xff]
    %v2900 = vld [vmem:[#allocation10 + $0xf08] sm:$0xff]
    %v2901 = vld [vmem:[#allocation10 + $0xf10] sm:$0xff]
    %v2902 = vld [vmem:[#allocation10 + $0xf18] sm:$0xff]
    %v2903 = vld [vmem:[#allocation10 + $0xf20] sm:$0xff]
    %v2904 = vld [vmem:[#allocation10 + $0xf28] sm:$0xff]
    %v2905 = vld [vmem:[#allocation10 + $0xf30] sm:$0xff]
    %v2906 = vld [vmem:[#allocation10 + $0xf38] sm:$0xff]
    %v2907 = vld [vmem:[#allocation10 + $0xf40] sm:$0xff]
    %v2908 = vld [vmem:[#allocation10 + $0xf48] sm:$0xff]
    %v2909 = vld [vmem:[#allocation10 + $0xf50] sm:$0xff]
    %v2910 = vld [vmem:[#allocation10 + $0xf58] sm:$0xff]
    %v2911 = vld [vmem:[#allocation10 + $0xf60] sm:$0xff]
    %v2912 = vld [vmem:[#allocation10 + $0xf68] sm:$0xff]
    %v2913 = vld [vmem:[#allocation10 + $0xf70] sm:$0xff]
    %v2914 = vld [vmem:[#allocation10 + $0xf78] sm:$0xff]
    %v2915 = vld [vmem:[#allocation10 + $0xf80] sm:$0xff]
    %v2916 = vld [vmem:[#allocation10 + $0xf88] sm:$0xff]
    %v2917 = vld [vmem:[#allocation10 + $0xf90] sm:$0xff]
    %v2918 = vld [vmem:[#allocation10 + $0xf98] sm:$0xff]
    %v2919 = vld [vmem:[#allocation10 + $0xfa0] sm:$0xff]
    %v2920 = vld [vmem:[#allocation10 + $0xfa8] sm:$0xff]
    %v2921 = vld [vmem:[#allocation10 + $0xfb0] sm:$0xff]
    %v2922 = vld [vmem:[#allocation10 + $0xfb8] sm:$0xff]
    %v2923 = vld [vmem:[#allocation10 + $0xfc0] sm:$0xff]
    %v2924 = vld [vmem:[#allocation10 + $0xfc8] sm:$0xff]
    %v2925 = vld [vmem:[#allocation10 + $0xfd0] sm:$0xff]
    %v2926 = vld [vmem:[#allocation10 + $0xfd8] sm:$0xff]
    %v2927 = vld [vmem:[#allocation10 + $0xfe0] sm:$0xff]
    %v2928 = vld [vmem:[#allocation10 + $0xfe8] sm:$0xff]
    %v2929 = vld [vmem:[#allocation10 + $0xff0] sm:$0xff]
    %v2930 = vld [vmem:[#allocation10 + $0xff8] sm:$0xff]
    %v2931 = vld [vmem:[#allocation10 + $0x1000] sm:$0xff]
    %v2932 = vld [vmem:[#allocation10 + $0x1008] sm:$0xff]
    %v2933 = vld [vmem:[#allocation10 + $0x1010] sm:$0xff]
    %v2934 = vld [vmem:[#allocation10 + $0x1018] sm:$0xff]
    %v2935 = vld [vmem:[#allocation10 + $0x1020] sm:$0xff]
    %v2936 = vld [vmem:[#allocation10 + $0x1028] sm:$0xff]
    %v2937 = vld [vmem:[#allocation10 + $0x1030] sm:$0xff]
    %v2938 = vld [vmem:[#allocation10 + $0x1038] sm:$0xff]
    %v2939 = vld [vmem:[#allocation10 + $0x1040] sm:$0xff]
    %v2940 = vld [vmem:[#allocation10 + $0x1048] sm:$0xff]
    %v2941 = vld [vmem:[#allocation10 + $0x1050] sm:$0xff]
    %v2942 = vld [vmem:[#allocation10 + $0x1058] sm:$0xff]
    %v2943 = vld [vmem:[#allocation10 + $0x1060] sm:$0xff]
    %v2944 = vld [vmem:[#allocation10 + $0x1068] sm:$0xff]
    %v2945 = vld [vmem:[#allocation10 + $0x1070] sm:$0xff]
    %v2946 = vld [vmem:[#allocation10 + $0x1078] sm:$0xff]
    %v2947 = vld [vmem:[#allocation10 + $0x1080] sm:$0xff]
    %v2948 = vld [vmem:[#allocation10 + $0x1088] sm:$0xff]
    %v2949 = vld [vmem:[#allocation10 + $0x1090] sm:$0xff]
    %v2950 = vld [vmem:[#allocation10 + $0x1098] sm:$0xff]
    %v2951 = vld [vmem:[#allocation10 + $0x10a0] sm:$0xff]
    %v2952 = vld [vmem:[#allocation10 + $0x10a8] sm:$0xff]
    %v2953 = vld [vmem:[#allocation10 + $0x10b0] sm:$0xff]
    %v2954 = vld [vmem:[#allocation10 + $0x10b8] sm:$0xff]
    %v2955 = vld [vmem:[#allocation10 + $0x10c0] sm:$0xff]
    %v2956 = vld [vmem:[#allocation10 + $0x10c8] sm:$0xff]
    %v2957 = vld [vmem:[#allocation10 + $0x10d0] sm:$0xff]
    %v2958 = vld [vmem:[#allocation10 + $0x10d8] sm:$0xff]
    %v2959 = vld [vmem:[#allocation10 + $0x10e0] sm:$0xff]
    %v2960 = vld [vmem:[#allocation10 + $0x10e8] sm:$0xff]
    %v2961 = vld [vmem:[#allocation10 + $0x10f0] sm:$0xff]
    %v2962 = vld [vmem:[#allocation10 + $0x10f8] sm:$0xff]
    %v2963 = vld [vmem:[#allocation10 + $0x1100] sm:$0xff]
    %v2964 = vld [vmem:[#allocation10 + $0x1108] sm:$0xff]
    %v2965 = vld [vmem:[#allocation10 + $0x1110] sm:$0xff]
    %v2966 = vld [vmem:[#allocation10 + $0x1118] sm:$0xff]
    %v2967 = vld [vmem:[#allocation10 + $0x1120] sm:$0xff]
    %v2968 = vld [vmem:[#allocation10 + $0x1128] sm:$0xff]
    %v2969 = vld [vmem:[#allocation10 + $0x1130] sm:$0xff]
    %v2970 = vld [vmem:[#allocation10 + $0x1138] sm:$0xff]
    %v2971 = vld [vmem:[#allocation10 + $0x1140] sm:$0xff]
    %v2972 = vld [vmem:[#allocation10 + $0x1148] sm:$0xff]
    %v2973 = vld [vmem:[#allocation10 + $0x1150] sm:$0xff]
    %v2974 = vld [vmem:[#allocation10 + $0x1158] sm:$0xff]
    %v2975 = vld [vmem:[#allocation10 + $0x1160] sm:$0xff]
    %v2976 = vld [vmem:[#allocation10 + $0x1168] sm:$0xff]
    %v2977 = vld [vmem:[#allocation10 + $0x1170] sm:$0xff]
    %v2978 = vld [vmem:[#allocation10 + $0x1178] sm:$0xff]
    %v2979 = vld [vmem:[#allocation10 + $0x1180] sm:$0xff]
    %v2980 = vld [vmem:[#allocation10 + $0x1188] sm:$0xff]
    %v2981 = vld [vmem:[#allocation10 + $0x1190] sm:$0xff]
    %v2982 = vld [vmem:[#allocation10 + $0x1198] sm:$0xff]
    %v2983 = vld [vmem:[#allocation10 + $0x11a0] sm:$0xff]
    %v2984 = vld [vmem:[#allocation10 + $0x11a8] sm:$0xff]
    %v2985 = vld [vmem:[#allocation10 + $0x11b0] sm:$0xff]
    %v2986 = vld [vmem:[#allocation10 + $0x11b8] sm:$0xff]
    %v2987 = vld [vmem:[#allocation10 + $0x11c0] sm:$0xff]
    %v2988 = vld [vmem:[#allocation10 + $0x11c8] sm:$0xff]
    %v2989 = vld [vmem:[#allocation10 + $0x11d0] sm:$0xff]
    %v2990 = vld [vmem:[#allocation10 + $0x11d8] sm:$0xff]
    %v2991 = vld [vmem:[#allocation10 + $0x11e0] sm:$0xff]
    %v2992 = vld [vmem:[#allocation10 + $0x11e8] sm:$0xff]
    %v2993 = vld [vmem:[#allocation10 + $0x11f0] sm:$0xff]
    %v2994 = vld [vmem:[#allocation10 + $0x11f8] sm:$0xff]
    %v2995 = vld [vmem:[#allocation10 + $0x1200] sm:$0xff]
    %v2996 = vld [vmem:[#allocation10 + $0x1208] sm:$0xff]
    %v2997 = vld [vmem:[#allocation10 + $0x1210] sm:$0xff]
    %v2998 = vld [vmem:[#allocation10 + $0x1218] sm:$0xff]
    %v2999 = vld [vmem:[#allocation10 + $0x1220] sm:$0xff]
    %v3000 = vld [vmem:[#allocation10 + $0x1228] sm:$0xff]
    %v3001 = vld [vmem:[#allocation10 + $0x1230] sm:$0xff]
    %v3002 = vld [vmem:[#allocation10 + $0x1238] sm:$0xff]
    %v3003 = vld [vmem:[#allocation10 + $0x1240] sm:$0xff]
    %v3004 = vld [vmem:[#allocation10 + $0x1248] sm:$0xff]
    %v3005 = vld [vmem:[#allocation10 + $0x1250] sm:$0xff]
    %v3006 = vld [vmem:[#allocation10 + $0x1258] sm:$0xff]
    %v3007 = vld [vmem:[#allocation10 + $0x1260] sm:$0xff]
    %v3008 = vld [vmem:[#allocation10 + $0x1268] sm:$0xff]
    %v3009 = vld [vmem:[#allocation10 + $0x1270] sm:$0xff]
    %v3010 = vld [vmem:[#allocation10 + $0x1278] sm:$0xff]
    %v3011 = vld [vmem:[#allocation10 + $0x1280] sm:$0xff]
    %v3012 = vld [vmem:[#allocation10 + $0x1288] sm:$0xff]
    %v3013 = vld [vmem:[#allocation10 + $0x1290] sm:$0xff]
    %v3014 = vld [vmem:[#allocation10 + $0x1298] sm:$0xff]
    %v3015 = vld [vmem:[#allocation10 + $0x12a0] sm:$0xff]
    %v3016 = vld [vmem:[#allocation10 + $0x12a8] sm:$0xff]
    %v3017 = vld [vmem:[#allocation10 + $0x12b0] sm:$0xff]
    %v3018 = vld [vmem:[#allocation10 + $0x12b8] sm:$0xff]
    %v3019 = vld [vmem:[#allocation10 + $0x12c0] sm:$0xff]
    %v3020 = vld [vmem:[#allocation10 + $0x12c8] sm:$0xff]
    %v3021 = vld [vmem:[#allocation10 + $0x12d0] sm:$0xff]
    %v3022 = vld [vmem:[#allocation10 + $0x12d8] sm:$0xff]
    %v3023 = vld [vmem:[#allocation10 + $0x12e0] sm:$0xff]
    %v3024 = vld [vmem:[#allocation10 + $0x12e8] sm:$0xff]
    %v3025 = vld [vmem:[#allocation10 + $0x12f0] sm:$0xff]
    %v3026 = vld [vmem:[#allocation10 + $0x12f8] sm:$0xff]
    %v3027 = vld [vmem:[#allocation10 + $0x1300] sm:$0xff]
    %v3028 = vld [vmem:[#allocation10 + $0x1308] sm:$0xff]
    %v3029 = vld [vmem:[#allocation10 + $0x1310] sm:$0xff]
    %v3030 = vld [vmem:[#allocation10 + $0x1318] sm:$0xff]
    %v3031 = vld [vmem:[#allocation10 + $0x1320] sm:$0xff]
    %v3032 = vld [vmem:[#allocation10 + $0x1328] sm:$0xff]
    %v3033 = vld [vmem:[#allocation10 + $0x1330] sm:$0xff]
    %v3034 = vld [vmem:[#allocation10 + $0x1338] sm:$0xff]
    %v3035 = vld [vmem:[#allocation10 + $0x1340] sm:$0xff]
    %v3036 = vld [vmem:[#allocation10 + $0x1348] sm:$0xff]
    %v3037 = vld [vmem:[#allocation10 + $0x1350] sm:$0xff]
    %v3038 = vld [vmem:[#allocation10 + $0x1358] sm:$0xff]
    %v3039 = vld [vmem:[#allocation10 + $0x1360] sm:$0xff]
    %v3040 = vld [vmem:[#allocation10 + $0x1368] sm:$0xff]
    %v3041 = vld [vmem:[#allocation10 + $0x1370] sm:$0xff]
    %v3042 = vld [vmem:[#allocation10 + $0x1378] sm:$0xff]
    %v3043 = vld [vmem:[#allocation10 + $0x1380] sm:$0xff]
    %v3044 = vld [vmem:[#allocation10 + $0x1388] sm:$0xff]
    %v3045 = vld [vmem:[#allocation10 + $0x1390] sm:$0xff]
    %v3046 = vld [vmem:[#allocation10 + $0x1398] sm:$0xff]
    %v3047 = vld [vmem:[#allocation10 + $0x13a0] sm:$0xff]
    %v3048 = vld [vmem:[#allocation10 + $0x13a8] sm:$0xff]
    %v3049 = vld [vmem:[#allocation10 + $0x13b0] sm:$0xff]
    %v3050 = vld [vmem:[#allocation10 + $0x13b8] sm:$0xff]
    %v3051 = vld [vmem:[#allocation10 + $0x13c0] sm:$0xff]
    %v3052 = vld [vmem:[#allocation10 + $0x13c8] sm:$0xff]
    %v3053 = vld [vmem:[#allocation10 + $0x13d0] sm:$0xff]
    %v3054 = vld [vmem:[#allocation10 + $0x13d8] sm:$0xff]
    %v3055 = vld [vmem:[#allocation10 + $0x13e0] sm:$0xff]
    %v3056 = vld [vmem:[#allocation10 + $0x13e8] sm:$0xff]
    %v3057 = vld [vmem:[#allocation10 + $0x13f0] sm:$0xff]
    %v3058 = vld [vmem:[#allocation10 + $0x13f8] sm:$0xff]
    %v3059 = vld [vmem:[#allocation10 + $0x1400] sm:$0xff]
    %v3060 = vld [vmem:[#allocation10 + $0x1408] sm:$0xff]
    %v3061 = vld [vmem:[#allocation10 + $0x1410] sm:$0xff]
    %v3062 = vld [vmem:[#allocation10 + $0x1418] sm:$0xff]
    %v3063 = vld [vmem:[#allocation10 + $0x1420] sm:$0xff]
    %v3064 = vld [vmem:[#allocation10 + $0x1428] sm:$0xff]
    %v3065 = vld [vmem:[#allocation10 + $0x1430] sm:$0xff]
    %v3066 = vld [vmem:[#allocation10 + $0x1438] sm:$0xff]
    %v3067 = vld [vmem:[#allocation10 + $0x1440] sm:$0xff]
    %v3068 = vld [vmem:[#allocation10 + $0x1448] sm:$0xff]
    %v3069 = vld [vmem:[#allocation10 + $0x1450] sm:$0xff]
    %v3070 = vld [vmem:[#allocation10 + $0x1458] sm:$0xff]
    %v3071 = vld [vmem:[#allocation10 + $0x1460] sm:$0xff]
    %v3072 = vld [vmem:[#allocation10 + $0x1468] sm:$0xff]
    %v3073 = vld [vmem:[#allocation10 + $0x1470] sm:$0xff]
    %v3074 = vld [vmem:[#allocation10 + $0x1478] sm:$0xff]
    %v3075 = vld [vmem:[#allocation10 + $0x1480] sm:$0xff]
    %v3076 = vld [vmem:[#allocation10 + $0x1488] sm:$0xff]
    %v3077 = vld [vmem:[#allocation10 + $0x1490] sm:$0xff]
    %v3078 = vld [vmem:[#allocation10 + $0x1498] sm:$0xff]
    %v3079 = vld [vmem:[#allocation10 + $0x14a0] sm:$0xff]
    %v3080 = vld [vmem:[#allocation10 + $0x14a8] sm:$0xff]
    %v3081 = vld [vmem:[#allocation10 + $0x14b0] sm:$0xff]
    %v3082 = vld [vmem:[#allocation10 + $0x14b8] sm:$0xff]
    %v3083 = vld [vmem:[#allocation10 + $0x14c0] sm:$0xff]
    %v3084 = vld [vmem:[#allocation10 + $0x14c8] sm:$0xff]
    %v3085 = vld [vmem:[#allocation10 + $0x14d0] sm:$0xff]
    %v3086 = vld [vmem:[#allocation10 + $0x14d8] sm:$0xff]
    %v3087 = vld [vmem:[#allocation10 + $0x14e0] sm:$0xff]
    %v3088 = vld [vmem:[#allocation10 + $0x14e8] sm:$0xff]
    %v3089 = vld [vmem:[#allocation10 + $0x14f0] sm:$0xff]
    %v3090 = vld [vmem:[#allocation10 + $0x14f8] sm:$0xff]
    %v3091 = vld [vmem:[#allocation10 + $0x1500] sm:$0xff]
    %v3092 = vld [vmem:[#allocation10 + $0x1508] sm:$0xff]
    %v3093 = vld [vmem:[#allocation10 + $0x1510] sm:$0xff]
    %v3094 = vld [vmem:[#allocation10 + $0x1518] sm:$0xff]
    %v3095 = vld [vmem:[#allocation10 + $0x1520] sm:$0xff]
    %v3096 = vld [vmem:[#allocation10 + $0x1528] sm:$0xff]
    %v3097 = vld [vmem:[#allocation10 + $0x1530] sm:$0xff]
    %v3098 = vld [vmem:[#allocation10 + $0x1538] sm:$0xff]
    %v3099 = vld [vmem:[#allocation10 + $0x1540] sm:$0xff]
    %v3100 = vld [vmem:[#allocation10 + $0x1548] sm:$0xff]
    %v3101 = vld [vmem:[#allocation10 + $0x1550] sm:$0xff]
    %v3102 = vld [vmem:[#allocation10 + $0x1558] sm:$0xff]
    %v3103 = vld [vmem:[#allocation10 + $0x1560] sm:$0xff]
    %v3104 = vld [vmem:[#allocation10 + $0x1568] sm:$0xff]
    %v3105 = vld [vmem:[#allocation10 + $0x1570] sm:$0xff]
    %v3106 = vld [vmem:[#allocation10 + $0x1578] sm:$0xff]
    %v3107 = vld [vmem:[#allocation10 + $0x1580] sm:$0xff]
    %v3108 = vld [vmem:[#allocation10 + $0x1588] sm:$0xff]
    %v3109 = vld [vmem:[#allocation10 + $0x1590] sm:$0xff]
    %v3110 = vld [vmem:[#allocation10 + $0x1598] sm:$0xff]
    %v3111 = vld [vmem:[#allocation10 + $0x15a0] sm:$0xff]
    %v3112 = vld [vmem:[#allocation10 + $0x15a8] sm:$0xff]
    %v3113 = vld [vmem:[#allocation10 + $0x15b0] sm:$0xff]
    %v3114 = vld [vmem:[#allocation10 + $0x15b8] sm:$0xff]
    %v3115 = vld [vmem:[#allocation10 + $0x15c0] sm:$0xff]
    %v3116 = vld [vmem:[#allocation10 + $0x15c8] sm:$0xff]
    %v3117 = vld [vmem:[#allocation10 + $0x15d0] sm:$0xff]
    %v3118 = vld [vmem:[#allocation10 + $0x15d8] sm:$0xff]
    %v3119 = vld [vmem:[#allocation10 + $0x15e0] sm:$0xff]
    %v3120 = vld [vmem:[#allocation10 + $0x15e8] sm:$0xff]
    %v3121 = vld [vmem:[#allocation10 + $0x15f0] sm:$0xff]
    %v3122 = vld [vmem:[#allocation10 + $0x15f8] sm:$0xff]
    %v3123 = vld [vmem:[#allocation10 + $0x1600] sm:$0xff]
    %v3124 = vld [vmem:[#allocation10 + $0x1608] sm:$0xff]
    %v3125 = vld [vmem:[#allocation10 + $0x1610] sm:$0xff]
    %v3126 = vld [vmem:[#allocation10 + $0x1618] sm:$0xff]
    %v3127 = vld [vmem:[#allocation10 + $0x1620] sm:$0xff]
    %v3128 = vld [vmem:[#allocation10 + $0x1628] sm:$0xff]
    %v3129 = vld [vmem:[#allocation10 + $0x1630] sm:$0xff]
    %v3130 = vld [vmem:[#allocation10 + $0x1638] sm:$0xff]
    %v3131 = vld [vmem:[#allocation10 + $0x1640] sm:$0xff]
    %v3132 = vld [vmem:[#allocation10 + $0x1648] sm:$0xff]
    %v3133 = vld [vmem:[#allocation10 + $0x1650] sm:$0xff]
    %v3134 = vld [vmem:[#allocation10 + $0x1658] sm:$0xff]
    %v3135 = vld [vmem:[#allocation10 + $0x1660] sm:$0xff]
    %v3136 = vld [vmem:[#allocation10 + $0x1668] sm:$0xff]
    %v3137 = vld [vmem:[#allocation10 + $0x1670] sm:$0xff]
    %v3138 = vld [vmem:[#allocation10 + $0x1678] sm:$0xff]
    %v3139 = vld [vmem:[#allocation10 + $0x1680] sm:$0xff]
    %v3140 = vld [vmem:[#allocation10 + $0x1688] sm:$0xff]
    %v3141 = vld [vmem:[#allocation10 + $0x1690] sm:$0xff]
    %v3142 = vld [vmem:[#allocation10 + $0x1698] sm:$0xff]
    %v3143 = vld [vmem:[#allocation10 + $0x16a0] sm:$0xff]
    %v3144 = vld [vmem:[#allocation10 + $0x16a8] sm:$0xff]
    %v3145 = vld [vmem:[#allocation10 + $0x16b0] sm:$0xff]
    %v3146 = vld [vmem:[#allocation10 + $0x16b8] sm:$0xff]
    %v3147 = vld [vmem:[#allocation10 + $0x16c0] sm:$0xff]
    %v3148 = vld [vmem:[#allocation10 + $0x16c8] sm:$0xff]
    %v3149 = vld [vmem:[#allocation10 + $0x16d0] sm:$0xff]
    %v3150 = vld [vmem:[#allocation10 + $0x16d8] sm:$0xff]
    %v3151 = vld [vmem:[#allocation10 + $0x16e0] sm:$0xff]
    %v3152 = vld [vmem:[#allocation10 + $0x16e8] sm:$0xff]
    %v3153 = vld [vmem:[#allocation10 + $0x16f0] sm:$0xff]
    %v3154 = vld [vmem:[#allocation10 + $0x16f8] sm:$0xff]
    %v3155 = vld [vmem:[#allocation10 + $0x1700] sm:$0xff]
    %v3156 = vld [vmem:[#allocation10 + $0x1708] sm:$0xff]
    %v3157 = vld [vmem:[#allocation10 + $0x1710] sm:$0xff]
    %v3158 = vld [vmem:[#allocation10 + $0x1718] sm:$0xff]
    %v3159 = vld [vmem:[#allocation10 + $0x1720] sm:$0xff]
    %v3160 = vld [vmem:[#allocation10 + $0x1728] sm:$0xff]
    %v3161 = vld [vmem:[#allocation10 + $0x1730] sm:$0xff]
    %v3162 = vld [vmem:[#allocation10 + $0x1738] sm:$0xff]
    %v3163 = vld [vmem:[#allocation10 + $0x1740] sm:$0xff]
    %v3164 = vld [vmem:[#allocation10 + $0x1748] sm:$0xff]
    %v3165 = vld [vmem:[#allocation10 + $0x1750] sm:$0xff]
    %v3166 = vld [vmem:[#allocation10 + $0x1758] sm:$0xff]
    %v3167 = vld [vmem:[#allocation10 + $0x1760] sm:$0xff]
    %v3168 = vld [vmem:[#allocation10 + $0x1768] sm:$0xff]
    %v3169 = vld [vmem:[#allocation10 + $0x1770] sm:$0xff]
    %v3170 = vld [vmem:[#allocation10 + $0x1778] sm:$0xff]
    %v3171 = vld [vmem:[#allocation10 + $0x1780] sm:$0xff]
    %v3172 = vld [vmem:[#allocation10 + $0x1788] sm:$0xff]
    %v3173 = vld [vmem:[#allocation10 + $0x1790] sm:$0xff]
    %v3174 = vld [vmem:[#allocation10 + $0x1798] sm:$0xff]
    %v3175 = vld [vmem:[#allocation10 + $0x17a0] sm:$0xff]
    %v3176 = vld [vmem:[#allocation10 + $0x17a8] sm:$0xff]
    %v3177 = vld [vmem:[#allocation10 + $0x17b0] sm:$0xff]
    %v3178 = vld [vmem:[#allocation10 + $0x17b8] sm:$0xff]
    %v3179 = vld [vmem:[#allocation10 + $0x17c0] sm:$0xff]
    %v3180 = vld [vmem:[#allocation10 + $0x17c8] sm:$0xff]
    %v3181 = vld [vmem:[#allocation10 + $0x17d0] sm:$0xff]
    %v3182 = vld [vmem:[#allocation10 + $0x17d8] sm:$0xff]
    %v3183 = vld [vmem:[#allocation10 + $0x17e0] sm:$0xff]
    %v3184 = vld [vmem:[#allocation10 + $0x17e8] sm:$0xff]
    %v3185 = vld [vmem:[#allocation10 + $0x17f0] sm:$0xff]
    %v3186 = vld [vmem:[#allocation10 + $0x17f8] sm:$0xff]
    %v3187 = vld [vmem:[#allocation10 + $0x1800] sm:$0xff]
    %v3188 = vld [vmem:[#allocation10 + $0x1808] sm:$0xff]
    %v3189 = vld [vmem:[#allocation10 + $0x1810] sm:$0xff]
    %v3190 = vld [vmem:[#allocation10 + $0x1818] sm:$0xff]
    %v3191 = vld [vmem:[#allocation10 + $0x1820] sm:$0xff]
    %v3192 = vld [vmem:[#allocation10 + $0x1828] sm:$0xff]
    %v3193 = vld [vmem:[#allocation10 + $0x1830] sm:$0xff]
    %v3194 = vld [vmem:[#allocation10 + $0x1838] sm:$0xff]
    %v3195 = vld [vmem:[#allocation10 + $0x1840] sm:$0xff]
    %v3196 = vld [vmem:[#allocation10 + $0x1848] sm:$0xff]
    %v3197 = vld [vmem:[#allocation10 + $0x1850] sm:$0xff]
    %v3198 = vld [vmem:[#allocation10 + $0x1858] sm:$0xff]
    %v3199 = vld [vmem:[#allocation10 + $0x1860] sm:$0xff]
    %v3200 = vld [vmem:[#allocation10 + $0x1868] sm:$0xff]
    %v3201 = vld [vmem:[#allocation10 + $0x1870] sm:$0xff]
    %v3202 = vld [vmem:[#allocation10 + $0x1878] sm:$0xff]
    %v3203 = vld [vmem:[#allocation10 + $0x1880] sm:$0xff]
    %v3204 = vld [vmem:[#allocation10 + $0x1888] sm:$0xff]
    %v3205 = vld [vmem:[#allocation10 + $0x1890] sm:$0xff]
    %v3206 = vld [vmem:[#allocation10 + $0x1898] sm:$0xff]
    %v3207 = vld [vmem:[#allocation10 + $0x18a0] sm:$0xff]
    %v3208 = vld [vmem:[#allocation10 + $0x18a8] sm:$0xff]
    %v3209 = vld [vmem:[#allocation10 + $0x18b0] sm:$0xff]
    %v3210 = vld [vmem:[#allocation10 + $0x18b8] sm:$0xff]
    %v3211 = vld [vmem:[#allocation10 + $0x18c0] sm:$0xff]
    %v3212 = vld [vmem:[#allocation10 + $0x18c8] sm:$0xff]
    %v3213 = vld [vmem:[#allocation10 + $0x18d0] sm:$0xff]
    %v3214 = vld [vmem:[#allocation10 + $0x18d8] sm:$0xff]
    %v3215 = vld [vmem:[#allocation10 + $0x18e0] sm:$0xff]
    %v3216 = vld [vmem:[#allocation10 + $0x18e8] sm:$0xff]
    %v3217 = vld [vmem:[#allocation10 + $0x18f0] sm:$0xff]
    %v3218 = vld [vmem:[#allocation10 + $0x18f8] sm:$0xff]
    %v3219 = vld [vmem:[#allocation10 + $0x1900] sm:$0xff]
    %v3220 = vld [vmem:[#allocation10 + $0x1908] sm:$0xff]
    %v3221 = vld [vmem:[#allocation10 + $0x1910] sm:$0xff]
    %v3222 = vld [vmem:[#allocation10 + $0x1918] sm:$0xff]
    %v3223 = vld [vmem:[#allocation10 + $0x1920] sm:$0xff]
    %v3224 = vld [vmem:[#allocation10 + $0x1928] sm:$0xff]
    %v3225 = vld [vmem:[#allocation10 + $0x1930] sm:$0xff]
    %v3226 = vld [vmem:[#allocation10 + $0x1938] sm:$0xff]
    %v3227 = vld [vmem:[#allocation10 + $0x1940] sm:$0xff]
    %v3228 = vld [vmem:[#allocation10 + $0x1948] sm:$0xff]
    %v3229 = vld [vmem:[#allocation10 + $0x1950] sm:$0xff]
    %v3230 = vld [vmem:[#allocation10 + $0x1958] sm:$0xff]
    %v3231 = vld [vmem:[#allocation10 + $0x1960] sm:$0xff]
    %v3232 = vld [vmem:[#allocation10 + $0x1968] sm:$0xff]
    %v3233 = vld [vmem:[#allocation10 + $0x1970] sm:$0xff]
    %v3234 = vld [vmem:[#allocation10 + $0x1978] sm:$0xff]
    %v3235 = vld [vmem:[#allocation10 + $0x1980] sm:$0xff]
    %v3236 = vld [vmem:[#allocation10 + $0x1988] sm:$0xff]
    %v3237 = vld [vmem:[#allocation10 + $0x1990] sm:$0xff]
    %v3238 = vld [vmem:[#allocation10 + $0x1998] sm:$0xff]
    %v3239 = vld [vmem:[#allocation10 + $0x19a0] sm:$0xff]
    %v3240 = vld [vmem:[#allocation10 + $0x19a8] sm:$0xff]
    %v3241 = vld [vmem:[#allocation10 + $0x19b0] sm:$0xff]
    %v3242 = vld [vmem:[#allocation10 + $0x19b8] sm:$0xff]
    %v3243 = vld [vmem:[#allocation10 + $0x19c0] sm:$0xff]
    %v3244 = vld [vmem:[#allocation10 + $0x19c8] sm:$0xff]
    %v3245 = vld [vmem:[#allocation10 + $0x19d0] sm:$0xff]
    %v3246 = vld [vmem:[#allocation10 + $0x19d8] sm:$0xff]
    %v3247 = vld [vmem:[#allocation10 + $0x19e0] sm:$0xff]
    %v3248 = vld [vmem:[#allocation10 + $0x19e8] sm:$0xff]
    %v3249 = vld [vmem:[#allocation10 + $0x19f0] sm:$0xff]
    %v3250 = vld [vmem:[#allocation10 + $0x19f8] sm:$0xff]
    %v3251 = vld [vmem:[#allocation10 + $0x1a00] sm:$0xff]
    %v3252 = vld [vmem:[#allocation10 + $0x1a08] sm:$0xff]
    %v3253 = vld [vmem:[#allocation10 + $0x1a10] sm:$0xff]
    %v3254 = vld [vmem:[#allocation10 + $0x1a18] sm:$0xff]
    %v3255 = vld [vmem:[#allocation10 + $0x1a20] sm:$0xff]
    %v3256 = vld [vmem:[#allocation10 + $0x1a28] sm:$0xff]
    %v3257 = vld [vmem:[#allocation10 + $0x1a30] sm:$0xff]
    %v3258 = vld [vmem:[#allocation10 + $0x1a38] sm:$0xff]
    %v3259 = vld [vmem:[#allocation10 + $0x1a40] sm:$0xff]
    %v3260 = vld [vmem:[#allocation10 + $0x1a48] sm:$0xff]
    %v3261 = vld [vmem:[#allocation10 + $0x1a50] sm:$0xff]
    %v3262 = vld [vmem:[#allocation10 + $0x1a58] sm:$0xff]
    %v3263 = vld [vmem:[#allocation10 + $0x1a60] sm:$0xff]
    %v3264 = vld [vmem:[#allocation10 + $0x1a68] sm:$0xff]
    %v3265 = vld [vmem:[#allocation10 + $0x1a70] sm:$0xff]
    %v3266 = vld [vmem:[#allocation10 + $0x1a78] sm:$0xff]
    %v3267 = vld [vmem:[#allocation10 + $0x1a80] sm:$0xff]
    %v3268 = vld [vmem:[#allocation10 + $0x1a88] sm:$0xff]
    %v3269 = vld [vmem:[#allocation10 + $0x1a90] sm:$0xff]
    %v3270 = vld [vmem:[#allocation10 + $0x1a98] sm:$0xff]
    %v3271 = vld [vmem:[#allocation10 + $0x1aa0] sm:$0xff]
    %v3272 = vld [vmem:[#allocation10 + $0x1aa8] sm:$0xff]
    %v3273 = vld [vmem:[#allocation10 + $0x1ab0] sm:$0xff]
    %v3274 = vld [vmem:[#allocation10 + $0x1ab8] sm:$0xff]
    %v3275 = vld [vmem:[#allocation10 + $0x1ac0] sm:$0xff]
    %v3276 = vld [vmem:[#allocation10 + $0x1ac8] sm:$0xff]
    %v3277 = vld [vmem:[#allocation10 + $0x1ad0] sm:$0xff]
    %v3278 = vld [vmem:[#allocation10 + $0x1ad8] sm:$0xff]
    %v3279 = vld [vmem:[#allocation10 + $0x1ae0] sm:$0xff]
    %v3280 = vld [vmem:[#allocation10 + $0x1ae8] sm:$0xff]
    %v3281 = vld [vmem:[#allocation10 + $0x1af0] sm:$0xff]
    %v3282 = vld [vmem:[#allocation10 + $0x1af8] sm:$0xff]
    %v3283 = vld [vmem:[#allocation10 + $0x1b00] sm:$0xff]
    %v3284 = vld [vmem:[#allocation10 + $0x1b08] sm:$0xff]
    %v3285 = vld [vmem:[#allocation10 + $0x1b10] sm:$0xff]
    %v3286 = vld [vmem:[#allocation10 + $0x1b18] sm:$0xff]
    %v3287 = vld [vmem:[#allocation10 + $0x1b20] sm:$0xff]
    %v3288 = vld [vmem:[#allocation10 + $0x1b28] sm:$0xff]
    %v3289 = vld [vmem:[#allocation10 + $0x1b30] sm:$0xff]
    %v3290 = vld [vmem:[#allocation10 + $0x1b38] sm:$0xff]
    %v3291 = vld [vmem:[#allocation10 + $0x1b40] sm:$0xff]
    %v3292 = vld [vmem:[#allocation10 + $0x1b48] sm:$0xff]
    %v3293 = vld [vmem:[#allocation10 + $0x1b50] sm:$0xff]
    %v3294 = vld [vmem:[#allocation10 + $0x1b58] sm:$0xff]
    %v3295 = vld [vmem:[#allocation10 + $0x1b60] sm:$0xff]
    %v3296 = vld [vmem:[#allocation10 + $0x1b68] sm:$0xff]
    %v3297 = vld [vmem:[#allocation10 + $0x1b70] sm:$0xff]
    %v3298 = vld [vmem:[#allocation10 + $0x1b78] sm:$0xff]
    %v3299 = vld [vmem:[#allocation10 + $0x1b80] sm:$0xff]
    %v3300 = vld [vmem:[#allocation10 + $0x1b88] sm:$0xff]
    %v3301 = vld [vmem:[#allocation10 + $0x1b90] sm:$0xff]
    %v3302 = vld [vmem:[#allocation10 + $0x1b98] sm:$0xff]
    %v3303 = vld [vmem:[#allocation10 + $0x1ba0] sm:$0xff]
    %v3304 = vld [vmem:[#allocation10 + $0x1ba8] sm:$0xff]
    %v3305 = vld [vmem:[#allocation10 + $0x1bb0] sm:$0xff]
    %v3306 = vld [vmem:[#allocation10 + $0x1bb8] sm:$0xff]
    %v3307 = vld [vmem:[#allocation10 + $0x1bc0] sm:$0xff]
    %v3308 = vld [vmem:[#allocation10 + $0x1bc8] sm:$0xff]
    %v3309 = vld [vmem:[#allocation10 + $0x1bd0] sm:$0xff]
    %v3310 = vld [vmem:[#allocation10 + $0x1bd8] sm:$0xff]
    %v3311 = vld [vmem:[#allocation10 + $0x1be0] sm:$0xff]
    %v3312 = vld [vmem:[#allocation10 + $0x1be8] sm:$0xff]
    %v3313 = vld [vmem:[#allocation10 + $0x1bf0] sm:$0xff]
    %v3314 = vld [vmem:[#allocation10 + $0x1bf8] sm:$0xff]
    %v3315 = vld [vmem:[#allocation10 + $0x1c00] sm:$0xff]
    %v3316 = vld [vmem:[#allocation10 + $0x1c08] sm:$0xff]
    %v3317 = vld [vmem:[#allocation10 + $0x1c10] sm:$0xff]
    %v3318 = vld [vmem:[#allocation10 + $0x1c18] sm:$0xff]
    %v3319 = vld [vmem:[#allocation10 + $0x1c20] sm:$0xff]
    %v3320 = vld [vmem:[#allocation10 + $0x1c28] sm:$0xff]
    %v3321 = vld [vmem:[#allocation10 + $0x1c30] sm:$0xff]
    %v3322 = vld [vmem:[#allocation10 + $0x1c38] sm:$0xff]
    %v3323 = vld [vmem:[#allocation10 + $0x1c40] sm:$0xff]
    %v3324 = vld [vmem:[#allocation10 + $0x1c48] sm:$0xff]
    %v3325 = vld [vmem:[#allocation10 + $0x1c50] sm:$0xff]
    %v3326 = vld [vmem:[#allocation10 + $0x1c58] sm:$0xff]
    %v3327 = vld [vmem:[#allocation10 + $0x1c60] sm:$0xff]
    %v3328 = vld [vmem:[#allocation10 + $0x1c68] sm:$0xff]
    %v3329 = vld [vmem:[#allocation10 + $0x1c70] sm:$0xff]
    %v3330 = vld [vmem:[#allocation10 + $0x1c78] sm:$0xff]
    %v3331 = vld [vmem:[#allocation10 + $0x1c80] sm:$0xff]
    %v3332 = vld [vmem:[#allocation10 + $0x1c88] sm:$0xff]
    %v3333 = vld [vmem:[#allocation10 + $0x1c90] sm:$0xff]
    %v3334 = vld [vmem:[#allocation10 + $0x1c98] sm:$0xff]
    %v3335 = vld [vmem:[#allocation10 + $0x1ca0] sm:$0xff]
    %v3336 = vld [vmem:[#allocation10 + $0x1ca8] sm:$0xff]
    %v3337 = vld [vmem:[#allocation10 + $0x1cb0] sm:$0xff]
    %v3338 = vld [vmem:[#allocation10 + $0x1cb8] sm:$0xff]
    %v3339 = vld [vmem:[#allocation10 + $0x1cc0] sm:$0xff]
    %v3340 = vld [vmem:[#allocation10 + $0x1cc8] sm:$0xff]
    %v3341 = vld [vmem:[#allocation10 + $0x1cd0] sm:$0xff]
    %v3342 = vld [vmem:[#allocation10 + $0x1cd8] sm:$0xff]
    %v3343 = vld [vmem:[#allocation10 + $0x1ce0] sm:$0xff]
    %v3344 = vld [vmem:[#allocation10 + $0x1ce8] sm:$0xff]
    %v3345 = vld [vmem:[#allocation10 + $0x1cf0] sm:$0xff]
    %v3346 = vld [vmem:[#allocation10 + $0x1cf8] sm:$0xff]
    %v3347 = vld [vmem:[#allocation10 + $0x1d00] sm:$0xff]
    %v3348 = vld [vmem:[#allocation10 + $0x1d08] sm:$0xff]
    %v3349 = vld [vmem:[#allocation10 + $0x1d10] sm:$0xff]
    %v3350 = vld [vmem:[#allocation10 + $0x1d18] sm:$0xff]
    %v3351 = vld [vmem:[#allocation10 + $0x1d20] sm:$0xff]
    %v3352 = vld [vmem:[#allocation10 + $0x1d28] sm:$0xff]
    %v3353 = vld [vmem:[#allocation10 + $0x1d30] sm:$0xff]
    %v3354 = vld [vmem:[#allocation10 + $0x1d38] sm:$0xff]
    %v3355 = vld [vmem:[#allocation10 + $0x1d40] sm:$0xff]
    %v3356 = vld [vmem:[#allocation10 + $0x1d48] sm:$0xff]
    %v3357 = vld [vmem:[#allocation10 + $0x1d50] sm:$0xff]
    %v3358 = vld [vmem:[#allocation10 + $0x1d58] sm:$0xff]
    %v3359 = vld [vmem:[#allocation10 + $0x1d60] sm:$0xff]
    %v3360 = vld [vmem:[#allocation10 + $0x1d68] sm:$0xff]
    %v3361 = vld [vmem:[#allocation10 + $0x1d70] sm:$0xff]
    %v3362 = vld [vmem:[#allocation10 + $0x1d78] sm:$0xff]
    %v3363 = vld [vmem:[#allocation10 + $0x1d80] sm:$0xff]
    %v3364 = vld [vmem:[#allocation10 + $0x1d88] sm:$0xff]
    %v3365 = vld [vmem:[#allocation10 + $0x1d90] sm:$0xff]
    %v3366 = vld [vmem:[#allocation10 + $0x1d98] sm:$0xff]
    %v3367 = vld [vmem:[#allocation10 + $0x1da0] sm:$0xff]
    %v3368 = vld [vmem:[#allocation10 + $0x1da8] sm:$0xff]
    %v3369 = vld [vmem:[#allocation10 + $0x1db0] sm:$0xff]
    %v3370 = vld [vmem:[#allocation10 + $0x1db8] sm:$0xff]
    %v3371 = vld [vmem:[#allocation10 + $0x1dc0] sm:$0xff]
    %v3372 = vld [vmem:[#allocation10 + $0x1dc8] sm:$0xff]
    %v3373 = vld [vmem:[#allocation10 + $0x1dd0] sm:$0xff]
    %v3374 = vld [vmem:[#allocation10 + $0x1dd8] sm:$0xff]
    %v3375 = vld [vmem:[#allocation10 + $0x1de0] sm:$0xff]
    %v3376 = vld [vmem:[#allocation10 + $0x1de8] sm:$0xff]
    %v3377 = vld [vmem:[#allocation10 + $0x1df0] sm:$0xff]
    %v3378 = vld [vmem:[#allocation10 + $0x1df8] sm:$0xff]
    %v3379 = vld [vmem:[#allocation10 + $0x1e00] sm:$0xff]
    %v3380 = vld [vmem:[#allocation10 + $0x1e08] sm:$0xff]
    %v3381 = vld [vmem:[#allocation10 + $0x1e10] sm:$0xff]
    %v3382 = vld [vmem:[#allocation10 + $0x1e18] sm:$0xff]
    %v3383 = vld [vmem:[#allocation10 + $0x1e20] sm:$0xff]
    %v3384 = vld [vmem:[#allocation10 + $0x1e28] sm:$0xff]
    %v3385 = vld [vmem:[#allocation10 + $0x1e30] sm:$0xff]
    %v3386 = vld [vmem:[#allocation10 + $0x1e38] sm:$0xff]
    %v3387 = vld [vmem:[#allocation10 + $0x1e40] sm:$0xff]
    %v3388 = vld [vmem:[#allocation10 + $0x1e48] sm:$0xff]
    %v3389 = vld [vmem:[#allocation10 + $0x1e50] sm:$0xff]
    %v3390 = vld [vmem:[#allocation10 + $0x1e58] sm:$0xff]
    %v3391 = vld [vmem:[#allocation10 + $0x1e60] sm:$0xff]
    %v3392 = vld [vmem:[#allocation10 + $0x1e68] sm:$0xff]
    %v3393 = vld [vmem:[#allocation10 + $0x1e70] sm:$0xff]
    %v3394 = vld [vmem:[#allocation10 + $0x1e78] sm:$0xff]
    %v3395 = vld [vmem:[#allocation10 + $0x1e80] sm:$0xff]
    %v3396 = vld [vmem:[#allocation10 + $0x1e88] sm:$0xff]
    %v3397 = vld [vmem:[#allocation10 + $0x1e90] sm:$0xff]
    %v3398 = vld [vmem:[#allocation10 + $0x1e98] sm:$0xff]
    %v3399 = vld [vmem:[#allocation10 + $0x1ea0] sm:$0xff]
    %v3400 = vld [vmem:[#allocation10 + $0x1ea8] sm:$0xff]
    %v3401 = vld [vmem:[#allocation10 + $0x1eb0] sm:$0xff]
    %v3402 = vld [vmem:[#allocation10 + $0x1eb8] sm:$0xff]
    %v3403 = vld [vmem:[#allocation10 + $0x1ec0] sm:$0xff]
    %v3404 = vld [vmem:[#allocation10 + $0x1ec8] sm:$0xff]
    %v3405 = vld [vmem:[#allocation10 + $0x1ed0] sm:$0xff]
    %v3406 = vld [vmem:[#allocation10 + $0x1ed8] sm:$0xff]
    %v3407 = vld [vmem:[#allocation10 + $0x1ee0] sm:$0xff]
    %v3408 = vld [vmem:[#allocation10 + $0x1ee8] sm:$0xff]
    %v3409 = vld [vmem:[#allocation10 + $0x1ef0] sm:$0xff]
    %v3410 = vld [vmem:[#allocation10 + $0x1ef8] sm:$0xff]
    %v3411 = vld [vmem:[#allocation10 + $0x1f00] sm:$0xff]
    %v3412 = vld [vmem:[#allocation10 + $0x1f08] sm:$0xff]
    %v3413 = vld [vmem:[#allocation10 + $0x1f10] sm:$0xff]
    %v3414 = vld [vmem:[#allocation10 + $0x1f18] sm:$0xff]
    %v3415 = vld [vmem:[#allocation10 + $0x1f20] sm:$0xff]
    %v3416 = vld [vmem:[#allocation10 + $0x1f28] sm:$0xff]
    %v3417 = vld [vmem:[#allocation10 + $0x1f30] sm:$0xff]
    %v3418 = vld [vmem:[#allocation10 + $0x1f38] sm:$0xff]
    %v3419 = vld [vmem:[#allocation10 + $0x1f40] sm:$0xff]
    %v3420 = vld [vmem:[#allocation10 + $0x1f48] sm:$0xff]
    %v3421 = vld [vmem:[#allocation10 + $0x1f50] sm:$0xff]
    %v3422 = vld [vmem:[#allocation10 + $0x1f58] sm:$0xff]
    %v3423 = vld [vmem:[#allocation10 + $0x1f60] sm:$0xff]
    %v3424 = vld [vmem:[#allocation10 + $0x1f68] sm:$0xff]
    %v3425 = vld [vmem:[#allocation10 + $0x1f70] sm:$0xff]
    %v3426 = vld [vmem:[#allocation10 + $0x1f78] sm:$0xff]
    %v3427 = vld [vmem:[#allocation10 + $0x1f80] sm:$0xff]
    %v3428 = vld [vmem:[#allocation10 + $0x1f88] sm:$0xff]
    %v3429 = vld [vmem:[#allocation10 + $0x1f90] sm:$0xff]
    %v3430 = vld [vmem:[#allocation10 + $0x1f98] sm:$0xff]
    %v3431 = vld [vmem:[#allocation10 + $0x1fa0] sm:$0xff]
    %v3432 = vld [vmem:[#allocation10 + $0x1fa8] sm:$0xff]
    %v3433 = vld [vmem:[#allocation10 + $0x1fb0] sm:$0xff]
    %v3434 = vld [vmem:[#allocation10 + $0x1fb8] sm:$0xff]
    %v3435 = vld [vmem:[#allocation10 + $0x1fc0] sm:$0xff]
    %v3436 = vld [vmem:[#allocation10 + $0x1fc8] sm:$0xff]
    %v3437 = vld [vmem:[#allocation10 + $0x1fd0] sm:$0xff]
    %v3438 = vld [vmem:[#allocation10 + $0x1fd8] sm:$0xff]
    %v3439 = vld [vmem:[#allocation10 + $0x1fe0] sm:$0xff]
    %v3440 = vld [vmem:[#allocation10 + $0x1fe8] sm:$0xff]
    %v3441 = vld [vmem:[#allocation10 + $0x1ff0] sm:$0xff]
    %v3442 = vld [vmem:[#allocation10 + $0x1ff8] sm:$0xff]
    %3443 = vmatprep.subr.mxu0 %v2420
    %3444 = vmatpush1.msra.mxu0 %v2419
    %3445 = vmatprep.subr.mxu0 %v2428
    %3446 = vmatpush1.msra.mxu0 %v2427
    %3447 = vmatprep.subr.mxu0 %v2436
    %3448 = vmatpush1.msra.mxu0 %v2435
    %3449 = vmatprep.subr.mxu0 %v2444
    %3450 = vmatpush1.msra.mxu0 %v2443
    %3451 = vmatprep.subr.mxu0 %v2452
    %3452 = vmatpush1.msra.mxu0 %v2451
    %3453 = vmatprep.subr.mxu0 %v2460
    %3454 = vmatpush1.msra.mxu0 %v2459
    %3455 = vmatprep.subr.mxu0 %v2468
    %3456 = vmatpush1.msra.mxu0 %v2467
    %3457 = vmatprep.subr.mxu0 %v2476
    %3458 = vmatpush1.msra.mxu0 %v2475
    %3459 = vmatprep.subr.mxu0 %v2484
    %3460 = vmatpush1.msra.mxu0 %v2483
    %3461 = vmatprep.subr.mxu0 %v2492
    %3462 = vmatpush1.msra.mxu0 %v2491
    %3463 = vmatprep.subr.mxu0 %v2500
    %3464 = vmatpush1.msra.mxu0 %v2499
    %3465 = vmatprep.subr.mxu0 %v2508
    %3466 = vmatpush1.msra.mxu0 %v2507
    %3467 = vmatprep.subr.mxu0 %v2516
    %3468 = vmatpush1.msra.mxu0 %v2515
    %3469 = vmatprep.subr.mxu0 %v2524
    %3470 = vmatpush1.msra.mxu0 %v2523
    %3471 = vmatprep.subr.mxu0 %v2532
    %3472 = vmatpush1.msra.mxu0 %v2531
    %3473 = vmatprep.subr.mxu0 %v2540
    %3474 = vmatpush1.msra.mxu0 %v2539
    %3475 = vmatprep.subr.mxu0 %v2548
    %3476 = vmatpush1.msra.mxu0 %v2547
    %3477 = vmatprep.subr.mxu0 %v2556
    %3478 = vmatpush1.msra.mxu0 %v2555
    %3479 = vmatprep.subr.mxu0 %v2564
    %3480 = vmatpush1.msra.mxu0 %v2563
    %3481 = vmatprep.subr.mxu0 %v2572
    %3482 = vmatpush1.msra.mxu0 %v2571
    %3483 = vmatprep.subr.mxu0 %v2580
    %3484 = vmatpush1.msra.mxu0 %v2579
    %3485 = vmatprep.subr.mxu0 %v2588
    %3486 = vmatpush1.msra.mxu0 %v2587
    %3487 = vmatprep.subr.mxu0 %v2596
    %3488 = vmatpush1.msra.mxu0 %v2595
    %3489 = vmatprep.subr.mxu0 %v2604
    %3490 = vmatpush1.msra.mxu0 %v2603
    %3491 = vmatprep.subr.mxu0 %v2612
    %3492 = vmatpush1.msra.mxu0 %v2611
    %3493 = vmatprep.subr.mxu0 %v2620
    %3494 = vmatpush1.msra.mxu0 %v2619
    %3495 = vmatprep.subr.mxu0 %v2628
    %3496 = vmatpush1.msra.mxu0 %v2627
    %3497 = vmatprep.subr.mxu0 %v2636
    %3498 = vmatpush1.msra.mxu0 %v2635
    %3499 = vmatprep.subr.mxu0 %v2644
    %3500 = vmatpush1.msra.mxu0 %v2643
    %3501 = vmatprep.subr.mxu0 %v2652
    %3502 = vmatpush1.msra.mxu0 %v2651
    %3503 = vmatprep.subr.mxu0 %v2660
    %3504 = vmatpush1.msra.mxu0 %v2659
    %3505 = vmatprep.subr.mxu0 %v2668
    %3506 = vmatpush1.msra.mxu0 %v2667
    %3507 = vmatprep.mubr.f32.mxu0 %v2412
    %3508 = vmatmul.mubr.f32.gmra.mrb[0].mxu0 %v2411
    %v3509 = vpop.f32.mrb[0].mxu0
    %v3510 = vadd.f32 0.0, %v3509
    %v3511 = vpop.f32.mrb[0].mxu0
    %v3512 = vadd.f32 0.0, %v3511
    %3513 = vdwg.mxu0
    %3514 = vmatprep.subr.mxu0 %v2676
    %3515 = vmatpush1.msra.mxu0 %v2675
    %3516 = vmatprep.subr.mxu0 %v2684
    %3517 = vmatpush1.msra.mxu0 %v2683
    %3518 = vmatprep.subr.mxu0 %v2692
    %3519 = vmatpush1.msra.mxu0 %v2691
    %3520 = vmatprep.subr.mxu0 %v2700
    %3521 = vmatpush1.msra.mxu0 %v2699
    %3522 = vmatprep.subr.mxu0 %v2708
    %3523 = vmatpush1.msra.mxu0 %v2707
    %3524 = vmatprep.subr.mxu0 %v2716
    %3525 = vmatpush1.msra.mxu0 %v2715
    %3526 = vmatprep.subr.mxu0 %v2724
    %3527 = vmatpush1.msra.mxu0 %v2723
    %3528 = vmatprep.subr.mxu0 %v2732
    %3529 = vmatpush1.msra.mxu0 %v2731
    %3530 = vmatprep.subr.mxu0 %v2740
    %3531 = vmatpush1.msra.mxu0 %v2739
    %3532 = vmatprep.subr.mxu0 %v2748
    %3533 = vmatpush1.msra.mxu0 %v2747
    %3534 = vmatprep.subr.mxu0 %v2756
    %3535 = vmatpush1.msra.mxu0 %v2755
    %3536 = vmatprep.subr.mxu0 %v2764
    %3537 = vmatpush1.msra.mxu0 %v2763
    %3538 = vmatprep.subr.mxu0 %v2772
    %3539 = vmatpush1.msra.mxu0 %v2771
    %3540 = vmatprep.subr.mxu0 %v2780
    %3541 = vmatpush1.msra.mxu0 %v2779
    %3542 = vmatprep.subr.mxu0 %v2788
    %3543 = vmatpush1.msra.mxu0 %v2787
    %3544 = vmatprep.subr.mxu0 %v2796
    %3545 = vmatpush1.msra.mxu0 %v2795
    %3546 = vmatprep.subr.mxu0 %v2804
    %3547 = vmatpush1.msra.mxu0 %v2803
    %3548 = vmatprep.subr.mxu0 %v2812
    %3549 = vmatpush1.msra.mxu0 %v2811
    %3550 = vmatprep.subr.mxu0 %v2820
    %3551 = vmatpush1.msra.mxu0 %v2819
    %3552 = vmatprep.subr.mxu0 %v2828
    %3553 = vmatpush1.msra.mxu0 %v2827
    %3554 = vmatprep.subr.mxu0 %v2836
    %3555 = vmatpush1.msra.mxu0 %v2835
    %3556 = vmatprep.subr.mxu0 %v2844
    %3557 = vmatpush1.msra.mxu0 %v2843
    %3558 = vmatprep.subr.mxu0 %v2852
    %3559 = vmatpush1.msra.mxu0 %v2851
    %3560 = vmatprep.subr.mxu0 %v2860
    %3561 = vmatpush1.msra.mxu0 %v2859
    %3562 = vmatprep.subr.mxu0 %v2868
    %3563 = vmatpush1.msra.mxu0 %v2867
    %3564 = vmatprep.subr.mxu0 %v2876
    %3565 = vmatpush1.msra.mxu0 %v2875
    %3566 = vmatprep.subr.mxu0 %v2884
    %3567 = vmatpush1.msra.mxu0 %v2883
    %3568 = vmatprep.subr.mxu0 %v2892
    %3569 = vmatpush1.msra.mxu0 %v2891
    %3570 = vmatprep.subr.mxu0 %v2900
    %3571 = vmatpush1.msra.mxu0 %v2899
    %3572 = vmatprep.subr.mxu0 %v2908
    %3573 = vmatpush1.msra.mxu0 %v2907
    %3574 = vmatprep.subr.mxu0 %v2916
    %3575 = vmatpush1.msra.mxu0 %v2915
    %3576 = vmatprep.subr.mxu0 %v2924
    %3577 = vmatpush1.msra.mxu0 %v2923
    %3578 = vmatprep.mubr.f32.mxu0 %v2414
    %3579 = vmatmul.mubr.f32.gmra.mrb[0].mxu0 %v2413
    %v3580 = vpop.f32.mrb[0].mxu0
    %v3581 = vadd.f32 %v3510, %v3580
    %v3582 = vpop.f32.mrb[0].mxu0
    %v3583 = vadd.f32 %v3512, %v3582
    %3584 = vdwg.mxu0
    %3585 = vmatprep.subr.mxu0 %v2932
    %3586 = vmatpush1.msra.mxu0 %v2931
    %3587 = vmatprep.subr.mxu0 %v2940
    %3588 = vmatpush1.msra.mxu0 %v2939
    %3589 = vmatprep.subr.mxu0 %v2948
    %3590 = vmatpush1.msra.mxu0 %v2947
    %3591 = vmatprep.subr.mxu0 %v2956
    %3592 = vmatpush1.msra.mxu0 %v2955
    %3593 = vmatprep.subr.mxu0 %v2964
    %3594 = vmatpush1.msra.mxu0 %v2963
    %3595 = vmatprep.subr.mxu0 %v2972
    %3596 = vmatpush1.msra.mxu0 %v2971
    %3597 = vmatprep.subr.mxu0 %v2980
    %3598 = vmatpush1.msra.mxu0 %v2979
    %3599 = vmatprep.subr.mxu0 %v2988
    %3600 = vmatpush1.msra.mxu0 %v2987
    %3601 = vmatprep.subr.mxu0 %v2996
    %3602 = vmatpush1.msra.mxu0 %v2995
    %3603 = vmatprep.subr.mxu0 %v3004
    %3604 = vmatpush1.msra.mxu0 %v3003
    %3605 = vmatprep.subr.mxu0 %v3012
    %3606 = vmatpush1.msra.mxu0 %v3011
    %3607 = vmatprep.subr.mxu0 %v3020
    %3608 = vmatpush1.msra.mxu0 %v3019
    %3609 = vmatprep.subr.mxu0 %v3028
    %3610 = vmatpush1.msra.mxu0 %v3027
    %3611 = vmatprep.subr.mxu0 %v3036
    %3612 = vmatpush1.msra.mxu0 %v3035
    %3613 = vmatprep.subr.mxu0 %v3044
    %3614 = vmatpush1.msra.mxu0 %v3043
    %3615 = vmatprep.subr.mxu0 %v3052
    %3616 = vmatpush1.msra.mxu0 %v3051
    %3617 = vmatprep.subr.mxu0 %v3060
    %3618 = vmatpush1.msra.mxu0 %v3059
    %3619 = vmatprep.subr.mxu0 %v3068
    %3620 = vmatpush1.msra.mxu0 %v3067
    %3621 = vmatprep.subr.mxu0 %v3076
    %3622 = vmatpush1.msra.mxu0 %v3075
    %3623 = vmatprep.subr.mxu0 %v3084
    %3624 = vmatpush1.msra.mxu0 %v3083
    %3625 = vmatprep.subr.mxu0 %v3092
    %3626 = vmatpush1.msra.mxu0 %v3091
    %3627 = vmatprep.subr.mxu0 %v3100
    %3628 = vmatpush1.msra.mxu0 %v3099
    %3629 = vmatprep.subr.mxu0 %v3108
    %3630 = vmatpush1.msra.mxu0 %v3107
    %3631 = vmatprep.subr.mxu0 %v3116
    %3632 = vmatpush1.msra.mxu0 %v3115
    %3633 = vmatprep.subr.mxu0 %v3124
    %3634 = vmatpush1.msra.mxu0 %v3123
    %3635 = vmatprep.subr.mxu0 %v3132
    %3636 = vmatpush1.msra.mxu0 %v3131
    %3637 = vmatprep.subr.mxu0 %v3140
    %3638 = vmatpush1.msra.mxu0 %v3139
    %3639 = vmatprep.subr.mxu0 %v3148
    %3640 = vmatpush1.msra.mxu0 %v3147
    %3641 = vmatprep.subr.mxu0 %v3156
    %3642 = vmatpush1.msra.mxu0 %v3155
    %3643 = vmatprep.subr.mxu0 %v3164
    %3644 = vmatpush1.msra.mxu0 %v3163
    %3645 = vmatprep.subr.mxu0 %v3172
    %3646 = vmatpush1.msra.mxu0 %v3171
    %3647 = vmatprep.subr.mxu0 %v3180
    %3648 = vmatpush1.msra.mxu0 %v3179
    %3649 = vmatprep.mubr.f32.mxu0 %v2416
    %3650 = vmatmul.mubr.f32.gmra.mrb[0].mxu0 %v2415
    %v3651 = vpop.f32.mrb[0].mxu0
    %v3652 = vadd.f32 %v3581, %v3651
    %v3653 = vpop.f32.mrb[0].mxu0
    %v3654 = vadd.f32 %v3583, %v3653
    %3655 = vdwg.mxu0
    %3656 = vmatprep.subr.mxu0 %v3188
    %3657 = vmatpush1.msra.mxu0 %v3187
    %3658 = vmatprep.subr.mxu0 %v3196
    %3659 = vmatpush1.msra.mxu0 %v3195
    %3660 = vmatprep.subr.mxu0 %v3204
    %3661 = vmatpush1.msra.mxu0 %v3203
    %3662 = vmatprep.subr.mxu0 %v3212
    %3663 = vmatpush1.msra.mxu0 %v3211
    %3664 = vmatprep.subr.mxu0 %v3220
    %3665 = vmatpush1.msra.mxu0 %v3219
    %3666 = vmatprep.subr.mxu0 %v3228
    %3667 = vmatpush1.msra.mxu0 %v3227
    %3668 = vmatprep.subr.mxu0 %v3236
    %3669 = vmatpush1.msra.mxu0 %v3235
    %3670 = vmatprep.subr.mxu0 %v3244
    %3671 = vmatpush1.msra.mxu0 %v3243
    %3672 = vmatprep.subr.mxu0 %v3252
    %3673 = vmatpush1.msra.mxu0 %v3251
    %3674 = vmatprep.subr.mxu0 %v3260
    %3675 = vmatpush1.msra.mxu0 %v3259
    %3676 = vmatprep.subr.mxu0 %v3268
    %3677 = vmatpush1.msra.mxu0 %v3267
    %3678 = vmatprep.subr.mxu0 %v3276
    %3679 = vmatpush1.msra.mxu0 %v3275
    %3680 = vmatprep.subr.mxu0 %v3284
    %3681 = vmatpush1.msra.mxu0 %v3283
    %3682 = vmatprep.subr.mxu0 %v3292
    %3683 = vmatpush1.msra.mxu0 %v3291
    %3684 = vmatprep.subr.mxu0 %v3300
    %3685 = vmatpush1.msra.mxu0 %v3299
    %3686 = vmatprep.subr.mxu0 %v3308
    %3687 = vmatpush1.msra.mxu0 %v3307
    %3688 = vmatprep.subr.mxu0 %v3316
    %3689 = vmatpush1.msra.mxu0 %v3315
    %3690 = vmatprep.subr.mxu0 %v3324
    %3691 = vmatpush1.msra.mxu0 %v3323
    %3692 = vmatprep.subr.mxu0 %v3332
    %3693 = vmatpush1.msra.mxu0 %v3331
    %3694 = vmatprep.subr.mxu0 %v3340
    %3695 = vmatpush1.msra.mxu0 %v3339
    %3696 = vmatprep.subr.mxu0 %v3348
    %3697 = vmatpush1.msra.mxu0 %v3347
    %3698 = vmatprep.subr.mxu0 %v3356
    %3699 = vmatpush1.msra.mxu0 %v3355
    %3700 = vmatprep.subr.mxu0 %v3364
    %3701 = vmatpush1.msra.mxu0 %v3363
    %3702 = vmatprep.subr.mxu0 %v3372
    %3703 = vmatpush1.msra.mxu0 %v3371
    %3704 = vmatprep.subr.mxu0 %v3380
    %3705 = vmatpush1.msra.mxu0 %v3379
    %3706 = vmatprep.subr.mxu0 %v3388
    %3707 = vmatpush1.msra.mxu0 %v3387
    %3708 = vmatprep.subr.mxu0 %v3396
    %3709 = vmatpush1.msra.mxu0 %v3395
    %3710 = vmatprep.subr.mxu0 %v3404
    %3711 = vmatpush1.msra.mxu0 %v3403
    %3712 = vmatprep.subr.mxu0 %v3412
    %3713 = vmatpush1.msra.mxu0 %v3411
    %3714 = vmatprep.subr.mxu0 %v3420
    %3715 = vmatpush1.msra.mxu0 %v3419
    %3716 = vmatprep.subr.mxu0 %v3428
    %3717 = vmatpush1.msra.mxu0 %v3427
    %3718 = vmatprep.subr.mxu0 %v3436
    %3719 = vmatpush1.msra.mxu0 %v3435
    %3720 = vmatprep.mubr.f32.mxu0 %v2418
    %3721 = vmatmul.mubr.f32.gmra.mrb[0].mxu0 %v2417
    %v3722 = vpop.f32.mrb[0].mxu0
    %v3723 = vadd.f32 %v3652, %v3722
    %v3724 = vpop.f32.mrb[0].mxu0
    %v3725 = vadd.f32 %v3654, %v3724
    %3726 = vdwg.mxu0
    %3727 = vmatprep.subr.mxu0 %v2422
    %3728 = vmatpush1.msra.mxu0 %v2421
    %3729 = vmatprep.subr.mxu0 %v2430
    %3730 = vmatpush1.msra.mxu0 %v2429
    %3731 = vmatprep.subr.mxu0 %v2438
    %3732 = vmatpush1.msra.mxu0 %v2437
    %3733 = vmatprep.subr.mxu0 %v2446
    %3734 = vmatpush1.msra.mxu0 %v2445
    %3735 = vmatprep.subr.mxu0 %v2454
    %3736 = vmatpush1.msra.mxu0 %v2453
    %3737 = vmatprep.subr.mxu0 %v2462
    %3738 = vmatpush1.msra.mxu0 %v2461
    %3739 = vmatprep.subr.mxu0 %v2470
    %3740 = vmatpush1.msra.mxu0 %v2469
    %3741 = vmatprep.subr.mxu0 %v2478
    %3742 = vmatpush1.msra.mxu0 %v2477
    %3743 = vmatprep.subr.mxu0 %v2486
    %3744 = vmatpush1.msra.mxu0 %v2485
    %3745 = vmatprep.subr.mxu0 %v2494
    %3746 = vmatpush1.msra.mxu0 %v2493
    %3747 = vmatprep.subr.mxu0 %v2502
    %3748 = vmatpush1.msra.mxu0 %v2501
    %3749 = vmatprep.subr.mxu0 %v2510
    %3750 = vmatpush1.msra.mxu0 %v2509
    %3751 = vmatprep.subr.mxu0 %v2518
    %3752 = vmatpush1.msra.mxu0 %v2517
    %3753 = vmatprep.subr.mxu0 %v2526
    %3754 = vmatpush1.msra.mxu0 %v2525
    %3755 = vmatprep.subr.mxu0 %v2534
    %3756 = vmatpush1.msra.mxu0 %v2533
    %3757 = vmatprep.subr.mxu0 %v2542
    %3758 = vmatpush1.msra.mxu0 %v2541
    %3759 = vmatprep.subr.mxu0 %v2550
    %3760 = vmatpush1.msra.mxu0 %v2549
    %3761 = vmatprep.subr.mxu0 %v2558
    %3762 = vmatpush1.msra.mxu0 %v2557
    %3763 = vmatprep.subr.mxu0 %v2566
    %3764 = vmatpush1.msra.mxu0 %v2565
    %3765 = vmatprep.subr.mxu0 %v2574
    %3766 = vmatpush1.msra.mxu0 %v2573
    %3767 = vmatprep.subr.mxu0 %v2582
    %3768 = vmatpush1.msra.mxu0 %v2581
    %3769 = vmatprep.subr.mxu0 %v2590
    %3770 = vmatpush1.msra.mxu0 %v2589
    %3771 = vmatprep.subr.mxu0 %v2598
    %3772 = vmatpush1.msra.mxu0 %v2597
    %3773 = vmatprep.subr.mxu0 %v2606
    %3774 = vmatpush1.msra.mxu0 %v2605
    %3775 = vmatprep.subr.mxu0 %v2614
    %3776 = vmatpush1.msra.mxu0 %v2613
    %3777 = vmatprep.subr.mxu0 %v2622
    %3778 = vmatpush1.msra.mxu0 %v2621
    %3779 = vmatprep.subr.mxu0 %v2630
    %3780 = vmatpush1.msra.mxu0 %v2629
    %3781 = vmatprep.subr.mxu0 %v2638
    %3782 = vmatpush1.msra.mxu0 %v2637
    %3783 = vmatprep.subr.mxu0 %v2646
    %3784 = vmatpush1.msra.mxu0 %v2645
    %3785 = vmatprep.subr.mxu0 %v2654
    %3786 = vmatpush1.msra.mxu0 %v2653
    %3787 = vmatprep.subr.mxu0 %v2662
    %3788 = vmatpush1.msra.mxu0 %v2661
    %3789 = vmatprep.subr.mxu0 %v2670
    %3790 = vmatpush1.msra.mxu0 %v2669
    %3791 = vmatprep.mubr.f32.mxu0 %v2412
    %3792 = vmatmul.mubr.f32.gmra.mrb[0].mxu0 %v2411
    %v3793 = vpop.f32.mrb[0].mxu0
    %v3794 = vadd.f32 0.0, %v3793
    %v3795 = vpop.f32.mrb[0].mxu0
    %v3796 = vadd.f32 0.0, %v3795
    %3797 = vdwg.mxu0
    %3798 = vmatprep.subr.mxu0 %v2678
    %3799 = vmatpush1.msra.mxu0 %v2677
    %3800 = vmatprep.subr.mxu0 %v2686
    %3801 = vmatpush1.msra.mxu0 %v2685
    %3802 = vmatprep.subr.mxu0 %v2694
    %3803 = vmatpush1.msra.mxu0 %v2693
    %3804 = vmatprep.subr.mxu0 %v2702
    %3805 = vmatpush1.msra.mxu0 %v2701
    %3806 = vmatprep.subr.mxu0 %v2710
    %3807 = vmatpush1.msra.mxu0 %v2709
    %3808 = vmatprep.subr.mxu0 %v2718
    %3809 = vmatpush1.msra.mxu0 %v2717
    %3810 = vmatprep.subr.mxu0 %v2726
    %3811 = vmatpush1.msra.mxu0 %v2725
    %3812 = vmatprep.subr.mxu0 %v2734
    %3813 = vmatpush1.msra.mxu0 %v2733
    %3814 = vmatprep.subr.mxu0 %v2742
    %3815 = vmatpush1.msra.mxu0 %v2741
    %3816 = vmatprep.subr.mxu0 %v2750
    %3817 = vmatpush1.msra.mxu0 %v2749
    %3818 = vmatprep.subr.mxu0 %v2758
    %3819 = vmatpush1.msra.mxu0 %v2757
    %3820 = vmatprep.subr.mxu0 %v2766
    %3821 = vmatpush1.msra.mxu0 %v2765
    %3822 = vmatprep.subr.mxu0 %v2774
    %3823 = vmatpush1.msra.mxu0 %v2773
    %3824 = vmatprep.subr.mxu0 %v2782
    %3825 = vmatpush1.msra.mxu0 %v2781
    %3826 = vmatprep.subr.mxu0 %v2790
    %3827 = vmatpush1.msra.mxu0 %v2789
    %3828 = vmatprep.subr.mxu0 %v2798
    %3829 = vmatpush1.msra.mxu0 %v2797
    %3830 = vmatprep.subr.mxu0 %v2806
    %3831 = vmatpush1.msra.mxu0 %v2805
    %3832 = vmatprep.subr.mxu0 %v2814
    %3833 = vmatpush1.msra.mxu0 %v2813
    %3834 = vmatprep.subr.mxu0 %v2822
    %3835 = vmatpush1.msra.mxu0 %v2821
    %3836 = vmatprep.subr.mxu0 %v2830
    %3837 = vmatpush1.msra.mxu0 %v2829
    %3838 = vmatprep.subr.mxu0 %v2838
    %3839 = vmatpush1.msra.mxu0 %v2837
    %3840 = vmatprep.subr.mxu0 %v2846
    %3841 = vmatpush1.msra.mxu0 %v2845
    %3842 = vmatprep.subr.mxu0 %v2854
    %3843 = vmatpush1.msra.mxu0 %v2853
    %3844 = vmatprep.subr.mxu0 %v2862
    %3845 = vmatpush1.msra.mxu0 %v2861
    %3846 = vmatprep.subr.mxu0 %v2870
    %3847 = vmatpush1.msra.mxu0 %v2869
    %3848 = vmatprep.subr.mxu0 %v2878
    %3849 = vmatpush1.msra.mxu0 %v2877
    %3850 = vmatprep.subr.mxu0 %v2886
    %3851 = vmatpush1.msra.mxu0 %v2885
    %3852 = vmatprep.subr.mxu0 %v2894
    %3853 = vmatpush1.msra.mxu0 %v2893
    %3854 = vmatprep.subr.mxu0 %v2902
    %3855 = vmatpush1.msra.mxu0 %v2901
    %3856 = vmatprep.subr.mxu0 %v2910
    %3857 = vmatpush1.msra.mxu0 %v2909
    %3858 = vmatprep.subr.mxu0 %v2918
    %3859 = vmatpush1.msra.mxu0 %v2917
    %3860 = vmatprep.subr.mxu0 %v2926
    %3861 = vmatpush1.msra.mxu0 %v2925
    %3862 = vmatprep.mubr.f32.mxu0 %v2414
    %3863 = vmatmul.mubr.f32.gmra.mrb[0].mxu0 %v2413
    %v3864 = vpop.f32.mrb[0].mxu0
    %v3865 = vadd.f32 %v3794, %v3864
    %v3866 = vpop.f32.mrb[0].mxu0
    %v3867 = vadd.f32 %v3796, %v3866
    %3868 = vdwg.mxu0
    %3869 = vmatprep.subr.mxu0 %v2934
    %3870 = vmatpush1.msra.mxu0 %v2933
    %3871 = vmatprep.subr.mxu0 %v2942
    %3872 = vmatpush1.msra.mxu0 %v2941
    %3873 = vmatprep.subr.mxu0 %v2950
    %3874 = vmatpush1.msra.mxu0 %v2949
    %3875 = vmatprep.subr.mxu0 %v2958
    %3876 = vmatpush1.msra.mxu0 %v2957
    %3877 = vmatprep.subr.mxu0 %v2966
    %3878 = vmatpush1.msra.mxu0 %v2965
    %3879 = vmatprep.subr.mxu0 %v2974
    %3880 = vmatpush1.msra.mxu0 %v2973
    %3881 = vmatprep.subr.mxu0 %v2982
    %3882 = vmatpush1.msra.mxu0 %v2981
    %3883 = vmatprep.subr.mxu0 %v2990
    %3884 = vmatpush1.msra.mxu0 %v2989
    %3885 = vmatprep.subr.mxu0 %v2998
    %3886 = vmatpush1.msra.mxu0 %v2997
    %3887 = vmatprep.subr.mxu0 %v3006
    %3888 = vmatpush1.msra.mxu0 %v3005
    %3889 = vmatprep.subr.mxu0 %v3014
    %3890 = vmatpush1.msra.mxu0 %v3013
    %3891 = vmatprep.subr.mxu0 %v3022
    %3892 = vmatpush1.msra.mxu0 %v3021
    %3893 = vmatprep.subr.mxu0 %v3030
    %3894 = vmatpush1.msra.mxu0 %v3029
    %3895 = vmatprep.subr.mxu0 %v3038
    %3896 = vmatpush1.msra.mxu0 %v3037
    %3897 = vmatprep.subr.mxu0 %v3046
    %3898 = vmatpush1.msra.mxu0 %v3045
    %3899 = vmatprep.subr.mxu0 %v3054
    %3900 = vmatpush1.msra.mxu0 %v3053
    %3901 = vmatprep.subr.mxu0 %v3062
    %3902 = vmatpush1.msra.mxu0 %v3061
    %3903 = vmatprep.subr.mxu0 %v3070
    %3904 = vmatpush1.msra.mxu0 %v3069
    %3905 = vmatprep.subr.mxu0 %v3078
    %3906 = vmatpush1.msra.mxu0 %v3077
    %3907 = vmatprep.subr.mxu0 %v3086
    %3908 = vmatpush1.msra.mxu0 %v3085
    %3909 = vmatprep.subr.mxu0 %v3094
    %3910 = vmatpush1.msra.mxu0 %v3093
    %3911 = vmatprep.subr.mxu0 %v3102
    %3912 = vmatpush1.msra.mxu0 %v3101
    %3913 = vmatprep.subr.mxu0 %v3110
    %3914 = vmatpush1.msra.mxu0 %v3109
    %3915 = vmatprep.subr.mxu0 %v3118
    %3916 = vmatpush1.msra.mxu0 %v3117
    %3917 = vmatprep.subr.mxu0 %v3126
    %3918 = vmatpush1.msra.mxu0 %v3125
    %3919 = vmatprep.subr.mxu0 %v3134
    %3920 = vmatpush1.msra.mxu0 %v3133
    %3921 = vmatprep.subr.mxu0 %v3142
    %3922 = vmatpush1.msra.mxu0 %v3141
    %3923 = vmatprep.subr.mxu0 %v3150
    %3924 = vmatpush1.msra.mxu0 %v3149
    %3925 = vmatprep.subr.mxu0 %v3158
    %3926 = vmatpush1.msra.mxu0 %v3157
    %3927 = vmatprep.subr.mxu0 %v3166
    %3928 = vmatpush1.msra.mxu0 %v3165
    %3929 = vmatprep.subr.mxu0 %v3174
    %3930 = vmatpush1.msra.mxu0 %v3173
    %3931 = vmatprep.subr.mxu0 %v3182
    %3932 = vmatpush1.msra.mxu0 %v3181
    %3933 = vmatprep.mubr.f32.mxu0 %v2416
    %3934 = vmatmul.mubr.f32.gmra.mrb[0].mxu0 %v2415
    %v3935 = vpop.f32.mrb[0].mxu0
    %v3936 = vadd.f32 %v3865, %v3935
    %v3937 = vpop.f32.mrb[0].mxu0
    %v3938 = vadd.f32 %v3867, %v3937
    %3939 = vdwg.mxu0
    %3940 = vmatprep.subr.mxu0 %v3190
    %3941 = vmatpush1.msra.mxu0 %v3189
    %3942 = vmatprep.subr.mxu0 %v3198
    %3943 = vmatpush1.msra.mxu0 %v3197
    %3944 = vmatprep.subr.mxu0 %v3206
    %3945 = vmatpush1.msra.mxu0 %v3205
    %3946 = vmatprep.subr.mxu0 %v3214
    %3947 = vmatpush1.msra.mxu0 %v3213
    %3948 = vmatprep.subr.mxu0 %v3222
    %3949 = vmatpush1.msra.mxu0 %v3221
    %3950 = vmatprep.subr.mxu0 %v3230
    %3951 = vmatpush1.msra.mxu0 %v3229
    %3952 = vmatprep.subr.mxu0 %v3238
    %3953 = vmatpush1.msra.mxu0 %v3237
    %3954 = vmatprep.subr.mxu0 %v3246
    %3955 = vmatpush1.msra.mxu0 %v3245
    %3956 = vmatprep.subr.mxu0 %v3254
    %3957 = vmatpush1.msra.mxu0 %v3253
    %3958 = vmatprep.subr.mxu0 %v3262
    %3959 = vmatpush1.msra.mxu0 %v3261
    %3960 = vmatprep.subr.mxu0 %v3270
    %3961 = vmatpush1.msra.mxu0 %v3269
    %3962 = vmatprep.subr.mxu0 %v3278
    %3963 = vmatpush1.msra.mxu0 %v3277
    %3964 = vmatprep.subr.mxu0 %v3286
    %3965 = vmatpush1.msra.mxu0 %v3285
    %3966 = vmatprep.subr.mxu0 %v3294
    %3967 = vmatpush1.msra.mxu0 %v3293
    %3968 = vmatprep.subr.mxu0 %v3302
    %3969 = vmatpush1.msra.mxu0 %v3301
    %3970 = vmatprep.subr.mxu0 %v3310
    %3971 = vmatpush1.msra.mxu0 %v3309
    %3972 = vmatprep.subr.mxu0 %v3318
    %3973 = vmatpush1.msra.mxu0 %v3317
    %3974 = vmatprep.subr.mxu0 %v3326
    %3975 = vmatpush1.msra.mxu0 %v3325
    %3976 = vmatprep.subr.mxu0 %v3334
    %3977 = vmatpush1.msra.mxu0 %v3333
    %3978 = vmatprep.subr.mxu0 %v3342
    %3979 = vmatpush1.msra.mxu0 %v3341
    %3980 = vmatprep.subr.mxu0 %v3350
    %3981 = vmatpush1.msra.mxu0 %v3349
    %3982 = vmatprep.subr.mxu0 %v3358
    %3983 = vmatpush1.msra.mxu0 %v3357
    %3984 = vmatprep.subr.mxu0 %v3366
    %3985 = vmatpush1.msra.mxu0 %v3365
    %3986 = vmatprep.subr.mxu0 %v3374
    %3987 = vmatpush1.msra.mxu0 %v3373
    %3988 = vmatprep.subr.mxu0 %v3382
    %3989 = vmatpush1.msra.mxu0 %v3381
    %3990 = vmatprep.subr.mxu0 %v3390
    %3991 = vmatpush1.msra.mxu0 %v3389
    %3992 = vmatprep.subr.mxu0 %v3398
    %3993 = vmatpush1.msra.mxu0 %v3397
    %3994 = vmatprep.subr.mxu0 %v3406
    %3995 = vmatpush1.msra.mxu0 %v3405
    %3996 = vmatprep.subr.mxu0 %v3414
    %3997 = vmatpush1.msra.mxu0 %v3413
    %3998 = vmatprep.subr.mxu0 %v3422
    %3999 = vmatpush1.msra.mxu0 %v3421
    %4000 = vmatprep.subr.mxu0 %v3430
    %4001 = vmatpush1.msra.mxu0 %v3429
    %4002 = vmatprep.subr.mxu0 %v3438
    %4003 = vmatpush1.msra.mxu0 %v3437
    %4004 = vmatprep.mubr.f32.mxu0 %v2418
    %4005 = vmatmul.mubr.f32.gmra.mrb[0].mxu0 %v2417
    %v4006 = vpop.f32.mrb[0].mxu0
    %v4007 = vadd.f32 %v3936, %v4006
    %v4008 = vpop.f32.mrb[0].mxu0
    %v4009 = vadd.f32 %v3938, %v4008
    %4010 = vdwg.mxu0
    %4011 = vmatprep.subr.mxu0 %v2424
    %4012 = vmatpush1.msra.mxu0 %v2423
    %4013 = vmatprep.subr.mxu0 %v2432
    %4014 = vmatpush1.msra.mxu0 %v2431
    %4015 = vmatprep.subr.mxu0 %v2440
    %4016 = vmatpush1.msra.mxu0 %v2439
    %4017 = vmatprep.subr.mxu0 %v2448
    %4018 = vmatpush1.msra.mxu0 %v2447
    %4019 = vmatprep.subr.mxu0 %v2456
    %4020 = vmatpush1.msra.mxu0 %v2455
    %4021 = vmatprep.subr.mxu0 %v2464
    %4022 = vmatpush1.msra.mxu0 %v2463
    %4023 = vmatprep.subr.mxu0 %v2472
    %4024 = vmatpush1.msra.mxu0 %v2471
    %4025 = vmatprep.subr.mxu0 %v2480
    %4026 = vmatpush1.msra.mxu0 %v2479
    %4027 = vmatprep.subr.mxu0 %v2488
    %4028 = vmatpush1.msra.mxu0 %v2487
    %4029 = vmatprep.subr.mxu0 %v2496
    %4030 = vmatpush1.msra.mxu0 %v2495
    %4031 = vmatprep.subr.mxu0 %v2504
    %4032 = vmatpush1.msra.mxu0 %v2503
    %4033 = vmatprep.subr.mxu0 %v2512
    %4034 = vmatpush1.msra.mxu0 %v2511
    %4035 = vmatprep.subr.mxu0 %v2520
    %4036 = vmatpush1.msra.mxu0 %v2519
    %4037 = vmatprep.subr.mxu0 %v2528
    %4038 = vmatpush1.msra.mxu0 %v2527
    %4039 = vmatprep.subr.mxu0 %v2536
    %4040 = vmatpush1.msra.mxu0 %v2535
    %4041 = vmatprep.subr.mxu0 %v2544
    %4042 = vmatpush1.msra.mxu0 %v2543
    %4043 = vmatprep.subr.mxu0 %v2552
    %4044 = vmatpush1.msra.mxu0 %v2551
    %4045 = vmatprep.subr.mxu0 %v2560
    %4046 = vmatpush1.msra.mxu0 %v2559
    %4047 = vmatprep.subr.mxu0 %v2568
    %4048 = vmatpush1.msra.mxu0 %v2567
    %4049 = vmatprep.subr.mxu0 %v2576
    %4050 = vmatpush1.msra.mxu0 %v2575
    %4051 = vmatprep.subr.mxu0 %v2584
    %4052 = vmatpush1.msra.mxu0 %v2583
    %4053 = vmatprep.subr.mxu0 %v2592
    %4054 = vmatpush1.msra.mxu0 %v2591
    %4055 = vmatprep.subr.mxu0 %v2600
    %4056 = vmatpush1.msra.mxu0 %v2599
    %4057 = vmatprep.subr.mxu0 %v2608
    %4058 = vmatpush1.msra.mxu0 %v2607
    %4059 = vmatprep.subr.mxu0 %v2616
    %4060 = vmatpush1.msra.mxu0 %v2615
    %4061 = vmatprep.subr.mxu0 %v2624
    %4062 = vmatpush1.msra.mxu0 %v2623
    %4063 = vmatprep.subr.mxu0 %v2632
    %4064 = vmatpush1.msra.mxu0 %v2631
    %4065 = vmatprep.subr.mxu0 %v2640
    %4066 = vmatpush1.msra.mxu0 %v2639
    %4067 = vmatprep.subr.mxu0 %v2648
    %4068 = vmatpush1.msra.mxu0 %v2647
    %4069 = vmatprep.subr.mxu0 %v2656
    %4070 = vmatpush1.msra.mxu0 %v2655
    %4071 = vmatprep.subr.mxu0 %v2664
    %4072 = vmatpush1.msra.mxu0 %v2663
    %4073 = vmatprep.subr.mxu0 %v2672
    %4074 = vmatpush1.msra.mxu0 %v2671
    %4075 = vmatprep.mubr.f32.mxu0 %v2412
    %4076 = vmatmul.mubr.f32.gmra.mrb[0].mxu0 %v2411
    %v4077 = vpop.f32.mrb[0].mxu0
    %v4078 = vadd.f32 0.0, %v4077
    %v4079 = vpop.f32.mrb[0].mxu0
    %v4080 = vadd.f32 0.0, %v4079
    %4081 = vdwg.mxu0
    %4082 = vmatprep.subr.mxu0 %v2680
    %4083 = vmatpush1.msra.mxu0 %v2679
    %4084 = vmatprep.subr.mxu0 %v2688
    %4085 = vmatpush1.msra.mxu0 %v2687
    %4086 = vmatprep.subr.mxu0 %v2696
    %4087 = vmatpush1.msra.mxu0 %v2695
    %4088 = vmatprep.subr.mxu0 %v2704
    %4089 = vmatpush1.msra.mxu0 %v2703
    %4090 = vmatprep.subr.mxu0 %v2712
    %4091 = vmatpush1.msra.mxu0 %v2711
    %4092 = vmatprep.subr.mxu0 %v2720
    %4093 = vmatpush1.msra.mxu0 %v2719
    %4094 = vmatprep.subr.mxu0 %v2728
    %4095 = vmatpush1.msra.mxu0 %v2727
    %4096 = vmatprep.subr.mxu0 %v2736
    %4097 = vmatpush1.msra.mxu0 %v2735
    %4098 = vmatprep.subr.mxu0 %v2744
    %4099 = vmatpush1.msra.mxu0 %v2743
    %4100 = vmatprep.subr.mxu0 %v2752
    %4101 = vmatpush1.msra.mxu0 %v2751
    %4102 = vmatprep.subr.mxu0 %v2760
    %4103 = vmatpush1.msra.mxu0 %v2759
    %4104 = vmatprep.subr.mxu0 %v2768
    %4105 = vmatpush1.msra.mxu0 %v2767
    %4106 = vmatprep.subr.mxu0 %v2776
    %4107 = vmatpush1.msra.mxu0 %v2775
    %4108 = vmatprep.subr.mxu0 %v2784
    %4109 = vmatpush1.msra.mxu0 %v2783
    %4110 = vmatprep.subr.mxu0 %v2792
    %4111 = vmatpush1.msra.mxu0 %v2791
    %4112 = vmatprep.subr.mxu0 %v2800
    %4113 = vmatpush1.msra.mxu0 %v2799
    %4114 = vmatprep.subr.mxu0 %v2808
    %4115 = vmatpush1.msra.mxu0 %v2807
    %4116 = vmatprep.subr.mxu0 %v2816
    %4117 = vmatpush1.msra.mxu0 %v2815
    %4118 = vmatprep.subr.mxu0 %v2824
    %4119 = vmatpush1.msra.mxu0 %v2823
    %4120 = vmatprep.subr.mxu0 %v2832
    %4121 = vmatpush1.msra.mxu0 %v2831
    %4122 = vmatprep.subr.mxu0 %v2840
    %4123 = vmatpush1.msra.mxu0 %v2839
    %4124 = vmatprep.subr.mxu0 %v2848
    %4125 = vmatpush1.msra.mxu0 %v2847
    %4126 = vmatprep.subr.mxu0 %v2856
    %4127 = vmatpush1.msra.mxu0 %v2855
    %4128 = vmatprep.subr.mxu0 %v2864
    %4129 = vmatpush1.msra.mxu0 %v2863
    %4130 = vmatprep.subr.mxu0 %v2872
    %4131 = vmatpush1.msra.mxu0 %v2871
    %4132 = vmatprep.subr.mxu0 %v2880
    %4133 = vmatpush1.msra.mxu0 %v2879
    %4134 = vmatprep.subr.mxu0 %v2888
    %4135 = vmatpush1.msra.mxu0 %v2887
    %4136 = vmatprep.subr.mxu0 %v2896
    %4137 = vmatpush1.msra.mxu0 %v2895
    %4138 = vmatprep.subr.mxu0 %v2904
    %4139 = vmatpush1.msra.mxu0 %v2903
    %4140 = vmatprep.subr.mxu0 %v2912
    %4141 = vmatpush1.msra.mxu0 %v2911
    %4142 = vmatprep.subr.mxu0 %v2920
    %4143 = vmatpush1.msra.mxu0 %v2919
    %4144 = vmatprep.subr.mxu0 %v2928
    %4145 = vmatpush1.msra.mxu0 %v2927
    %4146 = vmatprep.mubr.f32.mxu0 %v2414
    %4147 = vmatmul.mubr.f32.gmra.mrb[0].mxu0 %v2413
    %v4148 = vpop.f32.mrb[0].mxu0
    %v4149 = vadd.f32 %v4078, %v4148
    %v4150 = vpop.f32.mrb[0].mxu0
    %v4151 = vadd.f32 %v4080, %v4150
    %4152 = vdwg.mxu0
    %4153 = vmatprep.subr.mxu0 %v2936
    %4154 = vmatpush1.msra.mxu0 %v2935
    %4155 = vmatprep.subr.mxu0 %v2944
    %4156 = vmatpush1.msra.mxu0 %v2943
    %4157 = vmatprep.subr.mxu0 %v2952
    %4158 = vmatpush1.msra.mxu0 %v2951
    %4159 = vmatprep.subr.mxu0 %v2960
    %4160 = vmatpush1.msra.mxu0 %v2959
    %4161 = vmatprep.subr.mxu0 %v2968
    %4162 = vmatpush1.msra.mxu0 %v2967
    %4163 = vmatprep.subr.mxu0 %v2976
    %4164 = vmatpush1.msra.mxu0 %v2975
    %4165 = vmatprep.subr.mxu0 %v2984
    %4166 = vmatpush1.msra.mxu0 %v2983
    %4167 = vmatprep.subr.mxu0 %v2992
    %4168 = vmatpush1.msra.mxu0 %v2991
    %4169 = vmatprep.subr.mxu0 %v3000
    %4170 = vmatpush1.msra.mxu0 %v2999
    %4171 = vmatprep.subr.mxu0 %v3008
    %4172 = vmatpush1.msra.mxu0 %v3007
    %4173 = vmatprep.subr.mxu0 %v3016
    %4174 = vmatpush1.msra.mxu0 %v3015
    %4175 = vmatprep.subr.mxu0 %v3024
    %4176 = vmatpush1.msra.mxu0 %v3023
    %4177 = vmatprep.subr.mxu0 %v3032
    %4178 = vmatpush1.msra.mxu0 %v3031
    %4179 = vmatprep.subr.mxu0 %v3040
    %4180 = vmatpush1.msra.mxu0 %v3039
    %4181 = vmatprep.subr.mxu0 %v3048
    %4182 = vmatpush1.msra.mxu0 %v3047
    %4183 = vmatprep.subr.mxu0 %v3056
    %4184 = vmatpush1.msra.mxu0 %v3055
    %4185 = vmatprep.subr.mxu0 %v3064
    %4186 = vmatpush1.msra.mxu0 %v3063
    %4187 = vmatprep.subr.mxu0 %v3072
    %4188 = vmatpush1.msra.mxu0 %v3071
    %4189 = vmatprep.subr.mxu0 %v3080
    %4190 = vmatpush1.msra.mxu0 %v3079
    %4191 = vmatprep.subr.mxu0 %v3088
    %4192 = vmatpush1.msra.mxu0 %v3087
    %4193 = vmatprep.subr.mxu0 %v3096
    %4194 = vmatpush1.msra.mxu0 %v3095
    %4195 = vmatprep.subr.mxu0 %v3104
    %4196 = vmatpush1.msra.mxu0 %v3103
    %4197 = vmatprep.subr.mxu0 %v3112
    %4198 = vmatpush1.msra.mxu0 %v3111
    %4199 = vmatprep.subr.mxu0 %v3120
    %4200 = vmatpush1.msra.mxu0 %v3119
    %4201 = vmatprep.subr.mxu0 %v3128
    %4202 = vmatpush1.msra.mxu0 %v3127
    %4203 = vmatprep.subr.mxu0 %v3136
    %4204 = vmatpush1.msra.mxu0 %v3135
    %4205 = vmatprep.subr.mxu0 %v3144
    %4206 = vmatpush1.msra.mxu0 %v3143
    %4207 = vmatprep.subr.mxu0 %v3152
    %4208 = vmatpush1.msra.mxu0 %v3151
    %4209 = vmatprep.subr.mxu0 %v3160
    %4210 = vmatpush1.msra.mxu0 %v3159
    %4211 = vmatprep.subr.mxu0 %v3168
    %4212 = vmatpush1.msra.mxu0 %v3167
    %4213 = vmatprep.subr.mxu0 %v3176
    %4214 = vmatpush1.msra.mxu0 %v3175
    %4215 = vmatprep.subr.mxu0 %v3184
    %4216 = vmatpush1.msra.mxu0 %v3183
    %4217 = vmatprep.mubr.f32.mxu0 %v2416
    %4218 = vmatmul.mubr.f32.gmra.mrb[0].mxu0 %v2415
    %v4219 = vpop.f32.mrb[0].mxu0
    %v4220 = vadd.f32 %v4149, %v4219
    %v4221 = vpop.f32.mrb[0].mxu0
    %v4222 = vadd.f32 %v4151, %v4221
    %4223 = vdwg.mxu0
    %4224 = vmatprep.subr.mxu0 %v3192
    %4225 = vmatpush1.msra.mxu0 %v3191
    %4226 = vmatprep.subr.mxu0 %v3200
    %4227 = vmatpush1.msra.mxu0 %v3199
    %4228 = vmatprep.subr.mxu0 %v3208
    %4229 = vmatpush1.msra.mxu0 %v3207
    %4230 = vmatprep.subr.mxu0 %v3216
    %4231 = vmatpush1.msra.mxu0 %v3215
    %4232 = vmatprep.subr.mxu0 %v3224
    %4233 = vmatpush1.msra.mxu0 %v3223
    %4234 = vmatprep.subr.mxu0 %v3232
    %4235 = vmatpush1.msra.mxu0 %v3231
    %4236 = vmatprep.subr.mxu0 %v3240
    %4237 = vmatpush1.msra.mxu0 %v3239
    %4238 = vmatprep.subr.mxu0 %v3248
    %4239 = vmatpush1.msra.mxu0 %v3247
    %4240 = vmatprep.subr.mxu0 %v3256
    %4241 = vmatpush1.msra.mxu0 %v3255
    %4242 = vmatprep.subr.mxu0 %v3264
    %4243 = vmatpush1.msra.mxu0 %v3263
    %4244 = vmatprep.subr.mxu0 %v3272
    %4245 = vmatpush1.msra.mxu0 %v3271
    %4246 = vmatprep.subr.mxu0 %v3280
    %4247 = vmatpush1.msra.mxu0 %v3279
    %4248 = vmatprep.subr.mxu0 %v3288
    %4249 = vmatpush1.msra.mxu0 %v3287
    %4250 = vmatprep.subr.mxu0 %v3296
    %4251 = vmatpush1.msra.mxu0 %v3295
    %4252 = vmatprep.subr.mxu0 %v3304
    %4253 = vmatpush1.msra.mxu0 %v3303
    %4254 = vmatprep.subr.mxu0 %v3312
    %4255 = vmatpush1.msra.mxu0 %v3311
    %4256 = vmatprep.subr.mxu0 %v3320
    %4257 = vmatpush1.msra.mxu0 %v3319
    %4258 = vmatprep.subr.mxu0 %v3328
    %4259 = vmatpush1.msra.mxu0 %v3327
    %4260 = vmatprep.subr.mxu0 %v3336
    %4261 = vmatpush1.msra.mxu0 %v3335
    %4262 = vmatprep.subr.mxu0 %v3344
    %4263 = vmatpush1.msra.mxu0 %v3343
    %4264 = vmatprep.subr.mxu0 %v3352
    %4265 = vmatpush1.msra.mxu0 %v3351
    %4266 = vmatprep.subr.mxu0 %v3360
    %4267 = vmatpush1.msra.mxu0 %v3359
    %4268 = vmatprep.subr.mxu0 %v3368
    %4269 = vmatpush1.msra.mxu0 %v3367
    %4270 = vmatprep.subr.mxu0 %v3376
    %4271 = vmatpush1.msra.mxu0 %v3375
    %4272 = vmatprep.subr.mxu0 %v3384
    %4273 = vmatpush1.msra.mxu0 %v3383
    %4274 = vmatprep.subr.mxu0 %v3392
    %4275 = vmatpush1.msra.mxu0 %v3391
    %4276 = vmatprep.subr.mxu0 %v3400
    %4277 = vmatpush1.msra.mxu0 %v3399
    %4278 = vmatprep.subr.mxu0 %v3408
    %4279 = vmatpush1.msra.mxu0 %v3407
    %4280 = vmatprep.subr.mxu0 %v3416
    %4281 = vmatpush1.msra.mxu0 %v3415
    %4282 = vmatprep.subr.mxu0 %v3424
    %4283 = vmatpush1.msra.mxu0 %v3423
    %4284 = vmatprep.subr.mxu0 %v3432
    %4285 = vmatpush1.msra.mxu0 %v3431
    %4286 = vmatprep.subr.mxu0 %v3440
    %4287 = vmatpush1.msra.mxu0 %v3439
    %4288 = vmatprep.mubr.f32.mxu0 %v2418
    %4289 = vmatmul.mubr.f32.gmra.mrb[0].mxu0 %v2417
    %v4290 = vpop.f32.mrb[0].mxu0
    %v4291 = vadd.f32 %v4220, %v4290
    %v4292 = vpop.f32.mrb[0].mxu0
    %v4293 = vadd.f32 %v4222, %v4292
    %4294 = vdwg.mxu0
    %4295 = vmatprep.subr.mxu0 %v2426
    %4296 = vmatpush1.msra.mxu0 %v2425
    %4297 = vmatprep.subr.mxu0 %v2434
    %4298 = vmatpush1.msra.mxu0 %v2433
    %4299 = vmatprep.subr.mxu0 %v2442
    %4300 = vmatpush1.msra.mxu0 %v2441
    %4301 = vmatprep.subr.mxu0 %v2450
    %4302 = vmatpush1.msra.mxu0 %v2449
    %4303 = vmatprep.subr.mxu0 %v2458
    %4304 = vmatpush1.msra.mxu0 %v2457
    %4305 = vmatprep.subr.mxu0 %v2466
    %4306 = vmatpush1.msra.mxu0 %v2465
    %4307 = vmatprep.subr.mxu0 %v2474
    %4308 = vmatpush1.msra.mxu0 %v2473
    %4309 = vmatprep.subr.mxu0 %v2482
    %4310 = vmatpush1.msra.mxu0 %v2481
    %4311 = vmatprep.subr.mxu0 %v2490
    %4312 = vmatpush1.msra.mxu0 %v2489
    %4313 = vmatprep.subr.mxu0 %v2498
    %4314 = vmatpush1.msra.mxu0 %v2497
    %4315 = vmatprep.subr.mxu0 %v2506
    %4316 = vmatpush1.msra.mxu0 %v2505
    %4317 = vmatprep.subr.mxu0 %v2514
    %4318 = vmatpush1.msra.mxu0 %v2513
    %4319 = vmatprep.subr.mxu0 %v2522
    %4320 = vmatpush1.msra.mxu0 %v2521
    %4321 = vmatprep.subr.mxu0 %v2530
    %4322 = vmatpush1.msra.mxu0 %v2529
    %4323 = vmatprep.subr.mxu0 %v2538
    %4324 = vmatpush1.msra.mxu0 %v2537
    %4325 = vmatprep.subr.mxu0 %v2546
    %4326 = vmatpush1.msra.mxu0 %v2545
    %4327 = vmatprep.subr.mxu0 %v2554
    %4328 = vmatpush1.msra.mxu0 %v2553
    %4329 = vmatprep.subr.mxu0 %v2562
    %4330 = vmatpush1.msra.mxu0 %v2561
    %4331 = vmatprep.subr.mxu0 %v2570
    %4332 = vmatpush1.msra.mxu0 %v2569
    %4333 = vmatprep.subr.mxu0 %v2578
    %4334 = vmatpush1.msra.mxu0 %v2577
    %4335 = vmatprep.subr.mxu0 %v2586
    %4336 = vmatpush1.msra.mxu0 %v2585
    %4337 = vmatprep.subr.mxu0 %v2594
    %4338 = vmatpush1.msra.mxu0 %v2593
    %4339 = vmatprep.subr.mxu0 %v2602
    %4340 = vmatpush1.msra.mxu0 %v2601
    %4341 = vmatprep.subr.mxu0 %v2610
    %4342 = vmatpush1.msra.mxu0 %v2609
    %4343 = vmatprep.subr.mxu0 %v2618
    %4344 = vmatpush1.msra.mxu0 %v2617
    %4345 = vmatprep.subr.mxu0 %v2626
    %4346 = vmatpush1.msra.mxu0 %v2625
    %4347 = vmatprep.subr.mxu0 %v2634
    %4348 = vmatpush1.msra.mxu0 %v2633
    %4349 = vmatprep.subr.mxu0 %v2642
    %4350 = vmatpush1.msra.mxu0 %v2641
    %4351 = vmatprep.subr.mxu0 %v2650
    %4352 = vmatpush1.msra.mxu0 %v2649
    %4353 = vmatprep.subr.mxu0 %v2658
    %4354 = vmatpush1.msra.mxu0 %v2657
    %4355 = vmatprep.subr.mxu0 %v2666
    %4356 = vmatpush1.msra.mxu0 %v2665
    %4357 = vmatprep.subr.mxu0 %v2674
    %4358 = vmatpush1.msra.mxu0 %v2673
    %4359 = vmatprep.mubr.f32.mxu0 %v2412
    %4360 = vmatmul.mubr.f32.gmra.mrb[0].mxu0 %v2411
    %v4361 = vpop.f32.mrb[0].mxu0
    %v4362 = vadd.f32 0.0, %v4361
    %v4363 = vpop.f32.mrb[0].mxu0
    %v4364 = vadd.f32 0.0, %v4363
    %4365 = vdwg.mxu0
    %4366 = vmatprep.subr.mxu0 %v2682
    %4367 = vmatpush1.msra.mxu0 %v2681
    %4368 = vmatprep.subr.mxu0 %v2690
    %4369 = vmatpush1.msra.mxu0 %v2689
    %4370 = vmatprep.subr.mxu0 %v2698
    %4371 = vmatpush1.msra.mxu0 %v2697
    %4372 = vmatprep.subr.mxu0 %v2706
    %4373 = vmatpush1.msra.mxu0 %v2705
    %4374 = vmatprep.subr.mxu0 %v2714
    %4375 = vmatpush1.msra.mxu0 %v2713
    %4376 = vmatprep.subr.mxu0 %v2722
    %4377 = vmatpush1.msra.mxu0 %v2721
    %4378 = vmatprep.subr.mxu0 %v2730
    %4379 = vmatpush1.msra.mxu0 %v2729
    %4380 = vmatprep.subr.mxu0 %v2738
    %4381 = vmatpush1.msra.mxu0 %v2737
    %4382 = vmatprep.subr.mxu0 %v2746
    %4383 = vmatpush1.msra.mxu0 %v2745
    %4384 = vmatprep.subr.mxu0 %v2754
    %4385 = vmatpush1.msra.mxu0 %v2753
    %4386 = vmatprep.subr.mxu0 %v2762
    %4387 = vmatpush1.msra.mxu0 %v2761
    %4388 = vmatprep.subr.mxu0 %v2770
    %4389 = vmatpush1.msra.mxu0 %v2769
    %4390 = vmatprep.subr.mxu0 %v2778
    %4391 = vmatpush1.msra.mxu0 %v2777
    %4392 = vmatprep.subr.mxu0 %v2786
    %4393 = vmatpush1.msra.mxu0 %v2785
    %4394 = vmatprep.subr.mxu0 %v2794
    %4395 = vmatpush1.msra.mxu0 %v2793
    %4396 = vmatprep.subr.mxu0 %v2802
    %4397 = vmatpush1.msra.mxu0 %v2801
    %4398 = vmatprep.subr.mxu0 %v2810
    %4399 = vmatpush1.msra.mxu0 %v2809
    %4400 = vmatprep.subr.mxu0 %v2818
    %4401 = vmatpush1.msra.mxu0 %v2817
    %4402 = vmatprep.subr.mxu0 %v2826
    %4403 = vmatpush1.msra.mxu0 %v2825
    %4404 = vmatprep.subr.mxu0 %v2834
    %4405 = vmatpush1.msra.mxu0 %v2833
    %4406 = vmatprep.subr.mxu0 %v2842
    %4407 = vmatpush1.msra.mxu0 %v2841
    %4408 = vmatprep.subr.mxu0 %v2850
    %4409 = vmatpush1.msra.mxu0 %v2849
    %4410 = vmatprep.subr.mxu0 %v2858
    %4411 = vmatpush1.msra.mxu0 %v2857
    %4412 = vmatprep.subr.mxu0 %v2866
    %4413 = vmatpush1.msra.mxu0 %v2865
    %4414 = vmatprep.subr.mxu0 %v2874
    %4415 = vmatpush1.msra.mxu0 %v2873
    %4416 = vmatprep.subr.mxu0 %v2882
    %4417 = vmatpush1.msra.mxu0 %v2881
    %4418 = vmatprep.subr.mxu0 %v2890
    %4419 = vmatpush1.msra.mxu0 %v2889
    %4420 = vmatprep.subr.mxu0 %v2898
    %4421 = vmatpush1.msra.mxu0 %v2897
    %4422 = vmatprep.subr.mxu0 %v2906
    %4423 = vmatpush1.msra.mxu0 %v2905
    %4424 = vmatprep.subr.mxu0 %v2914
    %4425 = vmatpush1.msra.mxu0 %v2913
    %4426 = vmatprep.subr.mxu0 %v2922
    %4427 = vmatpush1.msra.mxu0 %v2921
    %4428 = vmatprep.subr.mxu0 %v2930
    %4429 = vmatpush1.msra.mxu0 %v2929
    %4430 = vmatprep.mubr.f32.mxu0 %v2414
    %4431 = vmatmul.mubr.f32.gmra.mrb[0].mxu0 %v2413
    %v4432 = vpop.f32.mrb[0].mxu0
    %v4433 = vadd.f32 %v4362, %v4432
    %v4434 = vpop.f32.mrb[0].mxu0
    %v4435 = vadd.f32 %v4364, %v4434
    %4436 = vdwg.mxu0
    %4437 = vmatprep.subr.mxu0 %v2938
    %4438 = vmatpush1.msra.mxu0 %v2937
    %4439 = vmatprep.subr.mxu0 %v2946
    %4440 = vmatpush1.msra.mxu0 %v2945
    %4441 = vmatprep.subr.mxu0 %v2954
    %4442 = vmatpush1.msra.mxu0 %v2953
    %4443 = vmatprep.subr.mxu0 %v2962
    %4444 = vmatpush1.msra.mxu0 %v2961
    %4445 = vmatprep.subr.mxu0 %v2970
    %4446 = vmatpush1.msra.mxu0 %v2969
    %4447 = vmatprep.subr.mxu0 %v2978
    %4448 = vmatpush1.msra.mxu0 %v2977
    %4449 = vmatprep.subr.mxu0 %v2986
    %4450 = vmatpush1.msra.mxu0 %v2985
    %4451 = vmatprep.subr.mxu0 %v2994
    %4452 = vmatpush1.msra.mxu0 %v2993
    %4453 = vmatprep.subr.mxu0 %v3002
    %4454 = vmatpush1.msra.mxu0 %v3001
    %4455 = vmatprep.subr.mxu0 %v3010
    %4456 = vmatpush1.msra.mxu0 %v3009
    %4457 = vmatprep.subr.mxu0 %v3018
    %4458 = vmatpush1.msra.mxu0 %v3017
    %4459 = vmatprep.subr.mxu0 %v3026
    %4460 = vmatpush1.msra.mxu0 %v3025
    %4461 = vmatprep.subr.mxu0 %v3034
    %4462 = vmatpush1.msra.mxu0 %v3033
    %4463 = vmatprep.subr.mxu0 %v3042
    %4464 = vmatpush1.msra.mxu0 %v3041
    %4465 = vmatprep.subr.mxu0 %v3050
    %4466 = vmatpush1.msra.mxu0 %v3049
    %4467 = vmatprep.subr.mxu0 %v3058
    %4468 = vmatpush1.msra.mxu0 %v3057
    %4469 = vmatprep.subr.mxu0 %v3066
    %4470 = vmatpush1.msra.mxu0 %v3065
    %4471 = vmatprep.subr.mxu0 %v3074
    %4472 = vmatpush1.msra.mxu0 %v3073
    %4473 = vmatprep.subr.mxu0 %v3082
    %4474 = vmatpush1.msra.mxu0 %v3081
    %4475 = vmatprep.subr.mxu0 %v3090
    %4476 = vmatpush1.msra.mxu0 %v3089
    %4477 = vmatprep.subr.mxu0 %v3098
    %4478 = vmatpush1.msra.mxu0 %v3097
    %4479 = vmatprep.subr.mxu0 %v3106
    %4480 = vmatpush1.msra.mxu0 %v3105
    %4481 = vmatprep.subr.mxu0 %v3114
    %4482 = vmatpush1.msra.mxu0 %v3113
    %4483 = vmatprep.subr.mxu0 %v3122
    %4484 = vmatpush1.msra.mxu0 %v3121
    %4485 = vmatprep.subr.mxu0 %v3130
    %4486 = vmatpush1.msra.mxu0 %v3129
    %4487 = vmatprep.subr.mxu0 %v3138
    %4488 = vmatpush1.msra.mxu0 %v3137
    %4489 = vmatprep.subr.mxu0 %v3146
    %4490 = vmatpush1.msra.mxu0 %v3145
    %4491 = vmatprep.subr.mxu0 %v3154
    %4492 = vmatpush1.msra.mxu0 %v3153
    %4493 = vmatprep.subr.mxu0 %v3162
    %4494 = vmatpush1.msra.mxu0 %v3161
    %4495 = vmatprep.subr.mxu0 %v3170
    %4496 = vmatpush1.msra.mxu0 %v3169
    %4497 = vmatprep.subr.mxu0 %v3178
    %4498 = vmatpush1.msra.mxu0 %v3177
    %4499 = vmatprep.subr.mxu0 %v3186
    %4500 = vmatpush1.msra.mxu0 %v3185
    %4501 = vmatprep.mubr.f32.mxu0 %v2416
    %4502 = vmatmul.mubr.f32.gmra.mrb[0].mxu0 %v2415
    %v4503 = vpop.f32.mrb[0].mxu0
    %v4504 = vadd.f32 %v4433, %v4503
    %v4505 = vpop.f32.mrb[0].mxu0
    %v4506 = vadd.f32 %v4435, %v4505
    %4507 = vdwg.mxu0
    %4508 = vmatprep.subr.mxu0 %v3194
    %4509 = vmatpush1.msra.mxu0 %v3193
    %4510 = vmatprep.subr.mxu0 %v3202
    %4511 = vmatpush1.msra.mxu0 %v3201
    %4512 = vmatprep.subr.mxu0 %v3210
    %4513 = vmatpush1.msra.mxu0 %v3209
    %4514 = vmatprep.subr.mxu0 %v3218
    %4515 = vmatpush1.msra.mxu0 %v3217
    %4516 = vmatprep.subr.mxu0 %v3226
    %4517 = vmatpush1.msra.mxu0 %v3225
    %4518 = vmatprep.subr.mxu0 %v3234
    %4519 = vmatpush1.msra.mxu0 %v3233
    %4520 = vmatprep.subr.mxu0 %v3242
    %4521 = vmatpush1.msra.mxu0 %v3241
    %4522 = vmatprep.subr.mxu0 %v3250
    %4523 = vmatpush1.msra.mxu0 %v3249
    %4524 = vmatprep.subr.mxu0 %v3258
    %4525 = vmatpush1.msra.mxu0 %v3257
    %4526 = vmatprep.subr.mxu0 %v3266
    %4527 = vmatpush1.msra.mxu0 %v3265
    %4528 = vmatprep.subr.mxu0 %v3274
    %4529 = vmatpush1.msra.mxu0 %v3273
    %4530 = vmatprep.subr.mxu0 %v3282
    %4531 = vmatpush1.msra.mxu0 %v3281
    %4532 = vmatprep.subr.mxu0 %v3290
    %4533 = vmatpush1.msra.mxu0 %v3289
    %4534 = vmatprep.subr.mxu0 %v3298
    %4535 = vmatpush1.msra.mxu0 %v3297
    %4536 = vmatprep.subr.mxu0 %v3306
    %4537 = vmatpush1.msra.mxu0 %v3305
    %4538 = vmatprep.subr.mxu0 %v3314
    %4539 = vmatpush1.msra.mxu0 %v3313
    %4540 = vmatprep.subr.mxu0 %v3322
    %4541 = vmatpush1.msra.mxu0 %v3321
    %4542 = vmatprep.subr.mxu0 %v3330
    %4543 = vmatpush1.msra.mxu0 %v3329
    %4544 = vmatprep.subr.mxu0 %v3338
    %4545 = vmatpush1.msra.mxu0 %v3337
    %4546 = vmatprep.subr.mxu0 %v3346
    %4547 = vmatpush1.msra.mxu0 %v3345
    %4548 = vmatprep.subr.mxu0 %v3354
    %4549 = vmatpush1.msra.mxu0 %v3353
    %4550 = vmatprep.subr.mxu0 %v3362
    %4551 = vmatpush1.msra.mxu0 %v3361
    %4552 = vmatprep.subr.mxu0 %v3370
    %4553 = vmatpush1.msra.mxu0 %v3369
    %4554 = vmatprep.subr.mxu0 %v3378
    %4555 = vmatpush1.msra.mxu0 %v3377
    %4556 = vmatprep.subr.mxu0 %v3386
    %4557 = vmatpush1.msra.mxu0 %v3385
    %4558 = vmatprep.subr.mxu0 %v3394
    %4559 = vmatpush1.msra.mxu0 %v3393
    %4560 = vmatprep.subr.mxu0 %v3402
    %4561 = vmatpush1.msra.mxu0 %v3401
    %4562 = vmatprep.subr.mxu0 %v3410
    %4563 = vmatpush1.msra.mxu0 %v3409
    %4564 = vmatprep.subr.mxu0 %v3418
    %4565 = vmatpush1.msra.mxu0 %v3417
    %4566 = vmatprep.subr.mxu0 %v3426
    %4567 = vmatpush1.msra.mxu0 %v3425
    %4568 = vmatprep.subr.mxu0 %v3434
    %4569 = vmatpush1.msra.mxu0 %v3433
    %4570 = vmatprep.subr.mxu0 %v3442
    %4571 = vmatpush1.msra.mxu0 %v3441
    %4572 = vmatprep.mubr.f32.mxu0 %v2418
    %4573 = vmatmul.mubr.f32.gmra.mrb[0].mxu0 %v2417
    %v4574 = vpop.f32.mrb[0].mxu0
    %v4575 = vadd.f32 %v4504, %v4574
    %v4576 = vpop.f32.mrb[0].mxu0
    %v4577 = vadd.f32 %v4506, %v4576
    %4578 = vdwg.mxu0
    %v4579 = vld [vmem:[#allocation11] sm:$0xff]
    %v4581 = vlaneseq
    %v4582 = vshrl.u32 %v4581, 7
    %v4583 = vsub.s32 0, %v4582
    %v4584 = vrot.slane %v4579, %v4583
    %v4585 = vlaneseq
    %v4586 = vshrl.u32 %v4585, 7
    %v4587 = vsub.s32 1, %v4586
    %v4588 = vrot.slane %v4579, %v4587
    %v4589 = vlaneseq
    %v4590 = vshrl.u32 %v4589, 7
    %v4591 = vsub.s32 2, %v4590
    %v4592 = vrot.slane %v4579, %v4591
    %v4593 = vlaneseq
    %v4594 = vshrl.u32 %v4593, 7
    %v4595 = vsub.s32 3, %v4594
    %v4596 = vrot.slane %v4579, %v4595
    %v4597 = vlaneseq
    %v4598 = vshrl.u32 %v4597, 7
    %v4599 = vsub.s32 4, %v4598
    %v4600 = vrot.slane %v4579, %v4599
    %v4601 = vlaneseq
    %v4602 = vshrl.u32 %v4601, 7
    %v4603 = vsub.s32 5, %v4602
    %v4604 = vrot.slane %v4579, %v4603
    %v4605 = vlaneseq
    %v4606 = vshrl.u32 %v4605, 7
    %v4607 = vsub.s32 6, %v4606
    %v4608 = vrot.slane %v4579, %v4607
    %v4609 = vlaneseq
    %v4610 = vshrl.u32 %v4609, 7
    %v4611 = vsub.s32 7, %v4610
    %v4612 = vrot.slane %v4579, %v4611
    %v4621 = vmul.f32 %v3723, %v4584
    %v4622 = vmul.f32 %v3725, %v4588
    %v4623 = vmul.f32 %v4007, %v4592
    %v4624 = vmul.f32 %v4009, %v4596
    %v4625 = vmul.f32 %v4291, %v4600
    %v4626 = vmul.f32 %v4293, %v4604
    %v4627 = vmul.f32 %v4575, %v4608
    %v4628 = vmul.f32 %v4577, %v4612
    %v4629 = vld [vmem:[#allocation13] sm:$0xff]
    %v4631 = vlaneseq
    %v4632 = vshrl.u32 %v4631, 7
    %v4633 = vsub.s32 0, %v4632
    %v4634 = vrot.slane %v4629, %v4633
    %v4635 = vlaneseq
    %v4636 = vshrl.u32 %v4635, 7
    %v4637 = vsub.s32 1, %v4636
    %v4638 = vrot.slane %v4629, %v4637
    %v4639 = vlaneseq
    %v4640 = vshrl.u32 %v4639, 7
    %v4641 = vsub.s32 2, %v4640
    %v4642 = vrot.slane %v4629, %v4641
    %v4643 = vlaneseq
    %v4644 = vshrl.u32 %v4643, 7
    %v4645 = vsub.s32 3, %v4644
    %v4646 = vrot.slane %v4629, %v4645
    %v4647 = vlaneseq
    %v4648 = vshrl.u32 %v4647, 7
    %v4649 = vsub.s32 4, %v4648
    %v4650 = vrot.slane %v4629, %v4649
    %v4651 = vlaneseq
    %v4652 = vshrl.u32 %v4651, 7
    %v4653 = vsub.s32 5, %v4652
    %v4654 = vrot.slane %v4629, %v4653
    %v4655 = vlaneseq
    %v4656 = vshrl.u32 %v4655, 7
    %v4657 = vsub.s32 6, %v4656
    %v4658 = vrot.slane %v4629, %v4657
    %v4659 = vlaneseq
    %v4660 = vshrl.u32 %v4659, 7
    %v4661 = vsub.s32 7, %v4660
    %v4662 = vrot.slane %v4629, %v4661
    %v4671 = vadd.f32 %v4621, %v4634
    %v4672 = vadd.f32 %v4622, %v4638
    %v4673 = vadd.f32 %v4623, %v4642
    %v4674 = vadd.f32 %v4624, %v4646
    %v4675 = vadd.f32 %v4625, %v4650
    %v4676 = vadd.f32 %v4626, %v4654
    %v4677 = vadd.f32 %v4627, %v4658
    %v4678 = vadd.f32 %v4628, %v4662
    %v4679 = vadd.f32 %v143, %v4671
    %v4680 = vadd.f32 %v144, %v4672
    %v4681 = vadd.f32 %v145, %v4673
    %v4682 = vadd.f32 %v146, %v4674
    %v4683 = vadd.f32 %v147, %v4675
    %v4684 = vadd.f32 %v148, %v4676
    %v4685 = vadd.f32 %v149, %v4677
    %v4686 = vadd.f32 %v150, %v4678
    %v4687 = vld [vmem:[#allocation14] sm:$0xff]
    %v4688 = vld [vmem:[#allocation14 + $0x8] sm:$0xff]
    %v4689 = vld [vmem:[#allocation14 + $0x10] sm:$0xff]
    %v4690 = vld [vmem:[#allocation14 + $0x18] sm:$0xff]
    %v4691 = vld [vmem:[#allocation14 + $0x20] sm:$0xff]
    %v4692 = vld [vmem:[#allocation14 + $0x28] sm:$0xff]
    %v4693 = vld [vmem:[#allocation14 + $0x30] sm:$0xff]
    %v4694 = vld [vmem:[#allocation14 + $0x38] sm:$0xff]
    %v4695 = vld [vmem:[#allocation14 + $0x40] sm:$0xff]
    %v4696 = vld [vmem:[#allocation14 + $0x48] sm:$0xff]
    %v4697 = vld [vmem:[#allocation14 + $0x50] sm:$0xff]
    %v4698 = vld [vmem:[#allocation14 + $0x58] sm:$0xff]
    %v4699 = vld [vmem:[#allocation14 + $0x60] sm:$0xff]
    %v4700 = vld [vmem:[#allocation14 + $0x68] sm:$0xff]
    %v4701 = vld [vmem:[#allocation14 + $0x70] sm:$0xff]
    %v4702 = vld [vmem:[#allocation14 + $0x78] sm:$0xff]
    %v4703 = vld [vmem:[#allocation14 + $0x80] sm:$0xff]
    %v4704 = vld [vmem:[#allocation14 + $0x88] sm:$0xff]
    %v4705 = vld [vmem:[#allocation14 + $0x90] sm:$0xff]
    %v4706 = vld [vmem:[#allocation14 + $0x98] sm:$0xff]
    %v4707 = vld [vmem:[#allocation14 + $0xa0] sm:$0xff]
    %v4708 = vld [vmem:[#allocation14 + $0xa8] sm:$0xff]
    %v4709 = vld [vmem:[#allocation14 + $0xb0] sm:$0xff]
    %v4710 = vld [vmem:[#allocation14 + $0xb8] sm:$0xff]
    %v4711 = vld [vmem:[#allocation14 + $0xc0] sm:$0xff]
    %v4712 = vld [vmem:[#allocation14 + $0xc8] sm:$0xff]
    %v4713 = vld [vmem:[#allocation14 + $0xd0] sm:$0xff]
    %v4714 = vld [vmem:[#allocation14 + $0xd8] sm:$0xff]
    %v4715 = vld [vmem:[#allocation14 + $0xe0] sm:$0xff]
    %v4716 = vld [vmem:[#allocation14 + $0xe8] sm:$0xff]
    %v4717 = vld [vmem:[#allocation14 + $0xf0] sm:$0xff]
    %v4718 = vld [vmem:[#allocation14 + $0xf8] sm:$0xff]
    %v4719 = vld [vmem:[#allocation14 + $0x100] sm:$0xff]
    %v4720 = vld [vmem:[#allocation14 + $0x108] sm:$0xff]
    %v4721 = vld [vmem:[#allocation14 + $0x110] sm:$0xff]
    %v4722 = vld [vmem:[#allocation14 + $0x118] sm:$0xff]
    %v4723 = vld [vmem:[#allocation14 + $0x120] sm:$0xff]
    %v4724 = vld [vmem:[#allocation14 + $0x128] sm:$0xff]
    %v4725 = vld [vmem:[#allocation14 + $0x130] sm:$0xff]
    %v4726 = vld [vmem:[#allocation14 + $0x138] sm:$0xff]
    %v4727 = vld [vmem:[#allocation14 + $0x140] sm:$0xff]
    %v4728 = vld [vmem:[#allocation14 + $0x148] sm:$0xff]
    %v4729 = vld [vmem:[#allocation14 + $0x150] sm:$0xff]
    %v4730 = vld [vmem:[#allocation14 + $0x158] sm:$0xff]
    %v4731 = vld [vmem:[#allocation14 + $0x160] sm:$0xff]
    %v4732 = vld [vmem:[#allocation14 + $0x168] sm:$0xff]
    %v4733 = vld [vmem:[#allocation14 + $0x170] sm:$0xff]
    %v4734 = vld [vmem:[#allocation14 + $0x178] sm:$0xff]
    %v4735 = vld [vmem:[#allocation14 + $0x180] sm:$0xff]
    %v4736 = vld [vmem:[#allocation14 + $0x188] sm:$0xff]
    %v4737 = vld [vmem:[#allocation14 + $0x190] sm:$0xff]
    %v4738 = vld [vmem:[#allocation14 + $0x198] sm:$0xff]
    %v4739 = vld [vmem:[#allocation14 + $0x1a0] sm:$0xff]
    %v4740 = vld [vmem:[#allocation14 + $0x1a8] sm:$0xff]
    %v4741 = vld [vmem:[#allocation14 + $0x1b0] sm:$0xff]
    %v4742 = vld [vmem:[#allocation14 + $0x1b8] sm:$0xff]
    %v4743 = vld [vmem:[#allocation14 + $0x1c0] sm:$0xff]
    %v4744 = vld [vmem:[#allocation14 + $0x1c8] sm:$0xff]
    %v4745 = vld [vmem:[#allocation14 + $0x1d0] sm:$0xff]
    %v4746 = vld [vmem:[#allocation14 + $0x1d8] sm:$0xff]
    %v4747 = vld [vmem:[#allocation14 + $0x1e0] sm:$0xff]
    %v4748 = vld [vmem:[#allocation14 + $0x1e8] sm:$0xff]
    %v4749 = vld [vmem:[#allocation14 + $0x1f0] sm:$0xff]
    %v4750 = vld [vmem:[#allocation14 + $0x1f8] sm:$0xff]
    %v4751 = vld [vmem:[#allocation14 + $0x200] sm:$0xff]
    %v4752 = vld [vmem:[#allocation14 + $0x208] sm:$0xff]
    %v4753 = vld [vmem:[#allocation14 + $0x210] sm:$0xff]
    %v4754 = vld [vmem:[#allocation14 + $0x218] sm:$0xff]
    %v4755 = vld [vmem:[#allocation14 + $0x220] sm:$0xff]
    %v4756 = vld [vmem:[#allocation14 + $0x228] sm:$0xff]
    %v4757 = vld [vmem:[#allocation14 + $0x230] sm:$0xff]
    %v4758 = vld [vmem:[#allocation14 + $0x238] sm:$0xff]
    %v4759 = vld [vmem:[#allocation14 + $0x240] sm:$0xff]
    %v4760 = vld [vmem:[#allocation14 + $0x248] sm:$0xff]
    %v4761 = vld [vmem:[#allocation14 + $0x250] sm:$0xff]
    %v4762 = vld [vmem:[#allocation14 + $0x258] sm:$0xff]
    %v4763 = vld [vmem:[#allocation14 + $0x260] sm:$0xff]
    %v4764 = vld [vmem:[#allocation14 + $0x268] sm:$0xff]
    %v4765 = vld [vmem:[#allocation14 + $0x270] sm:$0xff]
    %v4766 = vld [vmem:[#allocation14 + $0x278] sm:$0xff]
    %v4767 = vld [vmem:[#allocation14 + $0x280] sm:$0xff]
    %v4768 = vld [vmem:[#allocation14 + $0x288] sm:$0xff]
    %v4769 = vld [vmem:[#allocation14 + $0x290] sm:$0xff]
    %v4770 = vld [vmem:[#allocation14 + $0x298] sm:$0xff]
    %v4771 = vld [vmem:[#allocation14 + $0x2a0] sm:$0xff]
    %v4772 = vld [vmem:[#allocation14 + $0x2a8] sm:$0xff]
    %v4773 = vld [vmem:[#allocation14 + $0x2b0] sm:$0xff]
    %v4774 = vld [vmem:[#allocation14 + $0x2b8] sm:$0xff]
    %v4775 = vld [vmem:[#allocation14 + $0x2c0] sm:$0xff]
    %v4776 = vld [vmem:[#allocation14 + $0x2c8] sm:$0xff]
    %v4777 = vld [vmem:[#allocation14 + $0x2d0] sm:$0xff]
    %v4778 = vld [vmem:[#allocation14 + $0x2d8] sm:$0xff]
    %v4779 = vld [vmem:[#allocation14 + $0x2e0] sm:$0xff]
    %v4780 = vld [vmem:[#allocation14 + $0x2e8] sm:$0xff]
    %v4781 = vld [vmem:[#allocation14 + $0x2f0] sm:$0xff]
    %v4782 = vld [vmem:[#allocation14 + $0x2f8] sm:$0xff]
    %v4783 = vld [vmem:[#allocation14 + $0x300] sm:$0xff]
    %v4784 = vld [vmem:[#allocation14 + $0x308] sm:$0xff]
    %v4785 = vld [vmem:[#allocation14 + $0x310] sm:$0xff]
    %v4786 = vld [vmem:[#allocation14 + $0x318] sm:$0xff]
    %v4787 = vld [vmem:[#allocation14 + $0x320] sm:$0xff]
    %v4788 = vld [vmem:[#allocation14 + $0x328] sm:$0xff]
    %v4789 = vld [vmem:[#allocation14 + $0x330] sm:$0xff]
    %v4790 = vld [vmem:[#allocation14 + $0x338] sm:$0xff]
    %v4791 = vld [vmem:[#allocation14 + $0x340] sm:$0xff]
    %v4792 = vld [vmem:[#allocation14 + $0x348] sm:$0xff]
    %v4793 = vld [vmem:[#allocation14 + $0x350] sm:$0xff]
    %v4794 = vld [vmem:[#allocation14 + $0x358] sm:$0xff]
    %v4795 = vld [vmem:[#allocation14 + $0x360] sm:$0xff]
    %v4796 = vld [vmem:[#allocation14 + $0x368] sm:$0xff]
    %v4797 = vld [vmem:[#allocation14 + $0x370] sm:$0xff]
    %v4798 = vld [vmem:[#allocation14 + $0x378] sm:$0xff]
    %v4799 = vld [vmem:[#allocation14 + $0x380] sm:$0xff]
    %v4800 = vld [vmem:[#allocation14 + $0x388] sm:$0xff]
    %v4801 = vld [vmem:[#allocation14 + $0x390] sm:$0xff]
    %v4802 = vld [vmem:[#allocation14 + $0x398] sm:$0xff]
    %v4803 = vld [vmem:[#allocation14 + $0x3a0] sm:$0xff]
    %v4804 = vld [vmem:[#allocation14 + $0x3a8] sm:$0xff]
    %v4805 = vld [vmem:[#allocation14 + $0x3b0] sm:$0xff]
    %v4806 = vld [vmem:[#allocation14 + $0x3b8] sm:$0xff]
    %v4807 = vld [vmem:[#allocation14 + $0x3c0] sm:$0xff]
    %v4808 = vld [vmem:[#allocation14 + $0x3c8] sm:$0xff]
    %v4809 = vld [vmem:[#allocation14 + $0x3d0] sm:$0xff]
    %v4810 = vld [vmem:[#allocation14 + $0x3d8] sm:$0xff]
    %v4811 = vld [vmem:[#allocation14 + $0x3e0] sm:$0xff]
    %v4812 = vld [vmem:[#allocation14 + $0x3e8] sm:$0xff]
    %v4813 = vld [vmem:[#allocation14 + $0x3f0] sm:$0xff]
    %v4814 = vld [vmem:[#allocation14 + $0x3f8] sm:$0xff]
    %v4815 = vld [vmem:[#allocation16] sm:$0x1]
    %v4817 = vlaneseq
    %v4818 = vshrl.u32 %v4817, 7
    %v4819 = vsub.s32 0, %v4818
    %v4820 = vrot.slane %v4815, %v4819
    %4822 = vmatprep.subr.mxu0 0.0
    %4823 = vmatpush1.msra.mxu0 %v4687
    %4824 = vmatprep.subr.mxu0 0.0
    %4825 = vmatpush1.msra.mxu0 %v4688
    %4826 = vmatprep.subr.mxu0 0.0
    %4827 = vmatpush1.msra.mxu0 %v4689
    %4828 = vmatprep.subr.mxu0 0.0
    %4829 = vmatpush1.msra.mxu0 %v4690
    %4830 = vmatprep.subr.mxu0 0.0
    %4831 = vmatpush1.msra.mxu0 %v4691
    %4832 = vmatprep.subr.mxu0 0.0
    %4833 = vmatpush1.msra.mxu0 %v4692
    %4834 = vmatprep.subr.mxu0 0.0
    %4835 = vmatpush1.msra.mxu0 %v4693
    %4836 = vmatprep.subr.mxu0 0.0
    %4837 = vmatpush1.msra.mxu0 %v4694
    %4838 = vmatprep.subr.mxu0 0.0
    %4839 = vmatpush1.msra.mxu0 %v4695
    %4840 = vmatprep.subr.mxu0 0.0
    %4841 = vmatpush1.msra.mxu0 %v4696
    %4842 = vmatprep.subr.mxu0 0.0
    %4843 = vmatpush1.msra.mxu0 %v4697
    %4844 = vmatprep.subr.mxu0 0.0
    %4845 = vmatpush1.msra.mxu0 %v4698
    %4846 = vmatprep.subr.mxu0 0.0
    %4847 = vmatpush1.msra.mxu0 %v4699
    %4848 = vmatprep.subr.mxu0 0.0
    %4849 = vmatpush1.msra.mxu0 %v4700
    %4850 = vmatprep.subr.mxu0 0.0
    %4851 = vmatpush1.msra.mxu0 %v4701
    %4852 = vmatprep.subr.mxu0 0.0
    %4853 = vmatpush1.msra.mxu0 %v4702
    %4854 = vmatprep.subr.mxu0 0.0
    %4855 = vmatpush1.msra.mxu0 %v4703
    %4856 = vmatprep.subr.mxu0 0.0
    %4857 = vmatpush1.msra.mxu0 %v4704
    %4858 = vmatprep.subr.mxu0 0.0
    %4859 = vmatpush1.msra.mxu0 %v4705
    %4860 = vmatprep.subr.mxu0 0.0
    %4861 = vmatpush1.msra.mxu0 %v4706
    %4862 = vmatprep.subr.mxu0 0.0
    %4863 = vmatpush1.msra.mxu0 %v4707
    %4864 = vmatprep.subr.mxu0 0.0
    %4865 = vmatpush1.msra.mxu0 %v4708
    %4866 = vmatprep.subr.mxu0 0.0
    %4867 = vmatpush1.msra.mxu0 %v4709
    %4868 = vmatprep.subr.mxu0 0.0
    %4869 = vmatpush1.msra.mxu0 %v4710
    %4870 = vmatprep.subr.mxu0 0.0
    %4871 = vmatpush1.msra.mxu0 %v4711
    %4872 = vmatprep.subr.mxu0 0.0
    %4873 = vmatpush1.msra.mxu0 %v4712
    %4874 = vmatprep.subr.mxu0 0.0
    %4875 = vmatpush1.msra.mxu0 %v4713
    %4876 = vmatprep.subr.mxu0 0.0
    %4877 = vmatpush1.msra.mxu0 %v4714
    %4878 = vmatprep.subr.mxu0 0.0
    %4879 = vmatpush1.msra.mxu0 %v4715
    %4880 = vmatprep.subr.mxu0 0.0
    %4881 = vmatpush1.msra.mxu0 %v4716
    %4882 = vmatprep.subr.mxu0 0.0
    %4883 = vmatpush1.msra.mxu0 %v4717
    %4884 = vmatprep.subr.mxu0 0.0
    %4885 = vmatpush1.msra.mxu0 %v4718
    %4886 = vmatprep.mubr.f32.mxu0 %v4680
    %4887 = vmatmul.mubr.f32.gmra.mrb[0].mxu0 %v4679
    %v4888 = vpop.f32.mrb[0].mxu0
    %v4889 = vadd.f32 %v4820, %v4888
    %v4890 = vpop.f32.mrb[0].mxu0
    %4891 = vdwg.mxu0
    %4892 = vmatprep.subr.mxu0 0.0
    %4893 = vmatpush1.msra.mxu0 %v4719
    %4894 = vmatprep.subr.mxu0 0.0
    %4895 = vmatpush1.msra.mxu0 %v4720
    %4896 = vmatprep.subr.mxu0 0.0
    %4897 = vmatpush1.msra.mxu0 %v4721
    %4898 = vmatprep.subr.mxu0 0.0
    %4899 = vmatpush1.msra.mxu0 %v4722
    %4900 = vmatprep.subr.mxu0 0.0
    %4901 = vmatpush1.msra.mxu0 %v4723
    %4902 = vmatprep.subr.mxu0 0.0
    %4903 = vmatpush1.msra.mxu0 %v4724
    %4904 = vmatprep.subr.mxu0 0.0
    %4905 = vmatpush1.msra.mxu0 %v4725
    %4906 = vmatprep.subr.mxu0 0.0
    %4907 = vmatpush1.msra.mxu0 %v4726
    %4908 = vmatprep.subr.mxu0 0.0
    %4909 = vmatpush1.msra.mxu0 %v4727
    %4910 = vmatprep.subr.mxu0 0.0
    %4911 = vmatpush1.msra.mxu0 %v4728
    %4912 = vmatprep.subr.mxu0 0.0
    %4913 = vmatpush1.msra.mxu0 %v4729
    %4914 = vmatprep.subr.mxu0 0.0
    %4915 = vmatpush1.msra.mxu0 %v4730
    %4916 = vmatprep.subr.mxu0 0.0
    %4917 = vmatpush1.msra.mxu0 %v4731
    %4918 = vmatprep.subr.mxu0 0.0
    %4919 = vmatpush1.msra.mxu0 %v4732
    %4920 = vmatprep.subr.mxu0 0.0
    %4921 = vmatpush1.msra.mxu0 %v4733
    %4922 = vmatprep.subr.mxu0 0.0
    %4923 = vmatpush1.msra.mxu0 %v4734
    %4924 = vmatprep.subr.mxu0 0.0
    %4925 = vmatpush1.msra.mxu0 %v4735
    %4926 = vmatprep.subr.mxu0 0.0
    %4927 = vmatpush1.msra.mxu0 %v4736
    %4928 = vmatprep.subr.mxu0 0.0
    %4929 = vmatpush1.msra.mxu0 %v4737
    %4930 = vmatprep.subr.mxu0 0.0
    %4931 = vmatpush1.msra.mxu0 %v4738
    %4932 = vmatprep.subr.mxu0 0.0
    %4933 = vmatpush1.msra.mxu0 %v4739
    %4934 = vmatprep.subr.mxu0 0.0
    %4935 = vmatpush1.msra.mxu0 %v4740
    %4936 = vmatprep.subr.mxu0 0.0
    %4937 = vmatpush1.msra.mxu0 %v4741
    %4938 = vmatprep.subr.mxu0 0.0
    %4939 = vmatpush1.msra.mxu0 %v4742
    %4940 = vmatprep.subr.mxu0 0.0
    %4941 = vmatpush1.msra.mxu0 %v4743
    %4942 = vmatprep.subr.mxu0 0.0
    %4943 = vmatpush1.msra.mxu0 %v4744
    %4944 = vmatprep.subr.mxu0 0.0
    %4945 = vmatpush1.msra.mxu0 %v4745
    %4946 = vmatprep.subr.mxu0 0.0
    %4947 = vmatpush1.msra.mxu0 %v4746
    %4948 = vmatprep.subr.mxu0 0.0
    %4949 = vmatpush1.msra.mxu0 %v4747
    %4950 = vmatprep.subr.mxu0 0.0
    %4951 = vmatpush1.msra.mxu0 %v4748
    %4952 = vmatprep.subr.mxu0 0.0
    %4953 = vmatpush1.msra.mxu0 %v4749
    %4954 = vmatprep.subr.mxu0 0.0
    %4955 = vmatpush1.msra.mxu0 %v4750
    %4956 = vmatprep.mubr.f32.mxu0 %v4682
    %4957 = vmatmul.mubr.f32.gmra.mrb[0].mxu0 %v4681
    %v4958 = vpop.f32.mrb[0].mxu0
    %v4959 = vadd.f32 %v4889, %v4958
    %v4960 = vpop.f32.mrb[0].mxu0
    %4961 = vdwg.mxu0
    %4962 = vmatprep.subr.mxu0 0.0
    %4963 = vmatpush1.msra.mxu0 %v4751
    %4964 = vmatprep.subr.mxu0 0.0
    %4965 = vmatpush1.msra.mxu0 %v4752
    %4966 = vmatprep.subr.mxu0 0.0
    %4967 = vmatpush1.msra.mxu0 %v4753
    %4968 = vmatprep.subr.mxu0 0.0
    %4969 = vmatpush1.msra.mxu0 %v4754
    %4970 = vmatprep.subr.mxu0 0.0
    %4971 = vmatpush1.msra.mxu0 %v4755
    %4972 = vmatprep.subr.mxu0 0.0
    %4973 = vmatpush1.msra.mxu0 %v4756
    %4974 = vmatprep.subr.mxu0 0.0
    %4975 = vmatpush1.msra.mxu0 %v4757
    %4976 = vmatprep.subr.mxu0 0.0
    %4977 = vmatpush1.msra.mxu0 %v4758
    %4978 = vmatprep.subr.mxu0 0.0
    %4979 = vmatpush1.msra.mxu0 %v4759
    %4980 = vmatprep.subr.mxu0 0.0
    %4981 = vmatpush1.msra.mxu0 %v4760
    %4982 = vmatprep.subr.mxu0 0.0
    %4983 = vmatpush1.msra.mxu0 %v4761
    %4984 = vmatprep.subr.mxu0 0.0
    %4985 = vmatpush1.msra.mxu0 %v4762
    %4986 = vmatprep.subr.mxu0 0.0
    %4987 = vmatpush1.msra.mxu0 %v4763
    %4988 = vmatprep.subr.mxu0 0.0
    %4989 = vmatpush1.msra.mxu0 %v4764
    %4990 = vmatprep.subr.mxu0 0.0
    %4991 = vmatpush1.msra.mxu0 %v4765
    %4992 = vmatprep.subr.mxu0 0.0
    %4993 = vmatpush1.msra.mxu0 %v4766
    %4994 = vmatprep.subr.mxu0 0.0
    %4995 = vmatpush1.msra.mxu0 %v4767
    %4996 = vmatprep.subr.mxu0 0.0
    %4997 = vmatpush1.msra.mxu0 %v4768
    %4998 = vmatprep.subr.mxu0 0.0
    %4999 = vmatpush1.msra.mxu0 %v4769
    %5000 = vmatprep.subr.mxu0 0.0
    %5001 = vmatpush1.msra.mxu0 %v4770
    %5002 = vmatprep.subr.mxu0 0.0
    %5003 = vmatpush1.msra.mxu0 %v4771
    %5004 = vmatprep.subr.mxu0 0.0
    %5005 = vmatpush1.msra.mxu0 %v4772
    %5006 = vmatprep.subr.mxu0 0.0
    %5007 = vmatpush1.msra.mxu0 %v4773
    %5008 = vmatprep.subr.mxu0 0.0
    %5009 = vmatpush1.msra.mxu0 %v4774
    %5010 = vmatprep.subr.mxu0 0.0
    %5011 = vmatpush1.msra.mxu0 %v4775
    %5012 = vmatprep.subr.mxu0 0.0
    %5013 = vmatpush1.msra.mxu0 %v4776
    %5014 = vmatprep.subr.mxu0 0.0
    %5015 = vmatpush1.msra.mxu0 %v4777
    %5016 = vmatprep.subr.mxu0 0.0
    %5017 = vmatpush1.msra.mxu0 %v4778
    %5018 = vmatprep.subr.mxu0 0.0
    %5019 = vmatpush1.msra.mxu0 %v4779
    %5020 = vmatprep.subr.mxu0 0.0
    %5021 = vmatpush1.msra.mxu0 %v4780
    %5022 = vmatprep.subr.mxu0 0.0
    %5023 = vmatpush1.msra.mxu0 %v4781
    %5024 = vmatprep.subr.mxu0 0.0
    %5025 = vmatpush1.msra.mxu0 %v4782
    %5026 = vmatprep.mubr.f32.mxu0 %v4684
    %5027 = vmatmul.mubr.f32.gmra.mrb[0].mxu0 %v4683
    %v5028 = vpop.f32.mrb[0].mxu0
    %v5029 = vadd.f32 %v4959, %v5028
    %v5030 = vpop.f32.mrb[0].mxu0
    %5031 = vdwg.mxu0
    %5032 = vmatprep.subr.mxu0 0.0
    %5033 = vmatpush1.msra.mxu0 %v4783
    %5034 = vmatprep.subr.mxu0 0.0
    %5035 = vmatpush1.msra.mxu0 %v4784
    %5036 = vmatprep.subr.mxu0 0.0
    %5037 = vmatpush1.msra.mxu0 %v4785
    %5038 = vmatprep.subr.mxu0 0.0
    %5039 = vmatpush1.msra.mxu0 %v4786
    %5040 = vmatprep.subr.mxu0 0.0
    %5041 = vmatpush1.msra.mxu0 %v4787
    %5042 = vmatprep.subr.mxu0 0.0
    %5043 = vmatpush1.msra.mxu0 %v4788
    %5044 = vmatprep.subr.mxu0 0.0
    %5045 = vmatpush1.msra.mxu0 %v4789
    %5046 = vmatprep.subr.mxu0 0.0
    %5047 = vmatpush1.msra.mxu0 %v4790
    %5048 = vmatprep.subr.mxu0 0.0
    %5049 = vmatpush1.msra.mxu0 %v4791
    %5050 = vmatprep.subr.mxu0 0.0
    %5051 = vmatpush1.msra.mxu0 %v4792
    %5052 = vmatprep.subr.mxu0 0.0
    %5053 = vmatpush1.msra.mxu0 %v4793
    %5054 = vmatprep.subr.mxu0 0.0
    %5055 = vmatpush1.msra.mxu0 %v4794
    %5056 = vmatprep.subr.mxu0 0.0
    %5057 = vmatpush1.msra.mxu0 %v4795
    %5058 = vmatprep.subr.mxu0 0.0
    %5059 = vmatpush1.msra.mxu0 %v4796
    %5060 = vmatprep.subr.mxu0 0.0
    %5061 = vmatpush1.msra.mxu0 %v4797
    %5062 = vmatprep.subr.mxu0 0.0
    %5063 = vmatpush1.msra.mxu0 %v4798
    %5064 = vmatprep.subr.mxu0 0.0
    %5065 = vmatpush1.msra.mxu0 %v4799
    %5066 = vmatprep.subr.mxu0 0.0
    %5067 = vmatpush1.msra.mxu0 %v4800
    %5068 = vmatprep.subr.mxu0 0.0
    %5069 = vmatpush1.msra.mxu0 %v4801
    %5070 = vmatprep.subr.mxu0 0.0
    %5071 = vmatpush1.msra.mxu0 %v4802
    %5072 = vmatprep.subr.mxu0 0.0
    %5073 = vmatpush1.msra.mxu0 %v4803
    %5074 = vmatprep.subr.mxu0 0.0
    %5075 = vmatpush1.msra.mxu0 %v4804
    %5076 = vmatprep.subr.mxu0 0.0
    %5077 = vmatpush1.msra.mxu0 %v4805
    %5078 = vmatprep.subr.mxu0 0.0
    %5079 = vmatpush1.msra.mxu0 %v4806
    %5080 = vmatprep.subr.mxu0 0.0
    %5081 = vmatpush1.msra.mxu0 %v4807
    %5082 = vmatprep.subr.mxu0 0.0
    %5083 = vmatpush1.msra.mxu0 %v4808
    %5084 = vmatprep.subr.mxu0 0.0
    %5085 = vmatpush1.msra.mxu0 %v4809
    %5086 = vmatprep.subr.mxu0 0.0
    %5087 = vmatpush1.msra.mxu0 %v4810
    %5088 = vmatprep.subr.mxu0 0.0
    %5089 = vmatpush1.msra.mxu0 %v4811
    %5090 = vmatprep.subr.mxu0 0.0
    %5091 = vmatpush1.msra.mxu0 %v4812
    %5092 = vmatprep.subr.mxu0 0.0
    %5093 = vmatpush1.msra.mxu0 %v4813
    %5094 = vmatprep.subr.mxu0 0.0
    %5095 = vmatpush1.msra.mxu0 %v4814
    %5096 = vmatprep.mubr.f32.mxu0 %v4686
    %5097 = vmatmul.mubr.f32.gmra.mrb[0].mxu0 %v4685
    %v5098 = vpop.f32.mrb[0].mxu0
    %v5099 = vadd.f32 %v5029, %v5098
    %v5100 = vpop.f32.mrb[0].mxu0
    %5101 = vdwg.mxu0
    %v5102 = vxor.u32 %v5099, 2147483648
    %v5103 = vmul.f32 %v5102, 1.442695
    %v5104 = vpow.pop %v5103
    %v5105 = vadd.f32 %v5104, 1.0
    %v5106 = vrcp.pop %v5105
    %v5107 = vmul.f32 1.0, %v5106
    %5108 = vst [vmem:[#allocation17] sm:$0xff] %v5107
    // Predicated region
    $region74: #{tpu_custom_call.1} parent=1 // pred_check
      _
    $region75: #{tpu_custom_call.1} parent=1 // pred_check_branch
      %5110 = sbr.rel (0) target = $region77
    $region76: #{tpu_custom_call.1} parent=1 // pred_region
      %s5112 = ssub.s32 128, 128
      %5113 = vsyncadd [#allocation4], %s5112
      %s5115 = sshll.u32 [#allocation17], 4
      %s5116 = int_to_ptr.vmem [resolvable:$true] %s5115
      %5118 = dma.vmem_to_hbm [thread:$0]  %s5116, 128, %s9, [#allocation4]
    $region77: #{tpu_custom_call.1} parent=1 // pred_fallthru
      _
    // Predicated region
    $region78: #{tpu_custom_call.1} parent=1 // pred_check
      _
    $region79: #{tpu_custom_call.1} parent=1 // pred_check_branch
      %5120 = sbr.rel (0) target = $region81
    $region80: #{tpu_custom_call.1} parent=1 // pred_region
      %5121 = dma.done [#allocation4], 128
    $region81: #{tpu_custom_call.1} parent=1 // pred_fallthru
      _
    %5122 = vsyncpa [#allocation3], 1
    %5123 = vsyncpa [#allocation6], 1
    %5124 = vsyncpa [#allocation9], 1
    %5125 = vsyncpa [#allocation12], 1
    %5126 = vsyncpa [#allocation15], 1
    %5127 = vsyncpa [#allocation4], 1

</llo_original>
